<compile_context>
chip_gen: v5e
topology: v5e:2x2
jax: 0.10.0
libtpu: 0.0.40
codegen_flags: <defaults>
</compile_context>

<pallas_src>
import functools

import jax
import jax.numpy as jnp
from jax.experimental import pallas as pl
from jax.experimental.pallas import tpu as pltpu

LANE = 128


def _round_up(n, m):
    return ((n + m - 1) // m) * m


def _vmem_capacity_bytes():
    try:
        info = pltpu.get_tpu_info()
        return int(getattr(info, "vmem_capacity_bytes", 64 * 1024 * 1024))
    except Exception:
        return 64 * 1024 * 1024          # conservative (v7x-sized) default


def default_elem_dtype(hw=None):
    """bf16 elementwise on v6e/v7x (native bf16 VPU), f32 otherwise (e.g. v5e)."""
    try:
        kind = jax.devices()[0].device_kind.lower()
    except Exception:
        return jnp.float32
    if not any(tag in kind for tag in ("v6", "v7", "7x")):
        return jnp.float32
    if hw is not None and hw % 16 != 0:   # keep bf16 sublane rolls nicely packed
        return jnp.float32
    return jnp.bfloat16


def _est_vmem_bytes(HW, Cin_p, Cout_p, tile_m, K, x_bytes, e_bytes, use_shortcut_conv):
    """Rough per-step VMEM footprint (double-buffered blocks + live intermediates)."""
    b = 0
    b += 2 * HW * Cin_p * x_bytes              # x block
    b += 2 * HW * Cout_p * 4                   # resident output block (f32)
    b += 2 * Cin_p * tile_m * 2                # w1 (bf16)
    b += 2 * tile_m * Cout_p * 2               # w2 (bf16)
    b += 2 * (K * K + 2) * tile_m * 4          # wdw / bdw / b1 (over-estimate as f32)
    b += 2 * Cout_p * 4                        # b2
    if use_shortcut_conv:
        b += 2 * Cin_p * Cout_p * 2 + 2 * Cout_p * 4
    else:
        b += HW * Cin_p * 2                    # bf16 x scratch (identity case)
    # live intermediates in the depthwise path: h (f32) + ~4 elementwise-dtype copies
    b += HW * tile_m * (4 + 4 * e_bytes)
    # shortcut / init temporaries over Cout
    b += HW * Cout_p * 4
    return b


def _pick_tile_m(HW, Cin_p, Cmid_p, Cout_p, *, K, x_bytes, e_bytes,
                 use_shortcut_conv, budget, max_tile_m=None):
    cands = [c for c in range(Cmid_p, 127, -128) if Cmid_p % c == 0]
    if max_tile_m is not None:
        cands = [c for c in cands if c <= max_tile_m] or [128]
    for c in cands:                            # descending: biggest that fits
        if _est_vmem_bytes(HW, Cin_p, Cout_p, c, K, x_bytes, e_bytes,
                           use_shortcut_conv) <= budget:
            return c
    return cands[-1]                           # smallest candidate as fallback


def _dw_inverted_block_kernel(*refs, H, W, K, eps, neg_slope,
                              use_shortcut_conv, use_xbf_scratch, elem_dtype):
    if use_shortcut_conv:
        (x_ref, w1_ref, b1_ref, wdw_ref, bdw_ref, w2_ref, b2_ref,
         ws_ref, bs_ref, o_ref) = refs
        xbf_ref = None
    elif use_xbf_scratch:
        (x_ref, w1_ref, b1_ref, wdw_ref, bdw_ref, w2_ref, b2_ref,
         o_ref, xbf_ref) = refs
    else:
        (x_ref, w1_ref, b1_ref, wdw_ref, bdw_ref, w2_ref, b2_ref, o_ref) = refs
        xbf_ref = None

    HW = H * W
    P = K // 2
    m = pl.program_id(1)
    bf16 = jnp.bfloat16
    edt = elem_dtype

    # ---- x in bf16 for the MXU matmuls (cast at most once per batch element)
    if use_shortcut_conv:
        x_bf = x_ref[...]                            # already bf16 from the wrapper
    elif use_xbf_scratch:
        @pl.when(m == 0)
        def _cast_x():
            xbf_ref[...] = x_ref[...].astype(bf16)
        x_bf = xbf_ref[...]
    else:
        x_bf = x_ref[...].astype(bf16)               # n_mid == 1: cast inline once

    # ---- pwconv1: 1x1 conv == channel matmul on the MXU (bf16 in, f32 acc)
    h = jnp.dot(x_bf, w1_ref[...], preferred_element_type=jnp.float32) + b1_ref[...]

    # ---- InstanceNorm (per-channel over spatial), one pass (f32)
    inv_n = 1.0 / HW
    mean = jnp.sum(h, axis=0, keepdims=True) * inv_n
    ex2 = jnp.sum(h * h, axis=0, keepdims=True) * inv_n
    var = ex2 - mean * mean
    h = (h - mean) * jax.lax.rsqrt(var + eps)

    # ---- LeakyReLU, then drop to the elementwise dtype for the depthwise path
    h = jnp.where(h >= 0, h, neg_slope * h)
    h_e = h.astype(edt)

    # ---- hoisted border masks (exact integer row/col indices)
    idx = jax.lax.broadcasted_iota(jnp.int32, (HW, 1), 0)
    row_ok, col_ok = {}, {}
    if K > 1:
        # column index: float-division estimate + one exact integer correction step
        # (exact for HW well below 2^23, far beyond any VMEM-resident slab)
        r0 = (idx.astype(jnp.float32) * (1.0 / W)).astype(jnp.int32)
        c0 = idx - r0 * W
        r1 = r0 + (c0 >= W).astype(jnp.int32) - (c0 < 0).astype(jnp.int32)
        coli = idx - r1 * W
        for dh in range(-P, P + 1):
            if dh < 0:
                row_ok[dh] = idx >= (-dh) * W        # row index >= -dh
            elif dh > 0:
                row_ok[dh] = idx < (H - dh) * W      # row index <  H - dh
        for dc in range(-P, P + 1):
            if dc < 0:
                col_ok[dc] = coli >= -dc
            elif dc > 0:
                col_ok[dc] = coli < (W - dc)

    # ---- depthwise KxK 'same' conv on the flattened (HW, tile_m) layout.
    # Column shifts (+-1, ... unaligned) first, then row shifts (+-W, sublane-aligned
    # when W%8==0) derived from them; wrapped / out-of-image positions masked to zero.
    wdw_all = wdw_ref[...]                           # (K*K, tile_m) in elem dtype
    dw_acc = jnp.zeros_like(h_e)
    for kw in range(K):
        dc = kw - P
        hc = h_e if dc == 0 else pltpu.roll(h_e, shift=(-dc) % HW, axis=0)
        for kh in range(K):
            dh = kh - P
            t = kh * K + kw
            tap = wdw_all[t:t + 1, :]
            s = hc if dh == 0 else pltpu.roll(hc, shift=(-dh * W) % HW, axis=0)
            if dh != 0 and dc != 0:
                valid = jnp.logical_and(row_ok[dh], col_ok[dc])
            elif dh != 0:
                valid = row_ok[dh]
            elif dc != 0:
                valid = col_ok[dc]
            else:
                valid = None
            if valid is not None:
                s = jnp.where(valid, s, 0.0)
            dw_acc = dw_acc + s * tap
    dw = dw_acc + bdw_ref[...]                       # elem dtype

    # ---- pwconv2: partial contribution of this Cmid tile (bf16 MXU, f32 acc)
    part = jnp.dot(dw.astype(bf16), w2_ref[...], preferred_element_type=jnp.float32)

    # ---- accumulate directly into the resident output block; fold shortcut + b2 +
    #      the first partial into the init write.
    @pl.when(m == 0)
    def _init():
        if use_shortcut_conv:
            sc = jnp.dot(x_bf, ws_ref[...],
                         preferred_element_type=jnp.float32) + bs_ref[...]
        else:
            sc = x_ref[...]                          # exact f32 identity shortcut
        o_ref[...] = sc + b2_ref[...] + part

    @pl.when(m > 0)
    def _acc():
        o_ref[...] = o_ref[...] + part


def dw_inverted_block(x_nchw, params, *, K=3, eps=1e-5, neg_slope=0.01,
                      elem_dtype=None, max_tile_m=None):
    """x_nchw: (B, Cin, H, W) float32 -> (B, Cout, H, W) float32."""
    B, Cin, H, W = x_nchw.shape
    Cmid = params["w1"].shape[1]
    Cout = params["w2"].shape[1]
    HW = H * W
    assert K % 2 == 1, "kernel_size must be odd for symmetric 'same' padding"
    assert HW % 8 == 0, "H*W must be a multiple of 8 (sublane tiling)"
    use_shortcut_conv = Cin != Cout

    f32, bf16 = jnp.float32, jnp.bfloat16
    edt = default_elem_dtype(HW) if elem_dtype is None else elem_dtype

    # lane-dense channel padding (weights zero-padded; output sliced back)
    Cin_p = _round_up(Cin, LANE)
    Cmid_p = _round_up(Cmid, LANE)
    Cout_p = _round_up(Cout, LANE)

    # generation-aware VMEM budget and HW-aware Cmid tile selection
    cap = _vmem_capacity_bytes()
    budget = (cap * 3) // 4
    x_bytes = 2 if use_shortcut_conv else 4
    e_bytes = jnp.dtype(edt).itemsize
    tile_m = _pick_tile_m(HW, Cin_p, Cmid_p, Cout_p, K=K, x_bytes=x_bytes,
                          e_bytes=e_bytes, use_shortcut_conv=use_shortcut_conv,
                          budget=budget, max_tile_m=max_tile_m)
    n_mid = Cmid_p // tile_m
    use_xbf_scratch = (not use_shortcut_conv) and (n_mid > 1)

    def pad2(a, r, c):
        return jnp.pad(a, ((0, r - a.shape[0]), (0, c - a.shape[1])))

    # matmul weights bf16; elementwise-path params in the elementwise dtype
    w1 = pad2(params["w1"], Cin_p, Cmid_p).astype(bf16)
    b1 = pad2(params["b1"], 1, Cmid_p).astype(f32)
    wdw = pad2(params["wdw"].reshape(K * K, Cmid), K * K, Cmid_p).astype(edt)
    bdw = pad2(params["bdw"], 1, Cmid_p).astype(edt)
    w2 = pad2(params["w2"], Cmid_p, Cout_p).astype(bf16)
    b2 = pad2(params["b2"], 1, Cout_p).astype(f32)

    # NCHW -> channels-last, flattened spatial, zero-padded channels
    x = jnp.transpose(x_nchw, (0, 2, 3, 1)).reshape(B, HW, Cin)
    x = jnp.pad(x, ((0, 0), (0, 0), (0, Cin_p - Cin)))
    x = x.astype(bf16 if use_shortcut_conv else f32)

    in_specs = [
        pl.BlockSpec((None, HW, Cin_p), lambda b, m: (b, 0, 0)),     # x (resident over m)
        pl.BlockSpec((Cin_p, tile_m), lambda b, m: (0, m)),          # w1
        pl.BlockSpec((1, tile_m), lambda b, m: (0, m)),              # b1
        pl.BlockSpec((K * K, tile_m), lambda b, m: (0, m)),          # wdw
        pl.BlockSpec((1, tile_m), lambda b, m: (0, m)),              # bdw
        pl.BlockSpec((tile_m, Cout_p), lambda b, m: (m, 0)),         # w2
        pl.BlockSpec((1, Cout_p), lambda b, m: (0, 0)),              # b2
    ]
    args = [x, w1, b1, wdw, bdw, w2, b2]
    if use_shortcut_conv:
        ws = pad2(params["ws"], Cin_p, Cout_p).astype(bf16)
        bs = pad2(params["bs"], 1, Cout_p).astype(f32)
        in_specs += [
            pl.BlockSpec((Cin_p, Cout_p), lambda b, m: (0, 0)),      # ws
            pl.BlockSpec((1, Cout_p), lambda b, m: (0, 0)),          # bs
        ]
        args += [ws, bs]

    scratch_shapes = []
    if use_xbf_scratch:
        scratch_shapes.append(pltpu.VMEM((HW, Cin_p), bf16))         # bf16 x cache

    kernel = functools.partial(
        _dw_inverted_block_kernel,
        H=H, W=W, K=K, eps=eps, neg_slope=neg_slope,
        use_shortcut_conv=use_shortcut_conv,
        use_xbf_scratch=use_xbf_scratch,
        elem_dtype=edt)

    out = pl.pallas_call(
        kernel,
        out_shape=jax.ShapeDtypeStruct((B, HW, Cout_p), f32),
        grid_spec=pltpu.PrefetchScalarGridSpec(
            num_scalar_prefetch=0,
            grid=(B, n_mid),
            in_specs=in_specs,
            out_specs=pl.BlockSpec((None, HW, Cout_p), lambda b, m: (b, 0, 0)),
            scratch_shapes=scratch_shapes,
        ),
        compiler_params=pltpu.CompilerParams(
            dimension_semantics=("parallel", "arbitrary"),
            vmem_limit_bytes=int(budget)),
    )(*args)

    out = out[:, :, :Cout].reshape(B, H, W, Cout)
    return jnp.transpose(out, (0, 3, 1, 2))


def _reference(x_nchw, p, *, K=3, eps=1e-5, neg_slope=0.01, elem_dtype=jnp.float32):
    """Pure-JAX reference mirroring the kernel's precision choices."""
    B, Cin, H, W = x_nchw.shape
    Cout = p["w2"].shape[1]
    P = K // 2
    bf16, f32 = jnp.bfloat16, jnp.float32
    edt = elem_dtype
    x = jnp.transpose(x_nchw, (0, 2, 3, 1)).astype(f32)
    xb = x.astype(bf16)
    h = jnp.einsum("bhwc,cd->bhwd", xb, p["w1"].astype(bf16),
                   preferred_element_type=f32) + p["b1"].reshape(-1)
    mean = h.mean(axis=(1, 2), keepdims=True)
    ex2 = (h * h).mean(axis=(1, 2), keepdims=True)
    var = ex2 - mean * mean
    h = (h - mean) * jax.lax.rsqrt(var + eps)
    h = jnp.where(h >= 0, h, neg_slope * h)
    h = h.astype(edt)
    hp = jnp.pad(h, ((0, 0), (P, P), (P, P), (0, 0)))
    acc = jnp.zeros_like(h)
    for kw in range(K):                      # same accumulation order as the kernel
        for kh in range(K):
            acc = acc + hp[:, kh:kh + H, kw:kw + W, :] * p["wdw"][kh, kw].astype(edt)
    acc = acc + p["bdw"].reshape(-1).astype(edt)
    out = jnp.einsum("bhwc,cd->bhwd", acc.astype(bf16), p["w2"].astype(bf16),
                     preferred_element_type=f32) + p["b2"].reshape(-1)
    if Cin != Cout:
        sc = jnp.einsum("bhwc,cd->bhwd", xb, p["ws"].astype(bf16),
                        preferred_element_type=f32) + p["bs"].reshape(-1)
    else:
        sc = x
    return jnp.transpose(out + sc, (0, 3, 1, 2))


def make_params(key, Cin, Cout, K=3, mlp_ratio=4.0):
    Cmid = int(mlp_ratio * Cout)
    ks = jax.random.split(key, 8)
    s = 0.1
    return {
        # pwconv1: PyTorch weight (Cmid, Cin, 1, 1) stored transposed as (Cin, Cmid)
        "w1": s * jax.random.normal(ks[0], (Cin, Cmid), jnp.float32),
        "b1": s * jax.random.normal(ks[1], (1, Cmid), jnp.float32),
        # depthwise weight: PyTorch (Cmid, 1, K, K) stored as (K, K, Cmid)
        "wdw": s * jax.random.normal(ks[2], (K, K, Cmid), jnp.float32),
        "bdw": s * jax.random.normal(ks[3], (1, Cmid), jnp.float32),
        # pwconv2: PyTorch (Cout, Cmid, 1, 1) stored as (Cmid, Cout)
        "w2": s * jax.random.normal(ks[4], (Cmid, Cout), jnp.float32),
        "b2": s * jax.random.normal(ks[5], (1, Cout), jnp.float32),
        # shortcut 1x1: PyTorch (Cout, Cin, 1, 1) stored as (Cin, Cout)
        "ws": s * jax.random.normal(ks[6], (Cin, Cout), jnp.float32),
        "bs": s * jax.random.normal(ks[7], (1, Cout), jnp.float32),
    }


def _check(x, params, *, K=3, max_tile_m=None, tol=2e-2):
    edt = default_elem_dtype(x.shape[2] * x.shape[3])
    y = jax.block_until_ready(
        dw_inverted_block(x, params, K=K, elem_dtype=edt, max_tile_m=max_tile_m))
    y_ref = jax.block_until_ready(_reference(x, params, K=K, elem_dtype=edt))
    assert y.shape == y_ref.shape, (y.shape, y_ref.shape)
    err = float(jnp.max(jnp.abs(y - y_ref)))
    assert jnp.allclose(y, y_ref, atol=tol, rtol=tol), f"max abs err = {err}"
    return y


if __name__ == "__main__":
    key = jax.random.PRNGKey(0)
    k1, k2, k3, k4, k5, k6 = jax.random.split(key, 6)
    K = 3

    # case 1: Cin != Cout (1x1 shortcut conv path), n_mid == 1
    B, Cin, Cout, H, W = 2, 4, 8, 16, 16
    x = jax.random.normal(k1, (B, Cin, H, W), jnp.float32)
    params = make_params(k2, Cin, Cout, K=K, mlp_ratio=4.0)
    y = _check(x, params, K=K)
    assert y.shape == (B, Cout, H, W)

    # case 2: Cin == Cout (exact identity shortcut), n_mid == 1
    B2, C2, H2, W2 = 2, 8, 8, 8
    x2 = jax.random.normal(k3, (B2, C2, H2, W2), jnp.float32)
    params2 = make_params(k4, C2, C2, K=K, mlp_ratio=4.0)
    y2 = _check(x2, params2, K=K)
    assert y2.shape == (B2, C2, H2, W2)

    # case 3: identity shortcut with Cmid split across 2 reduction tiles
    # (exercises the resident-output accumulation and the bf16 x scratch reuse)
    B3, C3, H3, W3 = 2, 64, 8, 8        # Cmid = 256 -> tile_m = 128 -> n_mid = 2
    x3 = jax.random.normal(k5, (B3, C3, H3, W3), jnp.float32)
    params3 = make_params(k6, C3, C3, K=K, mlp_ratio=4.0)
    y3 = _check(x3, params3, K=K, max_tile_m=128)
    assert y3.shape == (B3, C3, H3, W3)

    print("KERNEL_OK")
</pallas_src>

<mosaic_0001>
module attributes {stable_mosaic.version = 11 : i64} {
  func.func @_dw_inverted_block_kernel(%arg0: i32, %arg1: i32, %arg2: memref<1x256x128xbf16, #tpu.memory_space<vmem>>, %arg3: memref<128x128xbf16, #tpu.memory_space<vmem>>, %arg4: memref<1x128xf32, #tpu.memory_space<vmem>>, %arg5: memref<9x128xf32, #tpu.memory_space<vmem>>, %arg6: memref<1x128xf32, #tpu.memory_space<vmem>>, %arg7: memref<128x128xbf16, #tpu.memory_space<vmem>>, %arg8: memref<1x128xf32, #tpu.memory_space<vmem>>, %arg9: memref<128x128xbf16, #tpu.memory_space<vmem>>, %arg10: memref<1x128xf32, #tpu.memory_space<vmem>>, %arg11: memref<1x256x128xf32, #tpu.memory_space<vmem>>) attributes {dimension_semantics = [#tpu.dimension_semantics<parallel>, #tpu.dimension_semantics<arbitrary>], iteration_bounds = array<i64: 2, 1>, scalar_prefetch = 0 : i64, scratch_operands = 0 : i64, tpu.core_type = #tpu.core_type<tc>, window_params = [{transform_indices = @transform_0, window_bounds = array<i64: 1, 256, 128>}, {transform_indices = @transform_1, window_bounds = array<i64: 128, 128>}, {transform_indices = @transform_2, window_bounds = array<i64: 1, 128>}, {transform_indices = @transform_3, window_bounds = array<i64: 9, 128>}, {transform_indices = @transform_4, window_bounds = array<i64: 1, 128>}, {transform_indices = @transform_5, window_bounds = array<i64: 128, 128>}, {pipeline_mode = #tpu.pipeline_mode<synchronous>, transform_indices = @transform_6, window_bounds = array<i64: 1, 128>}, {pipeline_mode = #tpu.pipeline_mode<synchronous>, transform_indices = @transform_7, window_bounds = array<i64: 128, 128>}, {pipeline_mode = #tpu.pipeline_mode<synchronous>, transform_indices = @transform_8, window_bounds = array<i64: 1, 128>}, {transform_indices = @transform_9, window_bounds = array<i64: 1, 256, 128>}]} {
    %c0 = arith.constant 0 : index
    %c0_0 = arith.constant 0 : index
    %c0_1 = arith.constant 0 : index
    %0 = vector.load %arg2[%c0, %c0_0, %c0_1] : memref<1x256x128xbf16, #tpu.memory_space<vmem>>, vector<1x256x128xbf16>
    %1 = vector.shape_cast %0 : vector<1x256x128xbf16> to vector<256x128xbf16>
    %c0_2 = arith.constant 0 : index
    %c0_3 = arith.constant 0 : index
    %2 = vector.load %arg3[%c0_2, %c0_3] : memref<128x128xbf16, #tpu.memory_space<vmem>>, vector<128x128xbf16>
    %cst = arith.constant dense<0.000000e+00> : vector<256x128xf32>
    %3 = tpu.matmul %1, %2, %cst {dimension_numbers = #tpu.dot_dimension_numbers<[1], [0], [0], [1], [0, 0, 1, 1], [], []>} : vector<256x128xbf16>, vector<128x128xbf16>, vector<256x128xf32> -> vector<256x128xf32>
    %c0_4 = arith.constant 0 : index
    %c0_5 = arith.constant 0 : index
    %4 = vector.load %arg4[%c0_4, %c0_5] : memref<1x128xf32, #tpu.memory_space<vmem>>, vector<1x128xf32>
    %5 = vector.broadcast %4 : vector<1x128xf32> to vector<256x128xf32>
    %6 = arith.addf %3, %5 : vector<256x128xf32>
    %cst_6 = arith.constant dense<0.000000e+00> : vector<128xf32>
    %7 = vector.multi_reduction <add>, %6, %cst_6 [0] : vector<256x128xf32> to vector<128xf32>
    %8 = vector.shape_cast %7 : vector<128xf32> to vector<1x128xf32>
    %cst_7 = arith.constant 3.906250e-03 : f32
    %9 = vector.broadcast %cst_7 : f32 to vector<1x128xf32>
    %10 = arith.mulf %8, %9 : vector<1x128xf32>
    %11 = arith.mulf %6, %6 : vector<256x128xf32>
    %cst_8 = arith.constant dense<0.000000e+00> : vector<128xf32>
    %12 = vector.multi_reduction <add>, %11, %cst_8 [0] : vector<256x128xf32> to vector<128xf32>
    %13 = vector.shape_cast %12 : vector<128xf32> to vector<1x128xf32>
    %cst_9 = arith.constant 3.906250e-03 : f32
    %14 = vector.broadcast %cst_9 : f32 to vector<1x128xf32>
    %15 = arith.mulf %13, %14 : vector<1x128xf32>
    %16 = arith.mulf %10, %10 : vector<1x128xf32>
    %17 = arith.subf %15, %16 : vector<1x128xf32>
    %18 = vector.broadcast %10 : vector<1x128xf32> to vector<256x128xf32>
    %19 = arith.subf %6, %18 : vector<256x128xf32>
    %cst_10 = arith.constant 9.99999974E-6 : f32
    %20 = vector.broadcast %cst_10 : f32 to vector<1x128xf32>
    %21 = arith.addf %17, %20 : vector<1x128xf32>
    %22 = math.rsqrt %21 : vector<1x128xf32>
    %23 = vector.broadcast %22 : vector<1x128xf32> to vector<256x128xf32>
    %24 = arith.mulf %19, %23 : vector<256x128xf32>
    %cst_11 = arith.constant 0.000000e+00 : f32
    %25 = vector.broadcast %cst_11 : f32 to vector<256x128xf32>
    %26 = arith.cmpf oge, %24, %25 : vector<256x128xf32>
    %cst_12 = arith.constant 0.00999999977 : f32
    %27 = vector.broadcast %cst_12 : f32 to vector<256x128xf32>
    %28 = arith.mulf %27, %24 : vector<256x128xf32>
    %29 = arith.select %26, %24, %28 : vector<256x128xi1>, vector<256x128xf32>
    %30 = tpu.iota {dimensions = array<i32: 0>} : vector<256x1xi32>
    %31 = arith.sitofp %30 : vector<256x1xi32> to vector<256x1xf32>
    %cst_13 = arith.constant 6.250000e-02 : f32
    %32 = vector.broadcast %cst_13 : f32 to vector<256x1xf32>
    %33 = arith.mulf %31, %32 : vector<256x1xf32>
    %34 = arith.fptosi %33 : vector<256x1xf32> to vector<256x1xi32>
    %c16_i32 = arith.constant 16 : i32
    %35 = vector.broadcast %c16_i32 : i32 to vector<256x1xi32>
    %36 = arith.muli %34, %35 : vector<256x1xi32>
    %37 = arith.subi %30, %36 : vector<256x1xi32>
    %c16_i32_14 = arith.constant 16 : i32
    %38 = vector.broadcast %c16_i32_14 : i32 to vector<256x1xi32>
    %39 = arith.cmpi sge, %37, %38 : vector<256x1xi32>
    %40 = arith.extui %39 : vector<256x1xi1> to vector<256x1xi32>
    %41 = arith.addi %34, %40 : vector<256x1xi32>
    %c0_i32 = arith.constant 0 : i32
    %42 = vector.broadcast %c0_i32 : i32 to vector<256x1xi32>
    %43 = arith.cmpi slt, %37, %42 : vector<256x1xi32>
    %44 = arith.extui %43 : vector<256x1xi1> to vector<256x1xi32>
    %45 = arith.subi %41, %44 : vector<256x1xi32>
    %c16_i32_15 = arith.constant 16 : i32
    %46 = vector.broadcast %c16_i32_15 : i32 to vector<256x1xi32>
    %47 = arith.muli %45, %46 : vector<256x1xi32>
    %48 = arith.subi %30, %47 : vector<256x1xi32>
    %c16_i32_16 = arith.constant 16 : i32
    %49 = vector.broadcast %c16_i32_16 : i32 to vector<256x1xi32>
    %50 = arith.cmpi sge, %30, %49 : vector<256x1xi32>
    %c240_i32 = arith.constant 240 : i32
    %51 = vector.broadcast %c240_i32 : i32 to vector<256x1xi32>
    %52 = arith.cmpi slt, %30, %51 : vector<256x1xi32>
    %c1_i32 = arith.constant 1 : i32
    %53 = vector.broadcast %c1_i32 : i32 to vector<256x1xi32>
    %54 = arith.cmpi sge, %48, %53 : vector<256x1xi32>
    %c15_i32 = arith.constant 15 : i32
    %55 = vector.broadcast %c15_i32 : i32 to vector<256x1xi32>
    %56 = arith.cmpi slt, %48, %55 : vector<256x1xi32>
    %c0_17 = arith.constant 0 : index
    %c0_18 = arith.constant 0 : index
    %57 = vector.load %arg5[%c0_17, %c0_18] : memref<9x128xf32, #tpu.memory_space<vmem>>, vector<9x128xf32>
    %cst_19 = arith.constant 0.000000e+00 : f32
    %58 = vector.broadcast %cst_19 : f32 to vector<256x128xf32>
    %c1_i32_20 = arith.constant 1 : i32
    %59 = tpu.dynamic_rotate %29 by %c1_i32_20 dim 0 : vector<256x128xf32>, i32 -> vector<256x128xf32>
    %60 = vector.extract_strided_slice %57 {offsets = [0, 0], sizes = [1, 128], strides = [1, 1]} : vector<9x128xf32> to vector<1x128xf32>
    %c16_i32_21 = arith.constant 16 : i32
    %61 = tpu.dynamic_rotate %59 by %c16_i32_21 dim 0 : vector<256x128xf32>, i32 -> vector<256x128xf32>
    %62 = arith.andi %50, %54 : vector<256x1xi1>
    %cst_22 = arith.constant 0.000000e+00 : f32
    %63 = vector.shape_cast %62 : vector<256x1xi1> to vector<256x1xi1>
    %64 = vector.broadcast %63 : vector<256x1xi1> to vector<256x128xi1>
    %65 = vector.broadcast %cst_22 : f32 to vector<256x128xf32>
    %66 = arith.select %64, %61, %65 : vector<256x128xi1>, vector<256x128xf32>
    %67 = vector.broadcast %60 : vector<1x128xf32> to vector<256x128xf32>
    %68 = arith.mulf %66, %67 : vector<256x128xf32>
    %69 = arith.addf %58, %68 : vector<256x128xf32>
    %70 = vector.extract_strided_slice %57 {offsets = [3, 0], sizes = [1, 128], strides = [1, 1]} : vector<9x128xf32> to vector<1x128xf32>
    %cst_23 = arith.constant 0.000000e+00 : f32
    %71 = vector.shape_cast %54 : vector<256x1xi1> to vector<256x1xi1>
    %72 = vector.broadcast %71 : vector<256x1xi1> to vector<256x128xi1>
    %73 = vector.broadcast %cst_23 : f32 to vector<256x128xf32>
    %74 = arith.select %72, %59, %73 : vector<256x128xi1>, vector<256x128xf32>
    %75 = vector.broadcast %70 : vector<1x128xf32> to vector<256x128xf32>
    %76 = arith.mulf %74, %75 : vector<256x128xf32>
    %77 = arith.addf %69, %76 : vector<256x128xf32>
    %78 = vector.extract_strided_slice %57 {offsets = [6, 0], sizes = [1, 128], strides = [1, 1]} : vector<9x128xf32> to vector<1x128xf32>
    %c240_i32_24 = arith.constant 240 : i32
    %79 = tpu.dynamic_rotate %59 by %c240_i32_24 dim 0 : vector<256x128xf32>, i32 -> vector<256x128xf32>
    %80 = arith.andi %52, %54 : vector<256x1xi1>
    %cst_25 = arith.constant 0.000000e+00 : f32
    %81 = vector.shape_cast %80 : vector<256x1xi1> to vector<256x1xi1>
    %82 = vector.broadcast %81 : vector<256x1xi1> to vector<256x128xi1>
    %83 = vector.broadcast %cst_25 : f32 to vector<256x128xf32>
    %84 = arith.select %82, %79, %83 : vector<256x128xi1>, vector<256x128xf32>
    %85 = vector.broadcast %78 : vector<1x128xf32> to vector<256x128xf32>
    %86 = arith.mulf %84, %85 : vector<256x128xf32>
    %87 = arith.addf %77, %86 : vector<256x128xf32>
    %88 = vector.extract_strided_slice %57 {offsets = [1, 0], sizes = [1, 128], strides = [1, 1]} : vector<9x128xf32> to vector<1x128xf32>
    %c16_i32_26 = arith.constant 16 : i32
    %89 = tpu.dynamic_rotate %29 by %c16_i32_26 dim 0 : vector<256x128xf32>, i32 -> vector<256x128xf32>
    %cst_27 = arith.constant 0.000000e+00 : f32
    %90 = vector.shape_cast %50 : vector<256x1xi1> to vector<256x1xi1>
    %91 = vector.broadcast %90 : vector<256x1xi1> to vector<256x128xi1>
    %92 = vector.broadcast %cst_27 : f32 to vector<256x128xf32>
    %93 = arith.select %91, %89, %92 : vector<256x128xi1>, vector<256x128xf32>
    %94 = vector.broadcast %88 : vector<1x128xf32> to vector<256x128xf32>
    %95 = arith.mulf %93, %94 : vector<256x128xf32>
    %96 = arith.addf %87, %95 : vector<256x128xf32>
    %97 = vector.extract_strided_slice %57 {offsets = [4, 0], sizes = [1, 128], strides = [1, 1]} : vector<9x128xf32> to vector<1x128xf32>
    %98 = vector.broadcast %97 : vector<1x128xf32> to vector<256x128xf32>
    %99 = arith.mulf %29, %98 : vector<256x128xf32>
    %100 = arith.addf %96, %99 : vector<256x128xf32>
    %101 = vector.extract_strided_slice %57 {offsets = [7, 0], sizes = [1, 128], strides = [1, 1]} : vector<9x128xf32> to vector<1x128xf32>
    %c240_i32_28 = arith.constant 240 : i32
    %102 = tpu.dynamic_rotate %29 by %c240_i32_28 dim 0 : vector<256x128xf32>, i32 -> vector<256x128xf32>
    %cst_29 = arith.constant 0.000000e+00 : f32
    %103 = vector.shape_cast %52 : vector<256x1xi1> to vector<256x1xi1>
    %104 = vector.broadcast %103 : vector<256x1xi1> to vector<256x128xi1>
    %105 = vector.broadcast %cst_29 : f32 to vector<256x128xf32>
    %106 = arith.select %104, %102, %105 : vector<256x128xi1>, vector<256x128xf32>
    %107 = vector.broadcast %101 : vector<1x128xf32> to vector<256x128xf32>
    %108 = arith.mulf %106, %107 : vector<256x128xf32>
    %109 = arith.addf %100, %108 : vector<256x128xf32>
    %c255_i32 = arith.constant 255 : i32
    %110 = tpu.dynamic_rotate %29 by %c255_i32 dim 0 : vector<256x128xf32>, i32 -> vector<256x128xf32>
    %111 = vector.extract_strided_slice %57 {offsets = [2, 0], sizes = [1, 128], strides = [1, 1]} : vector<9x128xf32> to vector<1x128xf32>
    %c16_i32_30 = arith.constant 16 : i32
    %112 = tpu.dynamic_rotate %110 by %c16_i32_30 dim 0 : vector<256x128xf32>, i32 -> vector<256x128xf32>
    %113 = arith.andi %50, %56 : vector<256x1xi1>
    %cst_31 = arith.constant 0.000000e+00 : f32
    %114 = vector.shape_cast %113 : vector<256x1xi1> to vector<256x1xi1>
    %115 = vector.broadcast %114 : vector<256x1xi1> to vector<256x128xi1>
    %116 = vector.broadcast %cst_31 : f32 to vector<256x128xf32>
    %117 = arith.select %115, %112, %116 : vector<256x128xi1>, vector<256x128xf32>
    %118 = vector.broadcast %111 : vector<1x128xf32> to vector<256x128xf32>
    %119 = arith.mulf %117, %118 : vector<256x128xf32>
    %120 = arith.addf %109, %119 : vector<256x128xf32>
    %121 = vector.extract_strided_slice %57 {offsets = [5, 0], sizes = [1, 128], strides = [1, 1]} : vector<9x128xf32> to vector<1x128xf32>
    %cst_32 = arith.constant 0.000000e+00 : f32
    %122 = vector.shape_cast %56 : vector<256x1xi1> to vector<256x1xi1>
    %123 = vector.broadcast %122 : vector<256x1xi1> to vector<256x128xi1>
    %124 = vector.broadcast %cst_32 : f32 to vector<256x128xf32>
    %125 = arith.select %123, %110, %124 : vector<256x128xi1>, vector<256x128xf32>
    %126 = vector.broadcast %121 : vector<1x128xf32> to vector<256x128xf32>
    %127 = arith.mulf %125, %126 : vector<256x128xf32>
    %128 = arith.addf %120, %127 : vector<256x128xf32>
    %129 = vector.extract_strided_slice %57 {offsets = [8, 0], sizes = [1, 128], strides = [1, 1]} : vector<9x128xf32> to vector<1x128xf32>
    %c240_i32_33 = arith.constant 240 : i32
    %130 = tpu.dynamic_rotate %110 by %c240_i32_33 dim 0 : vector<256x128xf32>, i32 -> vector<256x128xf32>
    %131 = arith.andi %52, %56 : vector<256x1xi1>
    %cst_34 = arith.constant 0.000000e+00 : f32
    %132 = vector.shape_cast %131 : vector<256x1xi1> to vector<256x1xi1>
    %133 = vector.broadcast %132 : vector<256x1xi1> to vector<256x128xi1>
    %134 = vector.broadcast %cst_34 : f32 to vector<256x128xf32>
    %135 = arith.select %133, %130, %134 : vector<256x128xi1>, vector<256x128xf32>
    %136 = vector.broadcast %129 : vector<1x128xf32> to vector<256x128xf32>
    %137 = arith.mulf %135, %136 : vector<256x128xf32>
    %138 = arith.addf %128, %137 : vector<256x128xf32>
    %c0_35 = arith.constant 0 : index
    %c0_36 = arith.constant 0 : index
    %139 = vector.load %arg6[%c0_35, %c0_36] : memref<1x128xf32, #tpu.memory_space<vmem>>, vector<1x128xf32>
    %140 = vector.broadcast %139 : vector<1x128xf32> to vector<256x128xf32>
    %141 = arith.addf %138, %140 : vector<256x128xf32>
    %142 = arith.truncf %141 : vector<256x128xf32> to vector<256x128xbf16>
    %c0_37 = arith.constant 0 : index
    %c0_38 = arith.constant 0 : index
    %143 = vector.load %arg7[%c0_37, %c0_38] : memref<128x128xbf16, #tpu.memory_space<vmem>>, vector<128x128xbf16>
    %cst_39 = arith.constant dense<0.000000e+00> : vector<256x128xf32>
    %144 = tpu.matmul %142, %143, %cst_39 {dimension_numbers = #tpu.dot_dimension_numbers<[1], [0], [0], [1], [0, 0, 1, 1], [], []>} : vector<256x128xbf16>, vector<128x128xbf16>, vector<256x128xf32> -> vector<256x128xf32>
    %c0_i32_40 = arith.constant 0 : i32
    %145 = arith.cmpi eq, %arg1, %c0_i32_40 : i32
    %146 = arith.extui %145 : i1 to i32
    %c0_i32_41 = arith.constant 0 : i32
    %147 = arith.cmpi ne, %146, %c0_i32_41 : i32
    scf.if %147 {
      %c0_44 = arith.constant 0 : index
      %c0_45 = arith.constant 0 : index
      %151 = vector.load %arg9[%c0_44, %c0_45] : memref<128x128xbf16, #tpu.memory_space<vmem>>, vector<128x128xbf16>
      %cst_46 = arith.constant dense<0.000000e+00> : vector<256x128xf32>
      %152 = tpu.matmul %1, %151, %cst_46 {dimension_numbers = #tpu.dot_dimension_numbers<[1], [0], [0], [1], [0, 0, 1, 1], [], []>} : vector<256x128xbf16>, vector<128x128xbf16>, vector<256x128xf32> -> vector<256x128xf32>
      %c0_47 = arith.constant 0 : index
      %c0_48 = arith.constant 0 : index
      %153 = vector.load %arg10[%c0_47, %c0_48] : memref<1x128xf32, #tpu.memory_space<vmem>>, vector<1x128xf32>
      %154 = vector.broadcast %153 : vector<1x128xf32> to vector<256x128xf32>
      %155 = arith.addf %152, %154 : vector<256x128xf32>
      %c0_49 = arith.constant 0 : index
      %c0_50 = arith.constant 0 : index
      %156 = vector.load %arg8[%c0_49, %c0_50] : memref<1x128xf32, #tpu.memory_space<vmem>>, vector<1x128xf32>
      %157 = vector.broadcast %156 : vector<1x128xf32> to vector<256x128xf32>
      %158 = arith.addf %155, %157 : vector<256x128xf32>
      %159 = arith.addf %158, %144 : vector<256x128xf32>
      %c0_51 = arith.constant 0 : index
      %c0_52 = arith.constant 0 : index
      %c0_53 = arith.constant 0 : index
      %160 = vector.load %arg11[%c0_51, %c0_52, %c0_53] : memref<1x256x128xf32, #tpu.memory_space<vmem>>, vector<1x256x128xf32>
      %161 = vector.shape_cast %160 : vector<1x256x128xf32> to vector<256x128xf32>
      %162 = vector.shape_cast %159 : vector<256x128xf32> to vector<1x256x128xf32>
      tpu.vector_store %arg11[%c0_51, %c0_52, %c0_53], %162 {strides = array<i32>} : memref<1x256x128xf32, #tpu.memory_space<vmem>>, vector<1x256x128xf32>,
    } else {
    }
    %c0_i32_42 = arith.constant 0 : i32
    %148 = arith.cmpi sgt, %arg1, %c0_i32_42 : i32
    %149 = arith.extui %148 : i1 to i32
    %c0_i32_43 = arith.constant 0 : i32
    %150 = arith.cmpi ne, %149, %c0_i32_43 : i32
    scf.if %150 {
      %c0_44 = arith.constant 0 : index
      %c0_45 = arith.constant 0 : index
      %c0_46 = arith.constant 0 : index
      %151 = vector.load %arg11[%c0_44, %c0_45, %c0_46] : memref<1x256x128xf32, #tpu.memory_space<vmem>>, vector<1x256x128xf32>
      %152 = vector.shape_cast %151 : vector<1x256x128xf32> to vector<256x128xf32>
      %153 = arith.addf %152, %144 : vector<256x128xf32>
      %c0_47 = arith.constant 0 : index
      %c0_48 = arith.constant 0 : index
      %c0_49 = arith.constant 0 : index
      %154 = vector.load %arg11[%c0_47, %c0_48, %c0_49] : memref<1x256x128xf32, #tpu.memory_space<vmem>>, vector<1x256x128xf32>
      %155 = vector.shape_cast %154 : vector<1x256x128xf32> to vector<256x128xf32>
      %156 = vector.shape_cast %153 : vector<256x128xf32> to vector<1x256x128xf32>
      tpu.vector_store %arg11[%c0_47, %c0_48, %c0_49], %156 {strides = array<i32>} : memref<1x256x128xf32, #tpu.memory_space<vmem>>, vector<1x256x128xf32>,
    } else {
    }
    return
  }
  func.func @transform_0(%arg0: i32, %arg1: i32) -> (i32, i32, i32) {
    %c0_i32 = arith.constant 0 : i32
    %c0_i32_0 = arith.constant 0 : i32
    %c0_i32_1 = arith.constant 0 : i32
    return %arg0, %c0_i32, %c0_i32_0 : i32, i32, i32
  }
  func.func @transform_1(%arg0: i32, %arg1: i32) -> (i32, i32) {
    %c0_i32 = arith.constant 0 : i32
    %c0_i32_0 = arith.constant 0 : i32
    return %c0_i32, %arg1 : i32, i32
  }
  func.func @transform_2(%arg0: i32, %arg1: i32) -> (i32, i32) {
    %c0_i32 = arith.constant 0 : i32
    %c0_i32_0 = arith.constant 0 : i32
    return %c0_i32, %arg1 : i32, i32
  }
  func.func @transform_3(%arg0: i32, %arg1: i32) -> (i32, i32) {
    %c0_i32 = arith.constant 0 : i32
    %c0_i32_0 = arith.constant 0 : i32
    return %c0_i32, %arg1 : i32, i32
  }
  func.func @transform_4(%arg0: i32, %arg1: i32) -> (i32, i32) {
    %c0_i32 = arith.constant 0 : i32
    %c0_i32_0 = arith.constant 0 : i32
    return %c0_i32, %arg1 : i32, i32
  }
  func.func @transform_5(%arg0: i32, %arg1: i32) -> (i32, i32) {
    %c0_i32 = arith.constant 0 : i32
    %c0_i32_0 = arith.constant 0 : i32
    return %arg1, %c0_i32 : i32, i32
  }
  func.func @transform_6(%arg0: i32, %arg1: i32) -> (i32, i32) {
    %c0_i32 = arith.constant 0 : i32
    %c0_i32_0 = arith.constant 0 : i32
    %c0_i32_1 = arith.constant 0 : i32
    return %c0_i32, %c0_i32_0 : i32, i32
  }
  func.func @transform_7(%arg0: i32, %arg1: i32) -> (i32, i32) {
    %c0_i32 = arith.constant 0 : i32
    %c0_i32_0 = arith.constant 0 : i32
    %c0_i32_1 = arith.constant 0 : i32
    return %c0_i32, %c0_i32_0 : i32, i32
  }
  func.func @transform_8(%arg0: i32, %arg1: i32) -> (i32, i32) {
    %c0_i32 = arith.constant 0 : i32
    %c0_i32_0 = arith.constant 0 : i32
    %c0_i32_1 = arith.constant 0 : i32
    return %c0_i32, %c0_i32_0 : i32, i32
  }
  func.func @transform_9(%arg0: i32, %arg1: i32) -> (i32, i32, i32) {
    %c0_i32 = arith.constant 0 : i32
    %c0_i32_0 = arith.constant 0 : i32
    %c0_i32_1 = arith.constant 0 : i32
    return %arg0, %c0_i32, %c0_i32_0 : i32, i32, i32
  }
}

</mosaic_0001>

<llo_original>
// kernel: tpu_custom_call.1
$region0: #{tpu_custom_call.1}
  #allocation0 [shape = 'u32[]', space=smem, size = 0x4, offset = 0x4, fixed_abs, tag = 'smem constant byte address 0x4 - core index']
  #allocation1 [shape = 'u32[72,128]{1,0:T(1,128)}', space=vmem, size = 0x9000, scoped, tag = 'internal scratch']
  %s0 = inlined_call_operand.hbm [shape: bf16[2,256,128], index: 0, kind: input, shape index: {}]
  %s1 = inlined_call_operand.hbm [shape: bf16[128,128], index: 1, kind: input, shape index: {}]
  %s2 = inlined_call_operand.vmem [shape: f32[1,128], index: 2, kind: input, shape index: {}]
  %s3 = inlined_call_operand.hbm [shape: f32[9,128], index: 3, kind: input, shape index: {}]
  %s4 = inlined_call_operand.vmem [shape: f32[1,128], index: 4, kind: input, shape index: {}]
  %s5 = inlined_call_operand.hbm [shape: bf16[128,128], index: 5, kind: input, shape index: {}]
  %s6 = inlined_call_operand.vmem [shape: f32[1,128], index: 6, kind: input, shape index: {}]
  %s7 = inlined_call_operand.hbm [shape: bf16[128,128], index: 7, kind: input, shape index: {}]
  %s8 = inlined_call_operand.vmem [shape: f32[1,128], index: 8, kind: input, shape index: {}]
  %s9 = inlined_call_operand.hbm [shape: f32[2,256,128], index: 9, kind: output, shape index: {}]
  %s10 = sld [smem:[#allocation0]]
  $region97: #{tpu_custom_call.1} parent=0
    _
  %s12 = ssub.s32 1, %s10
  %s13 = scalar_select 0, %s12, %s10
  $region1: #{tpu_custom_call.1} parent=0
    #allocation2 [shape = 'u8[131072]{0}', space=vmem, size = 0x20000, scoped, tag = 'input window, operand 0']
    #allocation3 [shape = 's32[2]{0}', space=sflag, size = 0x8, scoped, tag = 'scoped memory for tpu_custom_call.1']
    #allocation4 [shape = 's32[2]{0}', space=sflag, size = 0x8, scoped, tag = 'scoped memory for tpu_custom_call.1']
    #allocation5 [shape = 'u8[32768]{0}', space=vmem, size = 0x8000, scoped, tag = 'input window, operand 1, single buffered']
    #allocation6 [shape = 's32[1]{0}', space=sflag, size = 0x4, scoped, tag = 'scoped memory for tpu_custom_call.1']
    #allocation7 [shape = 'u8[8192]{0}', space=vmem, size = 0x2000, scoped, tag = 'input window, operand 3, single buffered']
    #allocation8 [shape = 'u8[32768]{0}', space=vmem, size = 0x8000, scoped, tag = 'input window, operand 5, single buffered']
    #allocation9 [shape = 's32[1]{0}', space=sflag, size = 0x4, scoped, tag = 'scoped memory for tpu_custom_call.1']
    #allocation10 [shape = 'u8[32768]{0}', space=vmem, size = 0x8000, scoped, tag = 'input window, operand 7, single buffered']
    #allocation11 [shape = 'u8[262144]{0}', space=vmem, size = 0x40000, scoped, tag = 'output window, operand 0']
    %14 = vsyncpa [#allocation3], 0
    %s15 = scalar_lea.sflag [#allocation3], 1
    %16 = vsyncpa %s15, 0
    %17 = vsyncpa [#allocation6], 0
    %18 = vsyncpa [#allocation9], 0
    %19 = vsyncpa [#allocation4], 0
    %s20 = scalar_lea.sflag [#allocation4], 1
    %21 = vsyncpa %s20, 0
    loop: start=0, step=1, limit=4
    $region2: #{tpu_custom_call.1} parent=1 // loop_pre_header
      _
    $region3: #{tpu_custom_call.1} parent=1 // loop_header
      %s23 = sphi 0, %s27
      %p24 = scmp.ge.s32.totalorder %s23, 4
      %s30 = sphi 0, %s42
      %s31 = sphi 0, %s38
      %s32 = sphi 0, %s30
      %s33 = sphi 0, %s31
      %s34 = sphi 0, %s32
      %s35 = sphi 0, %s33
      %s45 = sphi 0, %s47
      %s48 = sphi 0, %s45
      %s49 = sphi 0, %s48
      %s65 = sphi 0, %s49
      %s71 = sphi 0, %s73
      %s74 = sphi 0, %s71
      %s75 = sphi 0, %s74
      %s91 = sphi 0, %s75
      %s97 = sphi 0, %s99
      %s100 = sphi 0, %s97
      %s101 = sphi 0, %s100
      %s117 = sphi 0, %s101
      %s123 = sphi 0, %s125
      %s126 = sphi 0, %s123
      %s127 = sphi 0, %s126
      %s143 = sphi 0, %s127
      %s149 = sphi 0, %s151
      %s152 = sphi 0, %s149
      %s153 = sphi 0, %s152
      %s169 = sphi 0, %s153
      %s175 = sphi 0, %s177
      %s178 = sphi 0, %s175
      %s179 = sphi 0, %s178
      %s195 = sphi 0, %s179
      %s199 = sphi 0, %s199
      %s201 = sphi 0, %s199
      %s202 = sphi 0, %s201
      %s216 = sphi 0, %s202
      %s220 = sphi 0, %s220
      %s222 = sphi 0, %s220
      %s223 = sphi 0, %s222
      %s237 = sphi 0, %s223
      %s241 = sphi 0, %s241
      %s243 = sphi 0, %s241
      %s244 = sphi 0, %s243
      %s258 = sphi 0, %s244
      %s264 = sphi 0, %s266
      %s267 = sphi 0, %s264
      %s268 = sphi 0, %s267
      %s284 = sphi 0, %s268
    $region4: #{tpu_custom_call.1} parent=1 // loop_header_branch
      %26 = sbr.rel (%p24) target = $region8
    $region5: #{tpu_custom_call.1} parent=1 // loop_body
      %s28 = ssub.s32 %s23, 1
      %s29 = ssub.s32 %s23, 2
      %s36 = sadd.s32 1, %s31
      %p37 = scmp.ge.s32.totalorder %s36, 1
      %s38 = scalar_select %p37, 0, %s36
      %s39 = sadd.s32 1, %s30
      %s40 = scalar_select %p37, %s39, %s30
      %p41 = scmp.ge.s32.totalorder %s40, 2
      %s42 = scalar_select %p41, 0, %s40
      %s43 = ssub.s32 %s30, %s42
      %p44 = scmp.eq.s32.totalorder %s43, 0
      %s46 = sadd.s32 %s45, 1
      %s47 = scalar_select %p44, %s45, %s46
      %p50 = pneg %p44
      %p51 = scmp.eq.s32.totalorder %s23, 1
      %p52 = por %p50, %p51
      %p53 = scmp.ne.s32.totalorder %s45, %s48
      %p54 = scmp.eq.s32.totalorder %s23, 0
      %p55 = por %p53, %p54
      %p56 = scmp.ne.s32.totalorder %s45, %s48
      %p57 = scmp.eq.s32.totalorder %s28, 1
      %p58 = por %p56, %p57
      %p59 = scmp.ne.s32.totalorder %s48, %s49
      %p60 = scmp.eq.s32.totalorder %s28, 0
      %p61 = por %p59, %p60
      %p62 = scmp.ne.s32.totalorder %s48, %s49
      %p63 = scmp.eq.s32.totalorder %s29, 1
      %p64 = por %p62, %p63
      %p66 = scmp.ne.s32.totalorder %s49, %s65
      %p67 = scmp.eq.s32.totalorder %s29, 0
      %p68 = por %p66, %p67
      %s69 = ssub.s32 %s31, %s38
      %p70 = scmp.eq.s32.totalorder %s69, 0
      %s72 = sadd.s32 %s71, 1
      %s73 = scalar_select %p70, %s71, %s72
      %p76 = pneg %p70
      %p77 = scmp.eq.s32.totalorder %s23, 1
      %p78 = por %p76, %p77
      %p79 = scmp.ne.s32.totalorder %s71, %s74
      %p80 = scmp.eq.s32.totalorder %s23, 0
      %p81 = por %p79, %p80
      %p82 = scmp.ne.s32.totalorder %s71, %s74
      %p83 = scmp.eq.s32.totalorder %s28, 1
      %p84 = por %p82, %p83
      %p85 = scmp.ne.s32.totalorder %s74, %s75
      %p86 = scmp.eq.s32.totalorder %s28, 0
      %p87 = por %p85, %p86
      %p88 = scmp.ne.s32.totalorder %s74, %s75
      %p89 = scmp.eq.s32.totalorder %s29, 1
      %p90 = por %p88, %p89
      %p92 = scmp.ne.s32.totalorder %s75, %s91
      %p93 = scmp.eq.s32.totalorder %s29, 0
      %p94 = por %p92, %p93
      %s95 = ssub.s32 %s31, %s38
      %p96 = scmp.eq.s32.totalorder %s95, 0
      %s98 = sadd.s32 %s97, 1
      %s99 = scalar_select %p96, %s97, %s98
      %p102 = pneg %p96
      %p103 = scmp.eq.s32.totalorder %s23, 1
      %p104 = por %p102, %p103
      %p105 = scmp.ne.s32.totalorder %s97, %s100
      %p106 = scmp.eq.s32.totalorder %s23, 0
      %p107 = por %p105, %p106
      %p108 = scmp.ne.s32.totalorder %s97, %s100
      %p109 = scmp.eq.s32.totalorder %s28, 1
      %p110 = por %p108, %p109
      %p111 = scmp.ne.s32.totalorder %s100, %s101
      %p112 = scmp.eq.s32.totalorder %s28, 0
      %p113 = por %p111, %p112
      %p114 = scmp.ne.s32.totalorder %s100, %s101
      %p115 = scmp.eq.s32.totalorder %s29, 1
      %p116 = por %p114, %p115
      %p118 = scmp.ne.s32.totalorder %s101, %s117
      %p119 = scmp.eq.s32.totalorder %s29, 0
      %p120 = por %p118, %p119
      %s121 = ssub.s32 %s31, %s38
      %p122 = scmp.eq.s32.totalorder %s121, 0
      %s124 = sadd.s32 %s123, 1
      %s125 = scalar_select %p122, %s123, %s124
      %p128 = pneg %p122
      %p129 = scmp.eq.s32.totalorder %s23, 1
      %p130 = por %p128, %p129
      %p131 = scmp.ne.s32.totalorder %s123, %s126
      %p132 = scmp.eq.s32.totalorder %s23, 0
      %p133 = por %p131, %p132
      %p134 = scmp.ne.s32.totalorder %s123, %s126
      %p135 = scmp.eq.s32.totalorder %s28, 1
      %p136 = por %p134, %p135
      %p137 = scmp.ne.s32.totalorder %s126, %s127
      %p138 = scmp.eq.s32.totalorder %s28, 0
      %p139 = por %p137, %p138
      %p140 = scmp.ne.s32.totalorder %s126, %s127
      %p141 = scmp.eq.s32.totalorder %s29, 1
      %p142 = por %p140, %p141
      %p144 = scmp.ne.s32.totalorder %s127, %s143
      %p145 = scmp.eq.s32.totalorder %s29, 0
      %p146 = por %p144, %p145
      %s147 = ssub.s32 %s31, %s38
      %p148 = scmp.eq.s32.totalorder %s147, 0
      %s150 = sadd.s32 %s149, 1
      %s151 = scalar_select %p148, %s149, %s150
      %p154 = pneg %p148
      %p155 = scmp.eq.s32.totalorder %s23, 1
      %p156 = por %p154, %p155
      %p157 = scmp.ne.s32.totalorder %s149, %s152
      %p158 = scmp.eq.s32.totalorder %s23, 0
      %p159 = por %p157, %p158
      %p160 = scmp.ne.s32.totalorder %s149, %s152
      %p161 = scmp.eq.s32.totalorder %s28, 1
      %p162 = por %p160, %p161
      %p163 = scmp.ne.s32.totalorder %s152, %s153
      %p164 = scmp.eq.s32.totalorder %s28, 0
      %p165 = por %p163, %p164
      %p166 = scmp.ne.s32.totalorder %s152, %s153
      %p167 = scmp.eq.s32.totalorder %s29, 1
      %p168 = por %p166, %p167
      %p170 = scmp.ne.s32.totalorder %s153, %s169
      %p171 = scmp.eq.s32.totalorder %s29, 0
      %p172 = por %p170, %p171
      %s173 = ssub.s32 %s31, %s38
      %p174 = scmp.eq.s32.totalorder %s173, 0
      %s176 = sadd.s32 %s175, 1
      %s177 = scalar_select %p174, %s175, %s176
      %p180 = pneg %p174
      %p181 = scmp.eq.s32.totalorder %s23, 1
      %p182 = por %p180, %p181
      %p183 = scmp.ne.s32.totalorder %s175, %s178
      %p184 = scmp.eq.s32.totalorder %s23, 0
      %p185 = por %p183, %p184
      %p186 = scmp.ne.s32.totalorder %s175, %s178
      %p187 = scmp.eq.s32.totalorder %s28, 1
      %p188 = por %p186, %p187
      %p189 = scmp.ne.s32.totalorder %s178, %s179
      %p190 = scmp.eq.s32.totalorder %s28, 0
      %p191 = por %p189, %p190
      %p192 = scmp.ne.s32.totalorder %s178, %s179
      %p193 = scmp.eq.s32.totalorder %s29, 1
      %p194 = por %p192, %p193
      %p196 = scmp.ne.s32.totalorder %s179, %s195
      %p197 = scmp.eq.s32.totalorder %s29, 0
      %p198 = por %p196, %p197
      %s200 = sadd.s32 %s199, 1
      %p203 = scmp.eq.s32.totalorder %s23, 1
      %p204 = scmp.ne.s32.totalorder %s199, %s201
      %p205 = scmp.eq.s32.totalorder %s23, 0
      %p206 = por %p204, %p205
      %p207 = scmp.ne.s32.totalorder %s199, %s201
      %p208 = scmp.eq.s32.totalorder %s28, 1
      %p209 = por %p207, %p208
      %p210 = scmp.ne.s32.totalorder %s201, %s202
      %p211 = scmp.eq.s32.totalorder %s28, 0
      %p212 = por %p210, %p211
      %p213 = scmp.ne.s32.totalorder %s201, %s202
      %p214 = scmp.eq.s32.totalorder %s29, 1
      %p215 = por %p213, %p214
      %p217 = scmp.ne.s32.totalorder %s202, %s216
      %p218 = scmp.eq.s32.totalorder %s29, 0
      %p219 = por %p217, %p218
      %s221 = sadd.s32 %s220, 1
      %p224 = scmp.eq.s32.totalorder %s23, 1
      %p225 = scmp.ne.s32.totalorder %s220, %s222
      %p226 = scmp.eq.s32.totalorder %s23, 0
      %p227 = por %p225, %p226
      %p228 = scmp.ne.s32.totalorder %s220, %s222
      %p229 = scmp.eq.s32.totalorder %s28, 1
      %p230 = por %p228, %p229
      %p231 = scmp.ne.s32.totalorder %s222, %s223
      %p232 = scmp.eq.s32.totalorder %s28, 0
      %p233 = por %p231, %p232
      %p234 = scmp.ne.s32.totalorder %s222, %s223
      %p235 = scmp.eq.s32.totalorder %s29, 1
      %p236 = por %p234, %p235
      %p238 = scmp.ne.s32.totalorder %s223, %s237
      %p239 = scmp.eq.s32.totalorder %s29, 0
      %p240 = por %p238, %p239
      %s242 = sadd.s32 %s241, 1
      %p245 = scmp.eq.s32.totalorder %s23, 1
      %p246 = scmp.ne.s32.totalorder %s241, %s243
      %p247 = scmp.eq.s32.totalorder %s23, 0
      %p248 = por %p246, %p247
      %p249 = scmp.ne.s32.totalorder %s241, %s243
      %p250 = scmp.eq.s32.totalorder %s28, 1
      %p251 = por %p249, %p250
      %p252 = scmp.ne.s32.totalorder %s243, %s244
      %p253 = scmp.eq.s32.totalorder %s28, 0
      %p254 = por %p252, %p253
      %p255 = scmp.ne.s32.totalorder %s243, %s244
      %p256 = scmp.eq.s32.totalorder %s29, 1
      %p257 = por %p255, %p256
      %p259 = scmp.ne.s32.totalorder %s244, %s258
      %p260 = scmp.eq.s32.totalorder %s29, 0
      %p261 = por %p259, %p260
      %s262 = ssub.s32 %s30, %s42
      %p263 = scmp.eq.s32.totalorder %s262, 0
      %s265 = sadd.s32 %s264, 1
      %s266 = scalar_select %p263, %s264, %s265
      %p269 = pneg %p263
      %p270 = scmp.eq.s32.totalorder %s23, 1
      %p271 = por %p269, %p270
      %p272 = scmp.ne.s32.totalorder %s264, %s267
      %p273 = scmp.eq.s32.totalorder %s23, 0
      %p274 = por %p272, %p273
      %p275 = scmp.ne.s32.totalorder %s264, %s267
      %p276 = scmp.eq.s32.totalorder %s28, 1
      %p277 = por %p275, %p276
      %p278 = scmp.ne.s32.totalorder %s267, %s268
      %p279 = scmp.eq.s32.totalorder %s28, 0
      %p280 = por %p278, %p279
      %p281 = scmp.ne.s32.totalorder %s267, %s268
      %p282 = scmp.eq.s32.totalorder %s29, 1
      %p283 = por %p281, %p282
      %p285 = scmp.ne.s32.totalorder %s268, %s284
      %p286 = scmp.eq.s32.totalorder %s29, 0
      %p287 = por %p285, %p286
      %p288 = scmp.le.s32.totalorder 1, %s23
      %p289 = scmp.lt.s32.totalorder %s23, 3
      %p290 = pnand %p288, %p289
      %p291 = pneg %p290
      // Predicated region
      $region9: #{tpu_custom_call.1} parent=5 // pred_check
        _
      $region10: #{tpu_custom_call.1} parent=5 // pred_check_branch
        %293 = sbr.rel (%p290) target = $region12
      $region11: #{tpu_custom_call.1} parent=5 // pred_region
        %s294 = ssub.s32 %s23, 1
        // Predicated region
        $region13: #{tpu_custom_call.1} parent=11 // pred_check
          %p295 = pneg %p87
        $region14: #{tpu_custom_call.1} parent=11 // pred_check_branch
          %297 = sbr.rel (%p295) target = $region16
        $region15: #{tpu_custom_call.1} parent=11 // pred_region
          %299 = vsyncadd [#allocation6], 0
          %s300 = smul.addr %s33, 4
          %s301 = scalar_lea.hbm %s1, %s300
          %s302 = sshll.u32 %s301, 4
          %s303 = int_to_ptr.hbm [resolvable:$true] %s302
          %s304 = sshll.u32 [#allocation5], 4
          %s305 = int_to_ptr.vmem [resolvable:$true] %s304
          %310 = dma.hbm_to_vmem [thread:$0]  %s303, 1024, %s305, [#allocation6], 64, 64, 4
        $region16: #{tpu_custom_call.1} parent=11 // pred_fallthru
          _
        // Predicated region
        $region17: #{tpu_custom_call.1} parent=11 // pred_check
          %p311 = pneg %p113
        $region18: #{tpu_custom_call.1} parent=11 // pred_check_branch
          %313 = sbr.rel (%p311) target = $region20
        $region19: #{tpu_custom_call.1} parent=11 // pred_region
          %p314 = scmp.lt.s32.totalorder %s33, 0
          %s315 = scalar_select %p314, %s33, 0
          %s316 = scalar_lea.vmem %s2, %s315
        $region20: #{tpu_custom_call.1} parent=11 // pred_fallthru
          _
        // Predicated region
        $region21: #{tpu_custom_call.1} parent=11 // pred_check
          %p317 = pneg %p139
        $region22: #{tpu_custom_call.1} parent=11 // pred_check_branch
          %319 = sbr.rel (%p317) target = $region24
        $region23: #{tpu_custom_call.1} parent=11 // pred_region
          %321 = vsyncadd [#allocation6], 0
          %s322 = smul.addr %s33, 8
          %s323 = scalar_lea.hbm %s3, %s322
          %s324 = sshll.u32 %s323, 4
          %s325 = int_to_ptr.hbm [resolvable:$true] %s324
          %s326 = sshll.u32 [#allocation7], 4
          %s327 = int_to_ptr.vmem [resolvable:$true] %s326
          %332 = dma.hbm_to_vmem [thread:$0]  %s325, 256, %s327, [#allocation6], 128, 128, 8
        $region24: #{tpu_custom_call.1} parent=11 // pred_fallthru
          _
        // Predicated region
        $region25: #{tpu_custom_call.1} parent=11 // pred_check
          %p333 = pneg %p165
        $region26: #{tpu_custom_call.1} parent=11 // pred_check_branch
          %335 = sbr.rel (%p333) target = $region28
        $region27: #{tpu_custom_call.1} parent=11 // pred_region
          %p336 = scmp.lt.s32.totalorder %s33, 0
          %s337 = scalar_select %p336, %s33, 0
          %s338 = scalar_lea.vmem %s4, %s337
        $region28: #{tpu_custom_call.1} parent=11 // pred_fallthru
          _
        // Predicated region
        $region29: #{tpu_custom_call.1} parent=11 // pred_check
          %p339 = pneg %p191
        $region30: #{tpu_custom_call.1} parent=11 // pred_check_branch
          %341 = sbr.rel (%p339) target = $region32
        $region31: #{tpu_custom_call.1} parent=11 // pred_region
          %s342 = smul.u32 16, %s33
          %344 = vsyncadd [#allocation9], 0
          %s345 = smul.addr %s342, 4
          %s346 = scalar_lea.hbm %s5, %s345
          %s347 = sshll.u32 %s346, 4
          %s348 = int_to_ptr.hbm [resolvable:$true] %s347
          %s349 = sshll.u32 [#allocation8], 4
          %s350 = int_to_ptr.vmem [resolvable:$true] %s349
          %355 = dma.hbm_to_vmem [thread:$0]  %s348, 1024, %s350, [#allocation9], 64, 64, 4
        $region32: #{tpu_custom_call.1} parent=11 // pred_fallthru
          _
        // Predicated region
        $region33: #{tpu_custom_call.1} parent=11 // pred_check
          %p356 = pneg %p212
        $region34: #{tpu_custom_call.1} parent=11 // pred_check_branch
          %358 = sbr.rel (%p356) target = $region36
        $region35: #{tpu_custom_call.1} parent=11 // pred_region
          _
        $region36: #{tpu_custom_call.1} parent=11 // pred_fallthru
          _
        // Predicated region
        $region37: #{tpu_custom_call.1} parent=11 // pred_check
          %p359 = pneg %p233
        $region38: #{tpu_custom_call.1} parent=11 // pred_check_branch
          %361 = sbr.rel (%p359) target = $region40
        $region39: #{tpu_custom_call.1} parent=11 // pred_region
          %363 = vsyncadd [#allocation9], 0
          %s364 = sshll.u32 %s7, 4
          %s365 = int_to_ptr.hbm [resolvable:$true] %s364
          %s366 = sshll.u32 [#allocation10], 4
          %s367 = int_to_ptr.vmem [resolvable:$true] %s366
          %372 = dma.hbm_to_vmem [thread:$0]  %s365, 1024, %s367, [#allocation9], 64, 64, 4
        $region40: #{tpu_custom_call.1} parent=11 // pred_fallthru
          _
        // Predicated region
        $region41: #{tpu_custom_call.1} parent=11 // pred_check
          %p373 = pneg %p254
        $region42: #{tpu_custom_call.1} parent=11 // pred_check_branch
          %375 = sbr.rel (%p373) target = $region44
        $region43: #{tpu_custom_call.1} parent=11 // pred_region
          _
        $region44: #{tpu_custom_call.1} parent=11 // pred_fallthru
          _
      $region12: #{tpu_custom_call.1} parent=5 // pred_fallthru
        _
      %p376 = scmp.lt.s32.totalorder %s23, 2
      // Predicated region
      $region45: #{tpu_custom_call.1} parent=5 // pred_check
        %p377 = pneg %p376
      $region46: #{tpu_custom_call.1} parent=5 // pred_check_branch
        %379 = sbr.rel (%p377) target = $region48
      $region47: #{tpu_custom_call.1} parent=5 // pred_region
        // Predicated region
        $region49: #{tpu_custom_call.1} parent=47 // pred_check
          %p380 = pneg %p55
        $region50: #{tpu_custom_call.1} parent=47 // pred_check_branch
          %382 = sbr.rel (%p380) target = $region52
        $region51: #{tpu_custom_call.1} parent=47 // pred_region
          %s383 = sand.u32 %s45, 1
          %s384 = scalar_lea.sflag [#allocation3], %s383
          %s385 = sand.u32 %s45, 1
          %s386 = smul.addr %s385, 128
          %s387 = scalar_lea.vmem [#allocation2], %s386
          %389 = vsyncadd %s384, 0
          %s390 = smul.addr %s30, 32
          %s391 = smul.addr %s390, 4
          %s392 = scalar_lea.hbm %s0, %s391
          %s393 = sshll.u32 %s392, 4
          %s394 = int_to_ptr.hbm [resolvable:$true] %s393
          %s395 = sshll.u32 %s387, 4
          %s396 = int_to_ptr.vmem [resolvable:$true] %s395
          %401 = dma.hbm_to_vmem [thread:$0]  %s394, 2048, %s396, %s384, 64, 64, 4
        $region52: #{tpu_custom_call.1} parent=47 // pred_fallthru
          _
      $region48: #{tpu_custom_call.1} parent=5 // pred_fallthru
        _
      %p402 = scmp.le.s32.totalorder 1, %s23
      %p403 = scmp.lt.s32.totalorder %s23, 3
      %p404 = pnand %p402, %p403
      %p405 = pneg %p404
      // Predicated region
      $region53: #{tpu_custom_call.1} parent=5 // pred_check
        _
      $region54: #{tpu_custom_call.1} parent=5 // pred_check_branch
        %407 = sbr.rel (%p404) target = $region56
      $region55: #{tpu_custom_call.1} parent=5 // pred_region
        %s408 = ssub.s32 %s23, 1
        %s409 = sand.u32 %s48, 1
        %s410 = scalar_lea.sflag [#allocation3], %s409
        %s411 = sand.u32 %s48, 1
        %s412 = smul.addr %s411, 128
        %s413 = scalar_lea.vmem [#allocation2], %s412
        // Predicated region
        $region57: #{tpu_custom_call.1} parent=55 // pred_check
          %p414 = pneg %p61
        $region58: #{tpu_custom_call.1} parent=55 // pred_check_branch
          %416 = sbr.rel (%p414) target = $region60
        $region59: #{tpu_custom_call.1} parent=55 // pred_region
          %418 = dma.done %s410, 2048
        $region60: #{tpu_custom_call.1} parent=55 // pred_fallthru
          _
        // Predicated region
        $region61: #{tpu_custom_call.1} parent=55 // pred_check
          %p419 = pneg %p87
        $region62: #{tpu_custom_call.1} parent=55 // pred_check_branch
          %421 = sbr.rel (%p419) target = $region64
        $region63: #{tpu_custom_call.1} parent=55 // pred_region
          %423 = dma.done [#allocation6], 1024
        $region64: #{tpu_custom_call.1} parent=55 // pred_fallthru
          _
        // Predicated region
        $region65: #{tpu_custom_call.1} parent=55 // pred_check
          %p424 = pneg %p139
        $region66: #{tpu_custom_call.1} parent=55 // pred_check_branch
          %426 = sbr.rel (%p424) target = $region68
        $region67: #{tpu_custom_call.1} parent=55 // pred_region
          %428 = dma.done [#allocation6], 256
        $region68: #{tpu_custom_call.1} parent=55 // pred_fallthru
          _
        // Predicated region
        $region69: #{tpu_custom_call.1} parent=55 // pred_check
          %p429 = pneg %p191
        $region70: #{tpu_custom_call.1} parent=55 // pred_check_branch
          %431 = sbr.rel (%p429) target = $region72
        $region71: #{tpu_custom_call.1} parent=55 // pred_region
          %433 = dma.done [#allocation9], 1024
        $region72: #{tpu_custom_call.1} parent=55 // pred_fallthru
          _
        // Predicated region
        $region73: #{tpu_custom_call.1} parent=55 // pred_check
          %p434 = pneg %p233
        $region74: #{tpu_custom_call.1} parent=55 // pred_check_branch
          %436 = sbr.rel (%p434) target = $region76
        $region75: #{tpu_custom_call.1} parent=55 // pred_region
          %438 = dma.done [#allocation9], 1024
        $region76: #{tpu_custom_call.1} parent=55 // pred_fallthru
          _
        %s439 = sand.u32 %s48, 1
        %s440 = scalar_lea.sflag [#allocation3], %s439
        %s441 = sand.u32 %s48, 1
        %s442 = smul.addr %s441, 128
        %s443 = scalar_lea.vmem [#allocation2], %s442
        %p444 = pneg %p61
        %p445 = pneg %p58
        %p446 = pneg %p87
        %p447 = pneg %p84
        %p448 = scmp.lt.s32.totalorder %s33, 0
        %s449 = scalar_select %p448, %s33, 0
        %s450 = scalar_lea.vmem %s2, %s449
        %p451 = pneg %p113
        %p452 = pneg %p110
        %p453 = pneg %p139
        %p454 = pneg %p136
        %p455 = scmp.lt.s32.totalorder %s33, 0
        %s456 = scalar_select %p455, %s33, 0
        %s457 = scalar_lea.vmem %s4, %s456
        %p458 = pneg %p165
        %p459 = pneg %p162
        %p460 = pneg %p191
        %p461 = pneg %p188
        %p462 = pneg %p212
        %p463 = pneg %p209
        %p464 = pneg %p233
        %p465 = pneg %p230
        %p466 = pneg %p254
        %p467 = pneg %p251
        %p468 = pneg %p280
        %p469 = pneg %p277
        %s470 = sand.u32 %s267, 1
        %s471 = scalar_lea.sflag [#allocation4], %s470
        %s472 = sand.u32 %s267, 1
        %s473 = smul.addr %s472, 256
        %s474 = scalar_lea.vmem [#allocation11], %s473
        %p475 = scmp.lt.s32.totalorder %s33, 0
        %s476 = scalar_select %p475, %s33, 0
        %s477 = scalar_lea.vmem %s2, %s476
        %p478 = scmp.lt.s32.totalorder %s33, 0
        %s479 = scalar_select %p478, %s33, 0
        %s480 = scalar_lea.vmem %s4, %s479
        %s481 = smul.u32 16, %s33
        %v482 = vld [vmem:[%s413] sm:$0xf]
        %v483 = vld [vmem:[%s413 + $0x4] sm:$0xf]
        %v484 = vld [vmem:[%s413 + $0x8] sm:$0xf]
        %v485 = vld [vmem:[%s413 + $0xc] sm:$0xf]
        %v486 = vld [vmem:[%s413 + $0x10] sm:$0xf]
        %v487 = vld [vmem:[%s413 + $0x14] sm:$0xf]
        %v488 = vld [vmem:[%s413 + $0x18] sm:$0xf]
        %v489 = vld [vmem:[%s413 + $0x1c] sm:$0xf]
        %v490 = vld [vmem:[%s413 + $0x20] sm:$0xf]
        %v491 = vld [vmem:[%s413 + $0x24] sm:$0xf]
        %v492 = vld [vmem:[%s413 + $0x28] sm:$0xf]
        %v493 = vld [vmem:[%s413 + $0x2c] sm:$0xf]
        %v494 = vld [vmem:[%s413 + $0x30] sm:$0xf]
        %v495 = vld [vmem:[%s413 + $0x34] sm:$0xf]
        %v496 = vld [vmem:[%s413 + $0x38] sm:$0xf]
        %v497 = vld [vmem:[%s413 + $0x3c] sm:$0xf]
        %v498 = vld [vmem:[%s413 + $0x40] sm:$0xf]
        %v499 = vld [vmem:[%s413 + $0x44] sm:$0xf]
        %v500 = vld [vmem:[%s413 + $0x48] sm:$0xf]
        %v501 = vld [vmem:[%s413 + $0x4c] sm:$0xf]
        %v502 = vld [vmem:[%s413 + $0x50] sm:$0xf]
        %v503 = vld [vmem:[%s413 + $0x54] sm:$0xf]
        %v504 = vld [vmem:[%s413 + $0x58] sm:$0xf]
        %v505 = vld [vmem:[%s413 + $0x5c] sm:$0xf]
        %v506 = vld [vmem:[%s413 + $0x60] sm:$0xf]
        %v507 = vld [vmem:[%s413 + $0x64] sm:$0xf]
        %v508 = vld [vmem:[%s413 + $0x68] sm:$0xf]
        %v509 = vld [vmem:[%s413 + $0x6c] sm:$0xf]
        %v510 = vld [vmem:[%s413 + $0x70] sm:$0xf]
        %v511 = vld [vmem:[%s413 + $0x74] sm:$0xf]
        %v512 = vld [vmem:[%s413 + $0x78] sm:$0xf]
        %v513 = vld [vmem:[%s413 + $0x7c] sm:$0xf]
        %v514 = vld [vmem:[#allocation5] sm:$0xf]
        %v515 = vld [vmem:[#allocation5 + $0x4] sm:$0xf]
        %v516 = vld [vmem:[#allocation5 + $0x8] sm:$0xf]
        %v517 = vld [vmem:[#allocation5 + $0xc] sm:$0xf]
        %v518 = vld [vmem:[#allocation5 + $0x10] sm:$0xf]
        %v519 = vld [vmem:[#allocation5 + $0x14] sm:$0xf]
        %v520 = vld [vmem:[#allocation5 + $0x18] sm:$0xf]
        %v521 = vld [vmem:[#allocation5 + $0x1c] sm:$0xf]
        %v522 = vld [vmem:[#allocation5 + $0x20] sm:$0xf]
        %v523 = vld [vmem:[#allocation5 + $0x24] sm:$0xf]
        %v524 = vld [vmem:[#allocation5 + $0x28] sm:$0xf]
        %v525 = vld [vmem:[#allocation5 + $0x2c] sm:$0xf]
        %v526 = vld [vmem:[#allocation5 + $0x30] sm:$0xf]
        %v527 = vld [vmem:[#allocation5 + $0x34] sm:$0xf]
        %v528 = vld [vmem:[#allocation5 + $0x38] sm:$0xf]
        %v529 = vld [vmem:[#allocation5 + $0x3c] sm:$0xf]
        %v530 = vld [vmem:[%s477] sm:$0x1]
        %v532 = vperm.slane %v530, 0
        %v566 = vunpack.c.l.b16 %v482
        %v567 = vunpack.c.l.b16 %v483
        %v568 = vunpack.c.l.b16 %v484
        %v569 = vunpack.c.l.b16 %v485
        %v570 = vunpack.c.l.b16 %v486
        %v571 = vunpack.c.l.b16 %v487
        %v572 = vunpack.c.l.b16 %v488
        %v573 = vunpack.c.l.b16 %v489
        %v574 = vunpack.c.l.b16 %v490
        %v575 = vunpack.c.l.b16 %v491
        %v576 = vunpack.c.l.b16 %v492
        %v577 = vunpack.c.l.b16 %v493
        %v578 = vunpack.c.l.b16 %v494
        %v579 = vunpack.c.l.b16 %v495
        %v580 = vunpack.c.l.b16 %v496
        %v581 = vunpack.c.l.b16 %v497
        %v582 = vunpack.c.l.b16 %v498
        %v583 = vunpack.c.l.b16 %v499
        %v584 = vunpack.c.l.b16 %v500
        %v585 = vunpack.c.l.b16 %v501
        %v586 = vunpack.c.l.b16 %v502
        %v587 = vunpack.c.l.b16 %v503
        %v588 = vunpack.c.l.b16 %v504
        %v589 = vunpack.c.l.b16 %v505
        %v590 = vunpack.c.l.b16 %v506
        %v591 = vunpack.c.l.b16 %v507
        %v592 = vunpack.c.l.b16 %v508
        %v593 = vunpack.c.l.b16 %v509
        %v594 = vunpack.c.l.b16 %v510
        %v595 = vunpack.c.l.b16 %v511
        %v596 = vunpack.c.l.b16 %v512
        %v597 = vunpack.c.l.b16 %v513
        %v598 = vpack.c.b16 %v567, %v566
        %v599 = vpack.c.b16 %v569, %v568
        %v600 = vpack.c.b16 %v571, %v570
        %v601 = vpack.c.b16 %v573, %v572
        %v602 = vpack.c.b16 %v575, %v574
        %v603 = vpack.c.b16 %v577, %v576
        %v604 = vpack.c.b16 %v579, %v578
        %v605 = vpack.c.b16 %v581, %v580
        %v606 = vpack.c.b16 %v583, %v582
        %v607 = vpack.c.b16 %v585, %v584
        %v608 = vpack.c.b16 %v587, %v586
        %v609 = vpack.c.b16 %v589, %v588
        %v610 = vpack.c.b16 %v591, %v590
        %v611 = vpack.c.b16 %v593, %v592
        %v612 = vpack.c.b16 %v595, %v594
        %v613 = vpack.c.b16 %v597, %v596
        %v646 = vunpack.c.l.b16 %v514
        %v647 = vunpack.c.l.b16 %v515
        %v648 = vunpack.c.l.b16 %v516
        %v649 = vunpack.c.l.b16 %v517
        %v650 = vunpack.c.l.b16 %v518
        %v651 = vunpack.c.l.b16 %v519
        %v652 = vunpack.c.l.b16 %v520
        %v653 = vunpack.c.l.b16 %v521
        %v654 = vunpack.c.l.b16 %v522
        %v655 = vunpack.c.l.b16 %v523
        %v656 = vunpack.c.l.b16 %v524
        %v657 = vunpack.c.l.b16 %v525
        %v658 = vunpack.c.l.b16 %v526
        %v659 = vunpack.c.l.b16 %v527
        %v660 = vunpack.c.l.b16 %v528
        %v661 = vunpack.c.l.b16 %v529
        %v662 = vpack.c.b16 %v647, %v646
        %v663 = vpack.c.b16 %v649, %v648
        %v664 = vpack.c.b16 %v651, %v650
        %v665 = vpack.c.b16 %v653, %v652
        %v666 = vpack.c.b16 %v655, %v654
        %v667 = vpack.c.b16 %v657, %v656
        %v668 = vpack.c.b16 %v659, %v658
        %v669 = vpack.c.b16 %v661, %v660
        %678 = vmatpush.bf16.msra.mxu0 %v669
        %679 = vmatpush.bf16.msra.mxu0 %v668
        %680 = vmatpush.bf16.msra.mxu0 %v667
        %681 = vmatpush.bf16.msra.mxu0 %v666
        %682 = vmatpush.bf16.msra.mxu0 %v665
        %683 = vmatpush.bf16.msra.mxu0 %v664
        %684 = vmatpush.bf16.msra.mxu0 %v663
        %685 = vmatpush.bf16.msra.mxu0 %v662
        %686 = vmatmul.bf16.gmra.mxu0 %v598
        %v687 = vpop.f32.mrf.mxu0
        %v688 = vadd.f32 %v532, %v687
        %v689 = vpop.f32.mrf.mxu0
        %v690 = vadd.f32 %v532, %v689
        %691 = vmatmul.bf16.gmra.mxu0 %v599
        %v692 = vpop.f32.mrf.mxu0
        %v693 = vadd.f32 %v532, %v692
        %v694 = vpop.f32.mrf.mxu0
        %v695 = vadd.f32 %v532, %v694
        %696 = vmatmul.bf16.gmra.mxu0 %v600
        %v697 = vpop.f32.mrf.mxu0
        %v698 = vadd.f32 %v532, %v697
        %v699 = vpop.f32.mrf.mxu0
        %v700 = vadd.f32 %v532, %v699
        %701 = vmatmul.bf16.gmra.mxu0 %v601
        %v702 = vpop.f32.mrf.mxu0
        %v703 = vadd.f32 %v532, %v702
        %v704 = vpop.f32.mrf.mxu0
        %v705 = vadd.f32 %v532, %v704
        %706 = vmatmul.bf16.gmra.mxu0 %v602
        %v707 = vpop.f32.mrf.mxu0
        %v708 = vadd.f32 %v532, %v707
        %v709 = vpop.f32.mrf.mxu0
        %v710 = vadd.f32 %v532, %v709
        %711 = vmatmul.bf16.gmra.mxu0 %v603
        %v712 = vpop.f32.mrf.mxu0
        %v713 = vadd.f32 %v532, %v712
        %v714 = vpop.f32.mrf.mxu0
        %v715 = vadd.f32 %v532, %v714
        %716 = vmatmul.bf16.gmra.mxu0 %v604
        %v717 = vpop.f32.mrf.mxu0
        %v718 = vadd.f32 %v532, %v717
        %v719 = vpop.f32.mrf.mxu0
        %v720 = vadd.f32 %v532, %v719
        %721 = vmatmul.bf16.gmra.mxu0 %v605
        %v722 = vpop.f32.mrf.mxu0
        %v723 = vadd.f32 %v532, %v722
        %v724 = vpop.f32.mrf.mxu0
        %v725 = vadd.f32 %v532, %v724
        %726 = vmatmul.bf16.gmra.mxu0 %v606
        %v727 = vpop.f32.mrf.mxu0
        %v728 = vadd.f32 %v532, %v727
        %v729 = vpop.f32.mrf.mxu0
        %v730 = vadd.f32 %v532, %v729
        %731 = vmatmul.bf16.gmra.mxu0 %v607
        %v732 = vpop.f32.mrf.mxu0
        %v733 = vadd.f32 %v532, %v732
        %v734 = vpop.f32.mrf.mxu0
        %v735 = vadd.f32 %v532, %v734
        %736 = vmatmul.bf16.gmra.mxu0 %v608
        %v737 = vpop.f32.mrf.mxu0
        %v738 = vadd.f32 %v532, %v737
        %v739 = vpop.f32.mrf.mxu0
        %v740 = vadd.f32 %v532, %v739
        %741 = vmatmul.bf16.gmra.mxu0 %v609
        %v742 = vpop.f32.mrf.mxu0
        %v743 = vadd.f32 %v532, %v742
        %v744 = vpop.f32.mrf.mxu0
        %v745 = vadd.f32 %v532, %v744
        %746 = vmatmul.bf16.gmra.mxu0 %v610
        %v747 = vpop.f32.mrf.mxu0
        %v748 = vadd.f32 %v532, %v747
        %v749 = vpop.f32.mrf.mxu0
        %v750 = vadd.f32 %v532, %v749
        %751 = vmatmul.bf16.gmra.mxu0 %v611
        %v752 = vpop.f32.mrf.mxu0
        %v753 = vadd.f32 %v532, %v752
        %v754 = vpop.f32.mrf.mxu0
        %v755 = vadd.f32 %v532, %v754
        %756 = vmatmul.bf16.gmra.mxu0 %v612
        %v757 = vpop.f32.mrf.mxu0
        %v758 = vadd.f32 %v532, %v757
        %v759 = vpop.f32.mrf.mxu0
        %v760 = vadd.f32 %v532, %v759
        %761 = vmatmul.bf16.gmra.mxu0 %v613
        %v762 = vpop.f32.mrf.mxu0
        %v763 = vadd.f32 %v532, %v762
        %v764 = vpop.f32.mrf.mxu0
        %v765 = vadd.f32 %v532, %v764
        %766 = vdwg.mxu0
        %v767 = vadd.f32 %v688, %v690
        %v768 = vadd.f32 %v767, %v693
        %v769 = vadd.f32 %v768, %v695
        %v770 = vadd.f32 %v769, %v698
        %v771 = vadd.f32 %v770, %v700
        %v772 = vadd.f32 %v771, %v703
        %v773 = vadd.f32 %v772, %v705
        %v774 = vadd.f32 %v773, %v708
        %v775 = vadd.f32 %v774, %v710
        %v776 = vadd.f32 %v775, %v713
        %v777 = vadd.f32 %v776, %v715
        %v778 = vadd.f32 %v777, %v718
        %v779 = vadd.f32 %v778, %v720
        %v780 = vadd.f32 %v779, %v723
        %v781 = vadd.f32 %v780, %v725
        %v782 = vadd.f32 %v781, %v728
        %v783 = vadd.f32 %v782, %v730
        %v784 = vadd.f32 %v783, %v733
        %v785 = vadd.f32 %v784, %v735
        %v786 = vadd.f32 %v785, %v738
        %v787 = vadd.f32 %v786, %v740
        %v788 = vadd.f32 %v787, %v743
        %v789 = vadd.f32 %v788, %v745
        %v790 = vadd.f32 %v789, %v748
        %v791 = vadd.f32 %v790, %v750
        %v792 = vadd.f32 %v791, %v753
        %v793 = vadd.f32 %v792, %v755
        %v794 = vadd.f32 %v793, %v758
        %v795 = vadd.f32 %v794, %v760
        %v796 = vadd.f32 %v795, %v763
        %v797 = vadd.f32 %v796, %v765
        %v798 = vrot.slane %v797, 4
        %v799 = vadd.f32 %v797, %v798
        %v800 = vrot.slane %v799, 2
        %v801 = vadd.f32 %v799, %v800
        %v802 = vrot.slane %v801, 1
        %v803 = vadd.f32 %v801, %v802
        %v804 = vmul.f32 %v803, 0.00390625
        %v805 = vmul.f32 %v688, %v688
        %v806 = vmul.f32 %v690, %v690
        %v807 = vmul.f32 %v693, %v693
        %v808 = vmul.f32 %v695, %v695
        %v809 = vmul.f32 %v698, %v698
        %v810 = vmul.f32 %v700, %v700
        %v811 = vmul.f32 %v703, %v703
        %v812 = vmul.f32 %v705, %v705
        %v813 = vmul.f32 %v708, %v708
        %v814 = vmul.f32 %v710, %v710
        %v815 = vmul.f32 %v713, %v713
        %v816 = vmul.f32 %v715, %v715
        %v817 = vmul.f32 %v718, %v718
        %v818 = vmul.f32 %v720, %v720
        %v819 = vmul.f32 %v723, %v723
        %v820 = vmul.f32 %v725, %v725
        %v821 = vmul.f32 %v728, %v728
        %v822 = vmul.f32 %v730, %v730
        %v823 = vmul.f32 %v733, %v733
        %v824 = vmul.f32 %v735, %v735
        %v825 = vmul.f32 %v738, %v738
        %v826 = vmul.f32 %v740, %v740
        %v827 = vmul.f32 %v743, %v743
        %v828 = vmul.f32 %v745, %v745
        %v829 = vmul.f32 %v748, %v748
        %v830 = vmul.f32 %v750, %v750
        %v831 = vmul.f32 %v753, %v753
        %v832 = vmul.f32 %v755, %v755
        %v833 = vmul.f32 %v758, %v758
        %v834 = vmul.f32 %v760, %v760
        %v835 = vmul.f32 %v763, %v763
        %v836 = vmul.f32 %v765, %v765
        %v837 = vadd.f32 %v805, %v806
        %v838 = vadd.f32 %v837, %v807
        %v839 = vadd.f32 %v838, %v808
        %v840 = vadd.f32 %v839, %v809
        %v841 = vadd.f32 %v840, %v810
        %v842 = vadd.f32 %v841, %v811
        %v843 = vadd.f32 %v842, %v812
        %v844 = vadd.f32 %v843, %v813
        %v845 = vadd.f32 %v844, %v814
        %v846 = vadd.f32 %v845, %v815
        %v847 = vadd.f32 %v846, %v816
        %v848 = vadd.f32 %v847, %v817
        %v849 = vadd.f32 %v848, %v818
        %v850 = vadd.f32 %v849, %v819
        %v851 = vadd.f32 %v850, %v820
        %v852 = vadd.f32 %v851, %v821
        %v853 = vadd.f32 %v852, %v822
        %v854 = vadd.f32 %v853, %v823
        %v855 = vadd.f32 %v854, %v824
        %v856 = vadd.f32 %v855, %v825
        %v857 = vadd.f32 %v856, %v826
        %v858 = vadd.f32 %v857, %v827
        %v859 = vadd.f32 %v858, %v828
        %v860 = vadd.f32 %v859, %v829
        %v861 = vadd.f32 %v860, %v830
        %v862 = vadd.f32 %v861, %v831
        %v863 = vadd.f32 %v862, %v832
        %v864 = vadd.f32 %v863, %v833
        %v865 = vadd.f32 %v864, %v834
        %v866 = vadd.f32 %v865, %v835
        %v867 = vadd.f32 %v866, %v836
        %v868 = vrot.slane %v867, 4
        %v869 = vadd.f32 %v867, %v868
        %v870 = vrot.slane %v869, 2
        %v871 = vadd.f32 %v869, %v870
        %v872 = vrot.slane %v871, 1
        %v873 = vadd.f32 %v871, %v872
        %v874 = vmul.f32 %v873, 0.00390625
        %v875 = vmul.f32 %v804, %v804
        %v876 = vsub.f32 %v874, %v875
        %v877 = vsub.f32 %v688, %v804
        %v878 = vsub.f32 %v690, %v804
        %v879 = vsub.f32 %v693, %v804
        %v880 = vsub.f32 %v695, %v804
        %v881 = vsub.f32 %v698, %v804
        %v882 = vsub.f32 %v700, %v804
        %v883 = vsub.f32 %v703, %v804
        %v884 = vsub.f32 %v705, %v804
        %v885 = vsub.f32 %v708, %v804
        %v886 = vsub.f32 %v710, %v804
        %v887 = vsub.f32 %v713, %v804
        %v888 = vsub.f32 %v715, %v804
        %v889 = vsub.f32 %v718, %v804
        %v890 = vsub.f32 %v720, %v804
        %v891 = vsub.f32 %v723, %v804
        %v892 = vsub.f32 %v725, %v804
        %v893 = vsub.f32 %v728, %v804
        %v894 = vsub.f32 %v730, %v804
        %v895 = vsub.f32 %v733, %v804
        %v896 = vsub.f32 %v735, %v804
        %v897 = vsub.f32 %v738, %v804
        %v898 = vsub.f32 %v740, %v804
        %v899 = vsub.f32 %v743, %v804
        %v900 = vsub.f32 %v745, %v804
        %v901 = vsub.f32 %v748, %v804
        %v902 = vsub.f32 %v750, %v804
        %v903 = vsub.f32 %v753, %v804
        %v904 = vsub.f32 %v755, %v804
        %v905 = vsub.f32 %v758, %v804
        %v906 = vsub.f32 %v760, %v804
        %v907 = vsub.f32 %v763, %v804
        %v908 = vsub.f32 %v765, %v804
        %v909 = vadd.f32 %v876, 1e-05
        %v910 = vrsqrt.pop %v909
        %v911 = vmul.f32 %v910, %v909
        %v912 = vmul.f32 %v911, %v910
        %v913 = vmul.f32 0.5, %v912
        %v914 = vsub.f32 1.5, %v913
        %v915 = vmul.f32 %v910, %v914
        %vm916 = vweird.f32 %v909
        %vm917 = vweird.f32 %v910
        %vm918 = vmor %vm916, %vm917
        %v919 = vsel %vm918, %v910, %v915
        %v920 = vmul.f32 %v877, %v919
        %v921 = vmul.f32 %v878, %v919
        %v922 = vmul.f32 %v879, %v919
        %v923 = vmul.f32 %v880, %v919
        %v924 = vmul.f32 %v881, %v919
        %v925 = vmul.f32 %v882, %v919
        %v926 = vmul.f32 %v883, %v919
        %v927 = vmul.f32 %v884, %v919
        %v928 = vmul.f32 %v885, %v919
        %v929 = vmul.f32 %v886, %v919
        %v930 = vmul.f32 %v887, %v919
        %v931 = vmul.f32 %v888, %v919
        %v932 = vmul.f32 %v889, %v919
        %v933 = vmul.f32 %v890, %v919
        %v934 = vmul.f32 %v891, %v919
        %v935 = vmul.f32 %v892, %v919
        %v936 = vmul.f32 %v893, %v919
        %v937 = vmul.f32 %v894, %v919
        %v938 = vmul.f32 %v895, %v919
        %v939 = vmul.f32 %v896, %v919
        %v940 = vmul.f32 %v897, %v919
        %v941 = vmul.f32 %v898, %v919
        %v942 = vmul.f32 %v899, %v919
        %v943 = vmul.f32 %v900, %v919
        %v944 = vmul.f32 %v901, %v919
        %v945 = vmul.f32 %v902, %v919
        %v946 = vmul.f32 %v903, %v919
        %v947 = vmul.f32 %v904, %v919
        %v948 = vmul.f32 %v905, %v919
        %v949 = vmul.f32 %v906, %v919
        %v950 = vmul.f32 %v907, %v919
        %v951 = vmul.f32 %v908, %v919
        %vm952 = vcmp.ge.f32.partialorder %v920, 0.0
        %vm953 = vcmp.ge.f32.partialorder %v921, 0.0
        %vm954 = vcmp.ge.f32.partialorder %v922, 0.0
        %vm955 = vcmp.ge.f32.partialorder %v923, 0.0
        %vm956 = vcmp.ge.f32.partialorder %v924, 0.0
        %vm957 = vcmp.ge.f32.partialorder %v925, 0.0
        %vm958 = vcmp.ge.f32.partialorder %v926, 0.0
        %vm959 = vcmp.ge.f32.partialorder %v927, 0.0
        %vm960 = vcmp.ge.f32.partialorder %v928, 0.0
        %vm961 = vcmp.ge.f32.partialorder %v929, 0.0
        %vm962 = vcmp.ge.f32.partialorder %v930, 0.0
        %vm963 = vcmp.ge.f32.partialorder %v931, 0.0
        %vm964 = vcmp.ge.f32.partialorder %v932, 0.0
        %vm965 = vcmp.ge.f32.partialorder %v933, 0.0
        %vm966 = vcmp.ge.f32.partialorder %v934, 0.0
        %vm967 = vcmp.ge.f32.partialorder %v935, 0.0
        %vm968 = vcmp.ge.f32.partialorder %v936, 0.0
        %vm969 = vcmp.ge.f32.partialorder %v937, 0.0
        %vm970 = vcmp.ge.f32.partialorder %v938, 0.0
        %vm971 = vcmp.ge.f32.partialorder %v939, 0.0
        %vm972 = vcmp.ge.f32.partialorder %v940, 0.0
        %vm973 = vcmp.ge.f32.partialorder %v941, 0.0
        %vm974 = vcmp.ge.f32.partialorder %v942, 0.0
        %vm975 = vcmp.ge.f32.partialorder %v943, 0.0
        %vm976 = vcmp.ge.f32.partialorder %v944, 0.0
        %vm977 = vcmp.ge.f32.partialorder %v945, 0.0
        %vm978 = vcmp.ge.f32.partialorder %v946, 0.0
        %vm979 = vcmp.ge.f32.partialorder %v947, 0.0
        %vm980 = vcmp.ge.f32.partialorder %v948, 0.0
        %vm981 = vcmp.ge.f32.partialorder %v949, 0.0
        %vm982 = vcmp.ge.f32.partialorder %v950, 0.0
        %vm983 = vcmp.ge.f32.partialorder %v951, 0.0
        %v984 = vmul.f32 %v920, 0.01
        %v985 = vmul.f32 %v921, 0.01
        %v986 = vmul.f32 %v922, 0.01
        %v987 = vmul.f32 %v923, 0.01
        %v988 = vmul.f32 %v924, 0.01
        %v989 = vmul.f32 %v925, 0.01
        %v990 = vmul.f32 %v926, 0.01
        %v991 = vmul.f32 %v927, 0.01
        %v992 = vmul.f32 %v928, 0.01
        %v993 = vmul.f32 %v929, 0.01
        %v994 = vmul.f32 %v930, 0.01
        %v995 = vmul.f32 %v931, 0.01
        %v996 = vmul.f32 %v932, 0.01
        %v997 = vmul.f32 %v933, 0.01
        %v998 = vmul.f32 %v934, 0.01
        %v999 = vmul.f32 %v935, 0.01
        %v1000 = vmul.f32 %v936, 0.01
        %v1001 = vmul.f32 %v937, 0.01
        %v1002 = vmul.f32 %v938, 0.01
        %v1003 = vmul.f32 %v939, 0.01
        %v1004 = vmul.f32 %v940, 0.01
        %v1005 = vmul.f32 %v941, 0.01
        %v1006 = vmul.f32 %v942, 0.01
        %v1007 = vmul.f32 %v943, 0.01
        %v1008 = vmul.f32 %v944, 0.01
        %v1009 = vmul.f32 %v945, 0.01
        %v1010 = vmul.f32 %v946, 0.01
        %v1011 = vmul.f32 %v947, 0.01
        %v1012 = vmul.f32 %v948, 0.01
        %v1013 = vmul.f32 %v949, 0.01
        %v1014 = vmul.f32 %v950, 0.01
        %v1015 = vmul.f32 %v951, 0.01
        %v1016 = vsel %vm952, %v920, %v984
        %v1017 = vsel %vm953, %v921, %v985
        %v1018 = vsel %vm954, %v922, %v986
        %v1019 = vsel %vm955, %v923, %v987
        %v1020 = vsel %vm956, %v924, %v988
        %v1021 = vsel %vm957, %v925, %v989
        %v1022 = vsel %vm958, %v926, %v990
        %v1023 = vsel %vm959, %v927, %v991
        %v1024 = vsel %vm960, %v928, %v992
        %v1025 = vsel %vm961, %v929, %v993
        %v1026 = vsel %vm962, %v930, %v994
        %v1027 = vsel %vm963, %v931, %v995
        %v1028 = vsel %vm964, %v932, %v996
        %v1029 = vsel %vm965, %v933, %v997
        %v1030 = vsel %vm966, %v934, %v998
        %v1031 = vsel %vm967, %v935, %v999
        %v1032 = vsel %vm968, %v936, %v1000
        %v1033 = vsel %vm969, %v937, %v1001
        %v1034 = vsel %vm970, %v938, %v1002
        %v1035 = vsel %vm971, %v939, %v1003
        %v1036 = vsel %vm972, %v940, %v1004
        %v1037 = vsel %vm973, %v941, %v1005
        %v1038 = vsel %vm974, %v942, %v1006
        %v1039 = vsel %vm975, %v943, %v1007
        %v1040 = vsel %vm976, %v944, %v1008
        %v1041 = vsel %vm977, %v945, %v1009
        %v1042 = vsel %vm978, %v946, %v1010
        %v1043 = vsel %vm979, %v947, %v1011
        %v1044 = vsel %vm980, %v948, %v1012
        %v1045 = vsel %vm981, %v949, %v1013
        %v1046 = vsel %vm982, %v950, %v1014
        %v1047 = vsel %vm983, %v951, %v1015
        %v1048 = vlaneseq
        %v1049 = vshrl.u32 %v1048, 7
        %v1050 = vadd.s32 %v1049, 8
        %v1051 = vadd.s32 %v1049, 16
        %v1052 = vadd.s32 %v1049, 24
        %v1053 = vadd.s32 %v1049, 32
        %v1054 = vadd.s32 %v1049, 40
        %v1055 = vadd.s32 %v1049, 48
        %v1056 = vadd.s32 %v1049, 56
        %v1057 = vadd.s32 %v1049, 64
        %v1058 = vadd.s32 %v1049, 72
        %v1059 = vadd.s32 %v1049, 80
        %v1060 = vadd.s32 %v1049, 88
        %v1061 = vadd.s32 %v1049, 96
        %v1062 = vadd.s32 %v1049, 104
        %v1063 = vadd.s32 %v1049, 112
        %v1064 = vadd.s32 %v1049, 120
        %v1065 = vadd.s32 %v1049, 128
        %v1066 = vadd.s32 %v1049, 136
        %v1067 = vadd.s32 %v1049, 144
        %v1068 = vadd.s32 %v1049, 152
        %v1069 = vadd.s32 %v1049, 160
        %v1070 = vadd.s32 %v1049, 168
        %v1071 = vadd.s32 %v1049, 176
        %v1072 = vadd.s32 %v1049, 184
        %v1073 = vadd.s32 %v1049, 192
        %v1074 = vadd.s32 %v1049, 200
        %v1075 = vadd.s32 %v1049, 208
        %v1076 = vadd.s32 %v1049, 216
        %v1077 = vadd.s32 %v1049, 224
        %v1078 = vadd.s32 %v1049, 232
        %v1079 = vadd.s32 %v1049, 240
        %v1080 = vadd.s32 %v1049, 248
        %v1081 = vcvt.s32.f32 %v1049
        %v1082 = vcvt.s32.f32 %v1050
        %v1083 = vcvt.s32.f32 %v1051
        %v1084 = vcvt.s32.f32 %v1052
        %v1085 = vcvt.s32.f32 %v1053
        %v1086 = vcvt.s32.f32 %v1054
        %v1087 = vcvt.s32.f32 %v1055
        %v1088 = vcvt.s32.f32 %v1056
        %v1089 = vcvt.s32.f32 %v1057
        %v1090 = vcvt.s32.f32 %v1058
        %v1091 = vcvt.s32.f32 %v1059
        %v1092 = vcvt.s32.f32 %v1060
        %v1093 = vcvt.s32.f32 %v1061
        %v1094 = vcvt.s32.f32 %v1062
        %v1095 = vcvt.s32.f32 %v1063
        %v1096 = vcvt.s32.f32 %v1064
        %v1097 = vcvt.s32.f32 %v1065
        %v1098 = vcvt.s32.f32 %v1066
        %v1099 = vcvt.s32.f32 %v1067
        %v1100 = vcvt.s32.f32 %v1068
        %v1101 = vcvt.s32.f32 %v1069
        %v1102 = vcvt.s32.f32 %v1070
        %v1103 = vcvt.s32.f32 %v1071
        %v1104 = vcvt.s32.f32 %v1072
        %v1105 = vcvt.s32.f32 %v1073
        %v1106 = vcvt.s32.f32 %v1074
        %v1107 = vcvt.s32.f32 %v1075
        %v1108 = vcvt.s32.f32 %v1076
        %v1109 = vcvt.s32.f32 %v1077
        %v1110 = vcvt.s32.f32 %v1078
        %v1111 = vcvt.s32.f32 %v1079
        %v1112 = vcvt.s32.f32 %v1080
        %v1113 = vmul.f32 %v1081, 0.0625
        %v1114 = vmul.f32 %v1082, 0.0625
        %v1115 = vmul.f32 %v1083, 0.0625
        %v1116 = vmul.f32 %v1084, 0.0625
        %v1117 = vmul.f32 %v1085, 0.0625
        %v1118 = vmul.f32 %v1086, 0.0625
        %v1119 = vmul.f32 %v1087, 0.0625
        %v1120 = vmul.f32 %v1088, 0.0625
        %v1121 = vmul.f32 %v1089, 0.0625
        %v1122 = vmul.f32 %v1090, 0.0625
        %v1123 = vmul.f32 %v1091, 0.0625
        %v1124 = vmul.f32 %v1092, 0.0625
        %v1125 = vmul.f32 %v1093, 0.0625
        %v1126 = vmul.f32 %v1094, 0.0625
        %v1127 = vmul.f32 %v1095, 0.0625
        %v1128 = vmul.f32 %v1096, 0.0625
        %v1129 = vmul.f32 %v1097, 0.0625
        %v1130 = vmul.f32 %v1098, 0.0625
        %v1131 = vmul.f32 %v1099, 0.0625
        %v1132 = vmul.f32 %v1100, 0.0625
        %v1133 = vmul.f32 %v1101, 0.0625
        %v1134 = vmul.f32 %v1102, 0.0625
        %v1135 = vmul.f32 %v1103, 0.0625
        %v1136 = vmul.f32 %v1104, 0.0625
        %v1137 = vmul.f32 %v1105, 0.0625
        %v1138 = vmul.f32 %v1106, 0.0625
        %v1139 = vmul.f32 %v1107, 0.0625
        %v1140 = vmul.f32 %v1108, 0.0625
        %v1141 = vmul.f32 %v1109, 0.0625
        %v1142 = vmul.f32 %v1110, 0.0625
        %v1143 = vmul.f32 %v1111, 0.0625
        %v1144 = vmul.f32 %v1112, 0.0625
        %v1145 = vcvt.f32.s32.to.zero.pseudo %v1113
        %v1146 = vcvt.f32.s32.to.zero.pseudo %v1114
        %v1147 = vcvt.f32.s32.to.zero.pseudo %v1115
        %v1148 = vcvt.f32.s32.to.zero.pseudo %v1116
        %v1149 = vcvt.f32.s32.to.zero.pseudo %v1117
        %v1150 = vcvt.f32.s32.to.zero.pseudo %v1118
        %v1151 = vcvt.f32.s32.to.zero.pseudo %v1119
        %v1152 = vcvt.f32.s32.to.zero.pseudo %v1120
        %v1153 = vcvt.f32.s32.to.zero.pseudo %v1121
        %v1154 = vcvt.f32.s32.to.zero.pseudo %v1122
        %v1155 = vcvt.f32.s32.to.zero.pseudo %v1123
        %v1156 = vcvt.f32.s32.to.zero.pseudo %v1124
        %v1157 = vcvt.f32.s32.to.zero.pseudo %v1125
        %v1158 = vcvt.f32.s32.to.zero.pseudo %v1126
        %v1159 = vcvt.f32.s32.to.zero.pseudo %v1127
        %v1160 = vcvt.f32.s32.to.zero.pseudo %v1128
        %v1161 = vcvt.f32.s32.to.zero.pseudo %v1129
        %v1162 = vcvt.f32.s32.to.zero.pseudo %v1130
        %v1163 = vcvt.f32.s32.to.zero.pseudo %v1131
        %v1164 = vcvt.f32.s32.to.zero.pseudo %v1132
        %v1165 = vcvt.f32.s32.to.zero.pseudo %v1133
        %v1166 = vcvt.f32.s32.to.zero.pseudo %v1134
        %v1167 = vcvt.f32.s32.to.zero.pseudo %v1135
        %v1168 = vcvt.f32.s32.to.zero.pseudo %v1136
        %v1169 = vcvt.f32.s32.to.zero.pseudo %v1137
        %v1170 = vcvt.f32.s32.to.zero.pseudo %v1138
        %v1171 = vcvt.f32.s32.to.zero.pseudo %v1139
        %v1172 = vcvt.f32.s32.to.zero.pseudo %v1140
        %v1173 = vcvt.f32.s32.to.zero.pseudo %v1141
        %v1174 = vcvt.f32.s32.to.zero.pseudo %v1142
        %v1175 = vcvt.f32.s32.to.zero.pseudo %v1143
        %v1176 = vcvt.f32.s32.to.zero.pseudo %v1144
        %v1177 = vmul.u32 %v1145, 16
        %v1178 = vmul.u32 %v1146, 16
        %v1179 = vmul.u32 %v1147, 16
        %v1180 = vmul.u32 %v1148, 16
        %v1181 = vmul.u32 %v1149, 16
        %v1182 = vmul.u32 %v1150, 16
        %v1183 = vmul.u32 %v1151, 16
        %v1184 = vmul.u32 %v1152, 16
        %v1185 = vmul.u32 %v1153, 16
        %v1186 = vmul.u32 %v1154, 16
        %v1187 = vmul.u32 %v1155, 16
        %v1188 = vmul.u32 %v1156, 16
        %v1189 = vmul.u32 %v1157, 16
        %v1190 = vmul.u32 %v1158, 16
        %v1191 = vmul.u32 %v1159, 16
        %v1192 = vmul.u32 %v1160, 16
        %v1193 = vmul.u32 %v1161, 16
        %v1194 = vmul.u32 %v1162, 16
        %v1195 = vmul.u32 %v1163, 16
        %v1196 = vmul.u32 %v1164, 16
        %v1197 = vmul.u32 %v1165, 16
        %v1198 = vmul.u32 %v1166, 16
        %v1199 = vmul.u32 %v1167, 16
        %v1200 = vmul.u32 %v1168, 16
        %v1201 = vmul.u32 %v1169, 16
        %v1202 = vmul.u32 %v1170, 16
        %v1203 = vmul.u32 %v1171, 16
        %v1204 = vmul.u32 %v1172, 16
        %v1205 = vmul.u32 %v1173, 16
        %v1206 = vmul.u32 %v1174, 16
        %v1207 = vmul.u32 %v1175, 16
        %v1208 = vmul.u32 %v1176, 16
        %v1209 = vsub.s32 %v1049, %v1177
        %v1210 = vsub.s32 %v1050, %v1178
        %v1211 = vsub.s32 %v1051, %v1179
        %v1212 = vsub.s32 %v1052, %v1180
        %v1213 = vsub.s32 %v1053, %v1181
        %v1214 = vsub.s32 %v1054, %v1182
        %v1215 = vsub.s32 %v1055, %v1183
        %v1216 = vsub.s32 %v1056, %v1184
        %v1217 = vsub.s32 %v1057, %v1185
        %v1218 = vsub.s32 %v1058, %v1186
        %v1219 = vsub.s32 %v1059, %v1187
        %v1220 = vsub.s32 %v1060, %v1188
        %v1221 = vsub.s32 %v1061, %v1189
        %v1222 = vsub.s32 %v1062, %v1190
        %v1223 = vsub.s32 %v1063, %v1191
        %v1224 = vsub.s32 %v1064, %v1192
        %v1225 = vsub.s32 %v1065, %v1193
        %v1226 = vsub.s32 %v1066, %v1194
        %v1227 = vsub.s32 %v1067, %v1195
        %v1228 = vsub.s32 %v1068, %v1196
        %v1229 = vsub.s32 %v1069, %v1197
        %v1230 = vsub.s32 %v1070, %v1198
        %v1231 = vsub.s32 %v1071, %v1199
        %v1232 = vsub.s32 %v1072, %v1200
        %v1233 = vsub.s32 %v1073, %v1201
        %v1234 = vsub.s32 %v1074, %v1202
        %v1235 = vsub.s32 %v1075, %v1203
        %v1236 = vsub.s32 %v1076, %v1204
        %v1237 = vsub.s32 %v1077, %v1205
        %v1238 = vsub.s32 %v1078, %v1206
        %v1239 = vsub.s32 %v1079, %v1207
        %v1240 = vsub.s32 %v1080, %v1208
        %vm1241 = vcmp.ge.s32.totalorder %v1209, 16
        %vm1242 = vcmp.ge.s32.totalorder %v1210, 16
        %vm1243 = vcmp.ge.s32.totalorder %v1211, 16
        %vm1244 = vcmp.ge.s32.totalorder %v1212, 16
        %vm1245 = vcmp.ge.s32.totalorder %v1213, 16
        %vm1246 = vcmp.ge.s32.totalorder %v1214, 16
        %vm1247 = vcmp.ge.s32.totalorder %v1215, 16
        %vm1248 = vcmp.ge.s32.totalorder %v1216, 16
        %vm1249 = vcmp.ge.s32.totalorder %v1217, 16
        %vm1250 = vcmp.ge.s32.totalorder %v1218, 16
        %vm1251 = vcmp.ge.s32.totalorder %v1219, 16
        %vm1252 = vcmp.ge.s32.totalorder %v1220, 16
        %vm1253 = vcmp.ge.s32.totalorder %v1221, 16
        %vm1254 = vcmp.ge.s32.totalorder %v1222, 16
        %vm1255 = vcmp.ge.s32.totalorder %v1223, 16
        %vm1256 = vcmp.ge.s32.totalorder %v1224, 16
        %vm1257 = vcmp.ge.s32.totalorder %v1225, 16
        %vm1258 = vcmp.ge.s32.totalorder %v1226, 16
        %vm1259 = vcmp.ge.s32.totalorder %v1227, 16
        %vm1260 = vcmp.ge.s32.totalorder %v1228, 16
        %vm1261 = vcmp.ge.s32.totalorder %v1229, 16
        %vm1262 = vcmp.ge.s32.totalorder %v1230, 16
        %vm1263 = vcmp.ge.s32.totalorder %v1231, 16
        %vm1264 = vcmp.ge.s32.totalorder %v1232, 16
        %vm1265 = vcmp.ge.s32.totalorder %v1233, 16
        %vm1266 = vcmp.ge.s32.totalorder %v1234, 16
        %vm1267 = vcmp.ge.s32.totalorder %v1235, 16
        %vm1268 = vcmp.ge.s32.totalorder %v1236, 16
        %vm1269 = vcmp.ge.s32.totalorder %v1237, 16
        %vm1270 = vcmp.ge.s32.totalorder %v1238, 16
        %vm1271 = vcmp.ge.s32.totalorder %v1239, 16
        %vm1272 = vcmp.ge.s32.totalorder %v1240, 16
        %v1273 = vsel %vm1241, 1, 0
        %v1274 = vsel %vm1242, 1, 0
        %v1275 = vsel %vm1243, 1, 0
        %v1276 = vsel %vm1244, 1, 0
        %v1277 = vsel %vm1245, 1, 0
        %v1278 = vsel %vm1246, 1, 0
        %v1279 = vsel %vm1247, 1, 0
        %v1280 = vsel %vm1248, 1, 0
        %v1281 = vsel %vm1249, 1, 0
        %v1282 = vsel %vm1250, 1, 0
        %v1283 = vsel %vm1251, 1, 0
        %v1284 = vsel %vm1252, 1, 0
        %v1285 = vsel %vm1253, 1, 0
        %v1286 = vsel %vm1254, 1, 0
        %v1287 = vsel %vm1255, 1, 0
        %v1288 = vsel %vm1256, 1, 0
        %v1289 = vsel %vm1257, 1, 0
        %v1290 = vsel %vm1258, 1, 0
        %v1291 = vsel %vm1259, 1, 0
        %v1292 = vsel %vm1260, 1, 0
        %v1293 = vsel %vm1261, 1, 0
        %v1294 = vsel %vm1262, 1, 0
        %v1295 = vsel %vm1263, 1, 0
        %v1296 = vsel %vm1264, 1, 0
        %v1297 = vsel %vm1265, 1, 0
        %v1298 = vsel %vm1266, 1, 0
        %v1299 = vsel %vm1267, 1, 0
        %v1300 = vsel %vm1268, 1, 0
        %v1301 = vsel %vm1269, 1, 0
        %v1302 = vsel %vm1270, 1, 0
        %v1303 = vsel %vm1271, 1, 0
        %v1304 = vsel %vm1272, 1, 0
        %v1305 = vadd.s32 %v1145, %v1273
        %v1306 = vadd.s32 %v1146, %v1274
        %v1307 = vadd.s32 %v1147, %v1275
        %v1308 = vadd.s32 %v1148, %v1276
        %v1309 = vadd.s32 %v1149, %v1277
        %v1310 = vadd.s32 %v1150, %v1278
        %v1311 = vadd.s32 %v1151, %v1279
        %v1312 = vadd.s32 %v1152, %v1280
        %v1313 = vadd.s32 %v1153, %v1281
        %v1314 = vadd.s32 %v1154, %v1282
        %v1315 = vadd.s32 %v1155, %v1283
        %v1316 = vadd.s32 %v1156, %v1284
        %v1317 = vadd.s32 %v1157, %v1285
        %v1318 = vadd.s32 %v1158, %v1286
        %v1319 = vadd.s32 %v1159, %v1287
        %v1320 = vadd.s32 %v1160, %v1288
        %v1321 = vadd.s32 %v1161, %v1289
        %v1322 = vadd.s32 %v1162, %v1290
        %v1323 = vadd.s32 %v1163, %v1291
        %v1324 = vadd.s32 %v1164, %v1292
        %v1325 = vadd.s32 %v1165, %v1293
        %v1326 = vadd.s32 %v1166, %v1294
        %v1327 = vadd.s32 %v1167, %v1295
        %v1328 = vadd.s32 %v1168, %v1296
        %v1329 = vadd.s32 %v1169, %v1297
        %v1330 = vadd.s32 %v1170, %v1298
        %v1331 = vadd.s32 %v1171, %v1299
        %v1332 = vadd.s32 %v1172, %v1300
        %v1333 = vadd.s32 %v1173, %v1301
        %v1334 = vadd.s32 %v1174, %v1302
        %v1335 = vadd.s32 %v1175, %v1303
        %v1336 = vadd.s32 %v1176, %v1304
        %vm1337 = vcmp.lt.s32.totalorder %v1209, 0
        %vm1338 = vcmp.lt.s32.totalorder %v1210, 0
        %vm1339 = vcmp.lt.s32.totalorder %v1211, 0
        %vm1340 = vcmp.lt.s32.totalorder %v1212, 0
        %vm1341 = vcmp.lt.s32.totalorder %v1213, 0
        %vm1342 = vcmp.lt.s32.totalorder %v1214, 0
        %vm1343 = vcmp.lt.s32.totalorder %v1215, 0
        %vm1344 = vcmp.lt.s32.totalorder %v1216, 0
        %vm1345 = vcmp.lt.s32.totalorder %v1217, 0
        %vm1346 = vcmp.lt.s32.totalorder %v1218, 0
        %vm1347 = vcmp.lt.s32.totalorder %v1219, 0
        %vm1348 = vcmp.lt.s32.totalorder %v1220, 0
        %vm1349 = vcmp.lt.s32.totalorder %v1221, 0
        %vm1350 = vcmp.lt.s32.totalorder %v1222, 0
        %vm1351 = vcmp.lt.s32.totalorder %v1223, 0
        %vm1352 = vcmp.lt.s32.totalorder %v1224, 0
        %vm1353 = vcmp.lt.s32.totalorder %v1225, 0
        %vm1354 = vcmp.lt.s32.totalorder %v1226, 0
        %vm1355 = vcmp.lt.s32.totalorder %v1227, 0
        %vm1356 = vcmp.lt.s32.totalorder %v1228, 0
        %vm1357 = vcmp.lt.s32.totalorder %v1229, 0
        %vm1358 = vcmp.lt.s32.totalorder %v1230, 0
        %vm1359 = vcmp.lt.s32.totalorder %v1231, 0
        %vm1360 = vcmp.lt.s32.totalorder %v1232, 0
        %vm1361 = vcmp.lt.s32.totalorder %v1233, 0
        %vm1362 = vcmp.lt.s32.totalorder %v1234, 0
        %vm1363 = vcmp.lt.s32.totalorder %v1235, 0
        %vm1364 = vcmp.lt.s32.totalorder %v1236, 0
        %vm1365 = vcmp.lt.s32.totalorder %v1237, 0
        %vm1366 = vcmp.lt.s32.totalorder %v1238, 0
        %vm1367 = vcmp.lt.s32.totalorder %v1239, 0
        %vm1368 = vcmp.lt.s32.totalorder %v1240, 0
        %v1369 = vsel %vm1337, 1, 0
        %v1370 = vsel %vm1338, 1, 0
        %v1371 = vsel %vm1339, 1, 0
        %v1372 = vsel %vm1340, 1, 0
        %v1373 = vsel %vm1341, 1, 0
        %v1374 = vsel %vm1342, 1, 0
        %v1375 = vsel %vm1343, 1, 0
        %v1376 = vsel %vm1344, 1, 0
        %v1377 = vsel %vm1345, 1, 0
        %v1378 = vsel %vm1346, 1, 0
        %v1379 = vsel %vm1347, 1, 0
        %v1380 = vsel %vm1348, 1, 0
        %v1381 = vsel %vm1349, 1, 0
        %v1382 = vsel %vm1350, 1, 0
        %v1383 = vsel %vm1351, 1, 0
        %v1384 = vsel %vm1352, 1, 0
        %v1385 = vsel %vm1353, 1, 0
        %v1386 = vsel %vm1354, 1, 0
        %v1387 = vsel %vm1355, 1, 0
        %v1388 = vsel %vm1356, 1, 0
        %v1389 = vsel %vm1357, 1, 0
        %v1390 = vsel %vm1358, 1, 0
        %v1391 = vsel %vm1359, 1, 0
        %v1392 = vsel %vm1360, 1, 0
        %v1393 = vsel %vm1361, 1, 0
        %v1394 = vsel %vm1362, 1, 0
        %v1395 = vsel %vm1363, 1, 0
        %v1396 = vsel %vm1364, 1, 0
        %v1397 = vsel %vm1365, 1, 0
        %v1398 = vsel %vm1366, 1, 0
        %v1399 = vsel %vm1367, 1, 0
        %v1400 = vsel %vm1368, 1, 0
        %v1401 = vsub.s32 %v1305, %v1369
        %v1402 = vsub.s32 %v1306, %v1370
        %v1403 = vsub.s32 %v1307, %v1371
        %v1404 = vsub.s32 %v1308, %v1372
        %v1405 = vsub.s32 %v1309, %v1373
        %v1406 = vsub.s32 %v1310, %v1374
        %v1407 = vsub.s32 %v1311, %v1375
        %v1408 = vsub.s32 %v1312, %v1376
        %v1409 = vsub.s32 %v1313, %v1377
        %v1410 = vsub.s32 %v1314, %v1378
        %v1411 = vsub.s32 %v1315, %v1379
        %v1412 = vsub.s32 %v1316, %v1380
        %v1413 = vsub.s32 %v1317, %v1381
        %v1414 = vsub.s32 %v1318, %v1382
        %v1415 = vsub.s32 %v1319, %v1383
        %v1416 = vsub.s32 %v1320, %v1384
        %v1417 = vsub.s32 %v1321, %v1385
        %v1418 = vsub.s32 %v1322, %v1386
        %v1419 = vsub.s32 %v1323, %v1387
        %v1420 = vsub.s32 %v1324, %v1388
        %v1421 = vsub.s32 %v1325, %v1389
        %v1422 = vsub.s32 %v1326, %v1390
        %v1423 = vsub.s32 %v1327, %v1391
        %v1424 = vsub.s32 %v1328, %v1392
        %v1425 = vsub.s32 %v1329, %v1393
        %v1426 = vsub.s32 %v1330, %v1394
        %v1427 = vsub.s32 %v1331, %v1395
        %v1428 = vsub.s32 %v1332, %v1396
        %v1429 = vsub.s32 %v1333, %v1397
        %v1430 = vsub.s32 %v1334, %v1398
        %v1431 = vsub.s32 %v1335, %v1399
        %v1432 = vsub.s32 %v1336, %v1400
        %v1433 = vmul.u32 %v1401, 16
        %v1434 = vmul.u32 %v1402, 16
        %v1435 = vmul.u32 %v1403, 16
        %v1436 = vmul.u32 %v1404, 16
        %v1437 = vmul.u32 %v1405, 16
        %v1438 = vmul.u32 %v1406, 16
        %v1439 = vmul.u32 %v1407, 16
        %v1440 = vmul.u32 %v1408, 16
        %v1441 = vmul.u32 %v1409, 16
        %v1442 = vmul.u32 %v1410, 16
        %v1443 = vmul.u32 %v1411, 16
        %v1444 = vmul.u32 %v1412, 16
        %v1445 = vmul.u32 %v1413, 16
        %v1446 = vmul.u32 %v1414, 16
        %v1447 = vmul.u32 %v1415, 16
        %v1448 = vmul.u32 %v1416, 16
        %v1449 = vmul.u32 %v1417, 16
        %v1450 = vmul.u32 %v1418, 16
        %v1451 = vmul.u32 %v1419, 16
        %v1452 = vmul.u32 %v1420, 16
        %v1453 = vmul.u32 %v1421, 16
        %v1454 = vmul.u32 %v1422, 16
        %v1455 = vmul.u32 %v1423, 16
        %v1456 = vmul.u32 %v1424, 16
        %v1457 = vmul.u32 %v1425, 16
        %v1458 = vmul.u32 %v1426, 16
        %v1459 = vmul.u32 %v1427, 16
        %v1460 = vmul.u32 %v1428, 16
        %v1461 = vmul.u32 %v1429, 16
        %v1462 = vmul.u32 %v1430, 16
        %v1463 = vmul.u32 %v1431, 16
        %v1464 = vmul.u32 %v1432, 16
        %v1465 = vsub.s32 %v1049, %v1433
        %v1466 = vsub.s32 %v1050, %v1434
        %v1467 = vsub.s32 %v1051, %v1435
        %v1468 = vsub.s32 %v1052, %v1436
        %v1469 = vsub.s32 %v1053, %v1437
        %v1470 = vsub.s32 %v1054, %v1438
        %v1471 = vsub.s32 %v1055, %v1439
        %v1472 = vsub.s32 %v1056, %v1440
        %v1473 = vsub.s32 %v1057, %v1441
        %v1474 = vsub.s32 %v1058, %v1442
        %v1475 = vsub.s32 %v1059, %v1443
        %v1476 = vsub.s32 %v1060, %v1444
        %v1477 = vsub.s32 %v1061, %v1445
        %v1478 = vsub.s32 %v1062, %v1446
        %v1479 = vsub.s32 %v1063, %v1447
        %v1480 = vsub.s32 %v1064, %v1448
        %v1481 = vsub.s32 %v1065, %v1449
        %v1482 = vsub.s32 %v1066, %v1450
        %v1483 = vsub.s32 %v1067, %v1451
        %v1484 = vsub.s32 %v1068, %v1452
        %v1485 = vsub.s32 %v1069, %v1453
        %v1486 = vsub.s32 %v1070, %v1454
        %v1487 = vsub.s32 %v1071, %v1455
        %v1488 = vsub.s32 %v1072, %v1456
        %v1489 = vsub.s32 %v1073, %v1457
        %v1490 = vsub.s32 %v1074, %v1458
        %v1491 = vsub.s32 %v1075, %v1459
        %v1492 = vsub.s32 %v1076, %v1460
        %v1493 = vsub.s32 %v1077, %v1461
        %v1494 = vsub.s32 %v1078, %v1462
        %v1495 = vsub.s32 %v1079, %v1463
        %v1496 = vsub.s32 %v1080, %v1464
        %vm1497 = vcmp.ge.s32.totalorder %v1049, 16
        %vm1498 = vcmp.ge.s32.totalorder %v1050, 16
        %vm1499 = vcmp.ge.s32.totalorder %v1051, 16
        %vm1500 = vcmp.ge.s32.totalorder %v1052, 16
        %vm1501 = vcmp.ge.s32.totalorder %v1053, 16
        %vm1502 = vcmp.ge.s32.totalorder %v1054, 16
        %vm1503 = vcmp.ge.s32.totalorder %v1055, 16
        %vm1504 = vcmp.ge.s32.totalorder %v1056, 16
        %vm1505 = vcmp.ge.s32.totalorder %v1057, 16
        %vm1506 = vcmp.ge.s32.totalorder %v1058, 16
        %vm1507 = vcmp.ge.s32.totalorder %v1059, 16
        %vm1508 = vcmp.ge.s32.totalorder %v1060, 16
        %vm1509 = vcmp.ge.s32.totalorder %v1061, 16
        %vm1510 = vcmp.ge.s32.totalorder %v1062, 16
        %vm1511 = vcmp.ge.s32.totalorder %v1063, 16
        %vm1512 = vcmp.ge.s32.totalorder %v1064, 16
        %vm1513 = vcmp.ge.s32.totalorder %v1065, 16
        %vm1514 = vcmp.ge.s32.totalorder %v1066, 16
        %vm1515 = vcmp.ge.s32.totalorder %v1067, 16
        %vm1516 = vcmp.ge.s32.totalorder %v1068, 16
        %vm1517 = vcmp.ge.s32.totalorder %v1069, 16
        %vm1518 = vcmp.ge.s32.totalorder %v1070, 16
        %vm1519 = vcmp.ge.s32.totalorder %v1071, 16
        %vm1520 = vcmp.ge.s32.totalorder %v1072, 16
        %vm1521 = vcmp.ge.s32.totalorder %v1073, 16
        %vm1522 = vcmp.ge.s32.totalorder %v1074, 16
        %vm1523 = vcmp.ge.s32.totalorder %v1075, 16
        %vm1524 = vcmp.ge.s32.totalorder %v1076, 16
        %vm1525 = vcmp.ge.s32.totalorder %v1077, 16
        %vm1526 = vcmp.ge.s32.totalorder %v1078, 16
        %vm1527 = vcmp.ge.s32.totalorder %v1079, 16
        %vm1528 = vcmp.ge.s32.totalorder %v1080, 16
        %vm1529 = vcmp.lt.s32.totalorder %v1049, 240
        %vm1530 = vcmp.lt.s32.totalorder %v1050, 240
        %vm1531 = vcmp.lt.s32.totalorder %v1051, 240
        %vm1532 = vcmp.lt.s32.totalorder %v1052, 240
        %vm1533 = vcmp.lt.s32.totalorder %v1053, 240
        %vm1534 = vcmp.lt.s32.totalorder %v1054, 240
        %vm1535 = vcmp.lt.s32.totalorder %v1055, 240
        %vm1536 = vcmp.lt.s32.totalorder %v1056, 240
        %vm1537 = vcmp.lt.s32.totalorder %v1057, 240
        %vm1538 = vcmp.lt.s32.totalorder %v1058, 240
        %vm1539 = vcmp.lt.s32.totalorder %v1059, 240
        %vm1540 = vcmp.lt.s32.totalorder %v1060, 240
        %vm1541 = vcmp.lt.s32.totalorder %v1061, 240
        %vm1542 = vcmp.lt.s32.totalorder %v1062, 240
        %vm1543 = vcmp.lt.s32.totalorder %v1063, 240
        %vm1544 = vcmp.lt.s32.totalorder %v1064, 240
        %vm1545 = vcmp.lt.s32.totalorder %v1065, 240
        %vm1546 = vcmp.lt.s32.totalorder %v1066, 240
        %vm1547 = vcmp.lt.s32.totalorder %v1067, 240
        %vm1548 = vcmp.lt.s32.totalorder %v1068, 240
        %vm1549 = vcmp.lt.s32.totalorder %v1069, 240
        %vm1550 = vcmp.lt.s32.totalorder %v1070, 240
        %vm1551 = vcmp.lt.s32.totalorder %v1071, 240
        %vm1552 = vcmp.lt.s32.totalorder %v1072, 240
        %vm1553 = vcmp.lt.s32.totalorder %v1073, 240
        %vm1554 = vcmp.lt.s32.totalorder %v1074, 240
        %vm1555 = vcmp.lt.s32.totalorder %v1075, 240
        %vm1556 = vcmp.lt.s32.totalorder %v1076, 240
        %vm1557 = vcmp.lt.s32.totalorder %v1077, 240
        %vm1558 = vcmp.lt.s32.totalorder %v1078, 240
        %vm1559 = vcmp.lt.s32.totalorder %v1079, 240
        %vm1560 = vcmp.lt.s32.totalorder %v1080, 240
        %vm1561 = vcmp.ge.s32.totalorder %v1465, 1
        %vm1562 = vcmp.ge.s32.totalorder %v1466, 1
        %vm1563 = vcmp.ge.s32.totalorder %v1467, 1
        %vm1564 = vcmp.ge.s32.totalorder %v1468, 1
        %vm1565 = vcmp.ge.s32.totalorder %v1469, 1
        %vm1566 = vcmp.ge.s32.totalorder %v1470, 1
        %vm1567 = vcmp.ge.s32.totalorder %v1471, 1
        %vm1568 = vcmp.ge.s32.totalorder %v1472, 1
        %vm1569 = vcmp.ge.s32.totalorder %v1473, 1
        %vm1570 = vcmp.ge.s32.totalorder %v1474, 1
        %vm1571 = vcmp.ge.s32.totalorder %v1475, 1
        %vm1572 = vcmp.ge.s32.totalorder %v1476, 1
        %vm1573 = vcmp.ge.s32.totalorder %v1477, 1
        %vm1574 = vcmp.ge.s32.totalorder %v1478, 1
        %vm1575 = vcmp.ge.s32.totalorder %v1479, 1
        %vm1576 = vcmp.ge.s32.totalorder %v1480, 1
        %vm1577 = vcmp.ge.s32.totalorder %v1481, 1
        %vm1578 = vcmp.ge.s32.totalorder %v1482, 1
        %vm1579 = vcmp.ge.s32.totalorder %v1483, 1
        %vm1580 = vcmp.ge.s32.totalorder %v1484, 1
        %vm1581 = vcmp.ge.s32.totalorder %v1485, 1
        %vm1582 = vcmp.ge.s32.totalorder %v1486, 1
        %vm1583 = vcmp.ge.s32.totalorder %v1487, 1
        %vm1584 = vcmp.ge.s32.totalorder %v1488, 1
        %vm1585 = vcmp.ge.s32.totalorder %v1489, 1
        %vm1586 = vcmp.ge.s32.totalorder %v1490, 1
        %vm1587 = vcmp.ge.s32.totalorder %v1491, 1
        %vm1588 = vcmp.ge.s32.totalorder %v1492, 1
        %vm1589 = vcmp.ge.s32.totalorder %v1493, 1
        %vm1590 = vcmp.ge.s32.totalorder %v1494, 1
        %vm1591 = vcmp.ge.s32.totalorder %v1495, 1
        %vm1592 = vcmp.ge.s32.totalorder %v1496, 1
        %vm1593 = vcmp.lt.s32.totalorder %v1465, 15
        %vm1594 = vcmp.lt.s32.totalorder %v1466, 15
        %vm1595 = vcmp.lt.s32.totalorder %v1467, 15
        %vm1596 = vcmp.lt.s32.totalorder %v1468, 15
        %vm1597 = vcmp.lt.s32.totalorder %v1469, 15
        %vm1598 = vcmp.lt.s32.totalorder %v1470, 15
        %vm1599 = vcmp.lt.s32.totalorder %v1471, 15
        %vm1600 = vcmp.lt.s32.totalorder %v1472, 15
        %vm1601 = vcmp.lt.s32.totalorder %v1473, 15
        %vm1602 = vcmp.lt.s32.totalorder %v1474, 15
        %vm1603 = vcmp.lt.s32.totalorder %v1475, 15
        %vm1604 = vcmp.lt.s32.totalorder %v1476, 15
        %vm1605 = vcmp.lt.s32.totalorder %v1477, 15
        %vm1606 = vcmp.lt.s32.totalorder %v1478, 15
        %vm1607 = vcmp.lt.s32.totalorder %v1479, 15
        %vm1608 = vcmp.lt.s32.totalorder %v1480, 15
        %vm1609 = vcmp.lt.s32.totalorder %v1481, 15
        %vm1610 = vcmp.lt.s32.totalorder %v1482, 15
        %vm1611 = vcmp.lt.s32.totalorder %v1483, 15
        %vm1612 = vcmp.lt.s32.totalorder %v1484, 15
        %vm1613 = vcmp.lt.s32.totalorder %v1485, 15
        %vm1614 = vcmp.lt.s32.totalorder %v1486, 15
        %vm1615 = vcmp.lt.s32.totalorder %v1487, 15
        %vm1616 = vcmp.lt.s32.totalorder %v1488, 15
        %vm1617 = vcmp.lt.s32.totalorder %v1489, 15
        %vm1618 = vcmp.lt.s32.totalorder %v1490, 15
        %vm1619 = vcmp.lt.s32.totalorder %v1491, 15
        %vm1620 = vcmp.lt.s32.totalorder %v1492, 15
        %vm1621 = vcmp.lt.s32.totalorder %v1493, 15
        %vm1622 = vcmp.lt.s32.totalorder %v1494, 15
        %vm1623 = vcmp.lt.s32.totalorder %v1495, 15
        %vm1624 = vcmp.lt.s32.totalorder %v1496, 15
        %v1625 = vld [vmem:[#allocation7] sm:$0xff]
        %v1626 = vld [vmem:[#allocation7 + $0x8] sm:$0x1]
        %v1627 = vrot.slane %v1016, 7
        %v1628 = vrot.slane %v1017, 7
        %v1629 = vrot.slane %v1018, 7
        %v1630 = vrot.slane %v1019, 7
        %v1631 = vrot.slane %v1020, 7
        %v1632 = vrot.slane %v1021, 7
        %v1633 = vrot.slane %v1022, 7
        %v1634 = vrot.slane %v1023, 7
        %v1635 = vrot.slane %v1024, 7
        %v1636 = vrot.slane %v1025, 7
        %v1637 = vrot.slane %v1026, 7
        %v1638 = vrot.slane %v1027, 7
        %v1639 = vrot.slane %v1028, 7
        %v1640 = vrot.slane %v1029, 7
        %v1641 = vrot.slane %v1030, 7
        %v1642 = vrot.slane %v1031, 7
        %v1643 = vrot.slane %v1032, 7
        %v1644 = vrot.slane %v1033, 7
        %v1645 = vrot.slane %v1034, 7
        %v1646 = vrot.slane %v1035, 7
        %v1647 = vrot.slane %v1036, 7
        %v1648 = vrot.slane %v1037, 7
        %v1649 = vrot.slane %v1038, 7
        %v1650 = vrot.slane %v1039, 7
        %v1651 = vrot.slane %v1040, 7
        %v1652 = vrot.slane %v1041, 7
        %v1653 = vrot.slane %v1042, 7
        %v1654 = vrot.slane %v1043, 7
        %v1655 = vrot.slane %v1044, 7
        %v1656 = vrot.slane %v1045, 7
        %v1657 = vrot.slane %v1046, 7
        %v1658 = vrot.slane %v1047, 7
        %vm1659 = vcmp.lt.s32.totalorder %v1049, 1
        %v1660 = vsel %vm1659, %v1657, %v1658
        %v1661 = vsel %vm1659, %v1656, %v1657
        %v1662 = vsel %vm1659, %v1655, %v1656
        %v1663 = vsel %vm1659, %v1654, %v1655
        %v1664 = vsel %vm1659, %v1653, %v1654
        %v1665 = vsel %vm1659, %v1652, %v1653
        %v1666 = vsel %vm1659, %v1651, %v1652
        %v1667 = vsel %vm1659, %v1650, %v1651
        %v1668 = vsel %vm1659, %v1649, %v1650
        %v1669 = vsel %vm1659, %v1648, %v1649
        %v1670 = vsel %vm1659, %v1647, %v1648
        %v1671 = vsel %vm1659, %v1646, %v1647
        %v1672 = vsel %vm1659, %v1645, %v1646
        %v1673 = vsel %vm1659, %v1644, %v1645
        %v1674 = vsel %vm1659, %v1643, %v1644
        %v1675 = vsel %vm1659, %v1642, %v1643
        %v1676 = vsel %vm1659, %v1641, %v1642
        %v1677 = vsel %vm1659, %v1640, %v1641
        %v1678 = vsel %vm1659, %v1639, %v1640
        %v1679 = vsel %vm1659, %v1638, %v1639
        %v1680 = vsel %vm1659, %v1637, %v1638
        %v1681 = vsel %vm1659, %v1636, %v1637
        %v1682 = vsel %vm1659, %v1635, %v1636
        %v1683 = vsel %vm1659, %v1634, %v1635
        %v1684 = vsel %vm1659, %v1633, %v1634
        %v1685 = vsel %vm1659, %v1632, %v1633
        %v1686 = vsel %vm1659, %v1631, %v1632
        %v1687 = vsel %vm1659, %v1630, %v1631
        %v1688 = vsel %vm1659, %v1629, %v1630
        %v1689 = vsel %vm1659, %v1628, %v1629
        %v1690 = vsel %vm1659, %v1627, %v1628
        %v1691 = vsel %vm1659, %v1658, %v1627
        %vm1692 = vmand %vm1497, %vm1561
        %vm1693 = vmand %vm1498, %vm1562
        %vm1694 = vmand %vm1499, %vm1563
        %vm1695 = vmand %vm1500, %vm1564
        %vm1696 = vmand %vm1501, %vm1565
        %vm1697 = vmand %vm1502, %vm1566
        %vm1698 = vmand %vm1503, %vm1567
        %vm1699 = vmand %vm1504, %vm1568
        %vm1700 = vmand %vm1505, %vm1569
        %vm1701 = vmand %vm1506, %vm1570
        %vm1702 = vmand %vm1507, %vm1571
        %vm1703 = vmand %vm1508, %vm1572
        %vm1704 = vmand %vm1509, %vm1573
        %vm1705 = vmand %vm1510, %vm1574
        %vm1706 = vmand %vm1511, %vm1575
        %vm1707 = vmand %vm1512, %vm1576
        %vm1708 = vmand %vm1513, %vm1577
        %vm1709 = vmand %vm1514, %vm1578
        %vm1710 = vmand %vm1515, %vm1579
        %vm1711 = vmand %vm1516, %vm1580
        %vm1712 = vmand %vm1517, %vm1581
        %vm1713 = vmand %vm1518, %vm1582
        %vm1714 = vmand %vm1519, %vm1583
        %vm1715 = vmand %vm1520, %vm1584
        %vm1716 = vmand %vm1521, %vm1585
        %vm1717 = vmand %vm1522, %vm1586
        %vm1718 = vmand %vm1523, %vm1587
        %vm1719 = vmand %vm1524, %vm1588
        %vm1720 = vmand %vm1525, %vm1589
        %vm1721 = vmand %vm1526, %vm1590
        %vm1722 = vmand %vm1527, %vm1591
        %vm1723 = vmand %vm1528, %vm1592
        %v1724 = vsel %vm1692, 1, 0
        %v1725 = vsel %vm1693, 1, 0
        %v1726 = vsel %vm1694, 1, 0
        %v1727 = vsel %vm1695, 1, 0
        %v1728 = vsel %vm1696, 1, 0
        %v1729 = vsel %vm1697, 1, 0
        %v1730 = vsel %vm1698, 1, 0
        %v1731 = vsel %vm1699, 1, 0
        %v1732 = vsel %vm1700, 1, 0
        %v1733 = vsel %vm1701, 1, 0
        %v1734 = vsel %vm1702, 1, 0
        %v1735 = vsel %vm1703, 1, 0
        %v1736 = vsel %vm1704, 1, 0
        %v1737 = vsel %vm1705, 1, 0
        %v1738 = vsel %vm1706, 1, 0
        %v1739 = vsel %vm1707, 1, 0
        %v1740 = vsel %vm1708, 1, 0
        %v1741 = vsel %vm1709, 1, 0
        %v1742 = vsel %vm1710, 1, 0
        %v1743 = vsel %vm1711, 1, 0
        %v1744 = vsel %vm1712, 1, 0
        %v1745 = vsel %vm1713, 1, 0
        %v1746 = vsel %vm1714, 1, 0
        %v1747 = vsel %vm1715, 1, 0
        %v1748 = vsel %vm1716, 1, 0
        %v1749 = vsel %vm1717, 1, 0
        %v1750 = vsel %vm1718, 1, 0
        %v1751 = vsel %vm1719, 1, 0
        %v1752 = vsel %vm1720, 1, 0
        %v1753 = vsel %vm1721, 1, 0
        %v1754 = vsel %vm1722, 1, 0
        %v1755 = vsel %vm1723, 1, 0
        %vm1756 = vcmp.eq.s32.totalorder %v1724, 1
        %vm1757 = vcmp.eq.s32.totalorder %v1725, 1
        %vm1758 = vcmp.eq.s32.totalorder %v1726, 1
        %vm1759 = vcmp.eq.s32.totalorder %v1727, 1
        %vm1760 = vcmp.eq.s32.totalorder %v1728, 1
        %vm1761 = vcmp.eq.s32.totalorder %v1729, 1
        %vm1762 = vcmp.eq.s32.totalorder %v1730, 1
        %vm1763 = vcmp.eq.s32.totalorder %v1731, 1
        %vm1764 = vcmp.eq.s32.totalorder %v1732, 1
        %vm1765 = vcmp.eq.s32.totalorder %v1733, 1
        %vm1766 = vcmp.eq.s32.totalorder %v1734, 1
        %vm1767 = vcmp.eq.s32.totalorder %v1735, 1
        %vm1768 = vcmp.eq.s32.totalorder %v1736, 1
        %vm1769 = vcmp.eq.s32.totalorder %v1737, 1
        %vm1770 = vcmp.eq.s32.totalorder %v1738, 1
        %vm1771 = vcmp.eq.s32.totalorder %v1739, 1
        %vm1772 = vcmp.eq.s32.totalorder %v1740, 1
        %vm1773 = vcmp.eq.s32.totalorder %v1741, 1
        %vm1774 = vcmp.eq.s32.totalorder %v1742, 1
        %vm1775 = vcmp.eq.s32.totalorder %v1743, 1
        %vm1776 = vcmp.eq.s32.totalorder %v1744, 1
        %vm1777 = vcmp.eq.s32.totalorder %v1745, 1
        %vm1778 = vcmp.eq.s32.totalorder %v1746, 1
        %vm1779 = vcmp.eq.s32.totalorder %v1747, 1
        %vm1780 = vcmp.eq.s32.totalorder %v1748, 1
        %vm1781 = vcmp.eq.s32.totalorder %v1749, 1
        %vm1782 = vcmp.eq.s32.totalorder %v1750, 1
        %vm1783 = vcmp.eq.s32.totalorder %v1751, 1
        %vm1784 = vcmp.eq.s32.totalorder %v1752, 1
        %vm1785 = vcmp.eq.s32.totalorder %v1753, 1
        %vm1786 = vcmp.eq.s32.totalorder %v1754, 1
        %vm1787 = vcmp.eq.s32.totalorder %v1755, 1
        %v1788 = vsel %vm1756, %v1661, 0.0
        %v1789 = vsel %vm1757, %v1660, 0.0
        %v1790 = vsel %vm1758, %v1691, 0.0
        %v1791 = vsel %vm1759, %v1690, 0.0
        %v1792 = vsel %vm1760, %v1689, 0.0
        %v1793 = vsel %vm1761, %v1688, 0.0
        %v1794 = vsel %vm1762, %v1687, 0.0
        %v1795 = vsel %vm1763, %v1686, 0.0
        %v1796 = vsel %vm1764, %v1685, 0.0
        %v1797 = vsel %vm1765, %v1684, 0.0
        %v1798 = vsel %vm1766, %v1683, 0.0
        %v1799 = vsel %vm1767, %v1682, 0.0
        %v1800 = vsel %vm1768, %v1681, 0.0
        %v1801 = vsel %vm1769, %v1680, 0.0
        %v1802 = vsel %vm1770, %v1679, 0.0
        %v1803 = vsel %vm1771, %v1678, 0.0
        %v1804 = vsel %vm1772, %v1677, 0.0
        %v1805 = vsel %vm1773, %v1676, 0.0
        %v1806 = vsel %vm1774, %v1675, 0.0
        %v1807 = vsel %vm1775, %v1674, 0.0
        %v1808 = vsel %vm1776, %v1673, 0.0
        %v1809 = vsel %vm1777, %v1672, 0.0
        %v1810 = vsel %vm1778, %v1671, 0.0
        %v1811 = vsel %vm1779, %v1670, 0.0
        %v1812 = vsel %vm1780, %v1669, 0.0
        %v1813 = vsel %vm1781, %v1668, 0.0
        %v1814 = vsel %vm1782, %v1667, 0.0
        %v1815 = vsel %vm1783, %v1666, 0.0
        %v1816 = vsel %vm1784, %v1665, 0.0
        %v1817 = vsel %vm1785, %v1664, 0.0
        %v1818 = vsel %vm1786, %v1663, 0.0
        %v1819 = vsel %vm1787, %v1662, 0.0
        %v1820 = vperm.slane %v1625, 0
        %v1821 = vmul.f32 %v1788, %v1820
        %v1822 = vmul.f32 %v1789, %v1820
        %v1823 = vmul.f32 %v1790, %v1820
        %v1824 = vmul.f32 %v1791, %v1820
        %v1825 = vmul.f32 %v1792, %v1820
        %v1826 = vmul.f32 %v1793, %v1820
        %v1827 = vmul.f32 %v1794, %v1820
        %v1828 = vmul.f32 %v1795, %v1820
        %v1829 = vmul.f32 %v1796, %v1820
        %v1830 = vmul.f32 %v1797, %v1820
        %v1831 = vmul.f32 %v1798, %v1820
        %v1832 = vmul.f32 %v1799, %v1820
        %v1833 = vmul.f32 %v1800, %v1820
        %v1834 = vmul.f32 %v1801, %v1820
        %v1835 = vmul.f32 %v1802, %v1820
        %v1836 = vmul.f32 %v1803, %v1820
        %v1837 = vmul.f32 %v1804, %v1820
        %v1838 = vmul.f32 %v1805, %v1820
        %v1839 = vmul.f32 %v1806, %v1820
        %v1840 = vmul.f32 %v1807, %v1820
        %v1841 = vmul.f32 %v1808, %v1820
        %v1842 = vmul.f32 %v1809, %v1820
        %v1843 = vmul.f32 %v1810, %v1820
        %v1844 = vmul.f32 %v1811, %v1820
        %v1845 = vmul.f32 %v1812, %v1820
        %v1846 = vmul.f32 %v1813, %v1820
        %v1847 = vmul.f32 %v1814, %v1820
        %v1848 = vmul.f32 %v1815, %v1820
        %v1849 = vmul.f32 %v1816, %v1820
        %v1850 = vmul.f32 %v1817, %v1820
        %v1851 = vmul.f32 %v1818, %v1820
        %v1852 = vmul.f32 %v1819, %v1820
        %v1853 = vadd.f32 %v1821, 0.0
        %v1854 = vadd.f32 %v1822, 0.0
        %v1855 = vadd.f32 %v1823, 0.0
        %v1856 = vadd.f32 %v1824, 0.0
        %v1857 = vadd.f32 %v1825, 0.0
        %v1858 = vadd.f32 %v1826, 0.0
        %v1859 = vadd.f32 %v1827, 0.0
        %v1860 = vadd.f32 %v1828, 0.0
        %v1861 = vadd.f32 %v1829, 0.0
        %v1862 = vadd.f32 %v1830, 0.0
        %v1863 = vadd.f32 %v1831, 0.0
        %v1864 = vadd.f32 %v1832, 0.0
        %v1865 = vadd.f32 %v1833, 0.0
        %v1866 = vadd.f32 %v1834, 0.0
        %v1867 = vadd.f32 %v1835, 0.0
        %v1868 = vadd.f32 %v1836, 0.0
        %v1869 = vadd.f32 %v1837, 0.0
        %v1870 = vadd.f32 %v1838, 0.0
        %v1871 = vadd.f32 %v1839, 0.0
        %v1872 = vadd.f32 %v1840, 0.0
        %v1873 = vadd.f32 %v1841, 0.0
        %v1874 = vadd.f32 %v1842, 0.0
        %v1875 = vadd.f32 %v1843, 0.0
        %v1876 = vadd.f32 %v1844, 0.0
        %v1877 = vadd.f32 %v1845, 0.0
        %v1878 = vadd.f32 %v1846, 0.0
        %v1879 = vadd.f32 %v1847, 0.0
        %v1880 = vadd.f32 %v1848, 0.0
        %v1881 = vadd.f32 %v1849, 0.0
        %v1882 = vadd.f32 %v1850, 0.0
        %v1883 = vadd.f32 %v1851, 0.0
        %v1884 = vadd.f32 %v1852, 0.0
        %v1885 = vsel %vm1561, 1, 0
        %v1886 = vsel %vm1562, 1, 0
        %v1887 = vsel %vm1563, 1, 0
        %v1888 = vsel %vm1564, 1, 0
        %v1889 = vsel %vm1565, 1, 0
        %v1890 = vsel %vm1566, 1, 0
        %v1891 = vsel %vm1567, 1, 0
        %v1892 = vsel %vm1568, 1, 0
        %v1893 = vsel %vm1569, 1, 0
        %v1894 = vsel %vm1570, 1, 0
        %v1895 = vsel %vm1571, 1, 0
        %v1896 = vsel %vm1572, 1, 0
        %v1897 = vsel %vm1573, 1, 0
        %v1898 = vsel %vm1574, 1, 0
        %v1899 = vsel %vm1575, 1, 0
        %v1900 = vsel %vm1576, 1, 0
        %v1901 = vsel %vm1577, 1, 0
        %v1902 = vsel %vm1578, 1, 0
        %v1903 = vsel %vm1579, 1, 0
        %v1904 = vsel %vm1580, 1, 0
        %v1905 = vsel %vm1581, 1, 0
        %v1906 = vsel %vm1582, 1, 0
        %v1907 = vsel %vm1583, 1, 0
        %v1908 = vsel %vm1584, 1, 0
        %v1909 = vsel %vm1585, 1, 0
        %v1910 = vsel %vm1586, 1, 0
        %v1911 = vsel %vm1587, 1, 0
        %v1912 = vsel %vm1588, 1, 0
        %v1913 = vsel %vm1589, 1, 0
        %v1914 = vsel %vm1590, 1, 0
        %v1915 = vsel %vm1591, 1, 0
        %v1916 = vsel %vm1592, 1, 0
        %vm1917 = vcmp.eq.s32.totalorder %v1885, 1
        %vm1918 = vcmp.eq.s32.totalorder %v1886, 1
        %vm1919 = vcmp.eq.s32.totalorder %v1887, 1
        %vm1920 = vcmp.eq.s32.totalorder %v1888, 1
        %vm1921 = vcmp.eq.s32.totalorder %v1889, 1
        %vm1922 = vcmp.eq.s32.totalorder %v1890, 1
        %vm1923 = vcmp.eq.s32.totalorder %v1891, 1
        %vm1924 = vcmp.eq.s32.totalorder %v1892, 1
        %vm1925 = vcmp.eq.s32.totalorder %v1893, 1
        %vm1926 = vcmp.eq.s32.totalorder %v1894, 1
        %vm1927 = vcmp.eq.s32.totalorder %v1895, 1
        %vm1928 = vcmp.eq.s32.totalorder %v1896, 1
        %vm1929 = vcmp.eq.s32.totalorder %v1897, 1
        %vm1930 = vcmp.eq.s32.totalorder %v1898, 1
        %vm1931 = vcmp.eq.s32.totalorder %v1899, 1
        %vm1932 = vcmp.eq.s32.totalorder %v1900, 1
        %vm1933 = vcmp.eq.s32.totalorder %v1901, 1
        %vm1934 = vcmp.eq.s32.totalorder %v1902, 1
        %vm1935 = vcmp.eq.s32.totalorder %v1903, 1
        %vm1936 = vcmp.eq.s32.totalorder %v1904, 1
        %vm1937 = vcmp.eq.s32.totalorder %v1905, 1
        %vm1938 = vcmp.eq.s32.totalorder %v1906, 1
        %vm1939 = vcmp.eq.s32.totalorder %v1907, 1
        %vm1940 = vcmp.eq.s32.totalorder %v1908, 1
        %vm1941 = vcmp.eq.s32.totalorder %v1909, 1
        %vm1942 = vcmp.eq.s32.totalorder %v1910, 1
        %vm1943 = vcmp.eq.s32.totalorder %v1911, 1
        %vm1944 = vcmp.eq.s32.totalorder %v1912, 1
        %vm1945 = vcmp.eq.s32.totalorder %v1913, 1
        %vm1946 = vcmp.eq.s32.totalorder %v1914, 1
        %vm1947 = vcmp.eq.s32.totalorder %v1915, 1
        %vm1948 = vcmp.eq.s32.totalorder %v1916, 1
        %v1949 = vsel %vm1917, %v1691, 0.0
        %v1950 = vsel %vm1918, %v1690, 0.0
        %v1951 = vsel %vm1919, %v1689, 0.0
        %v1952 = vsel %vm1920, %v1688, 0.0
        %v1953 = vsel %vm1921, %v1687, 0.0
        %v1954 = vsel %vm1922, %v1686, 0.0
        %v1955 = vsel %vm1923, %v1685, 0.0
        %v1956 = vsel %vm1924, %v1684, 0.0
        %v1957 = vsel %vm1925, %v1683, 0.0
        %v1958 = vsel %vm1926, %v1682, 0.0
        %v1959 = vsel %vm1927, %v1681, 0.0
        %v1960 = vsel %vm1928, %v1680, 0.0
        %v1961 = vsel %vm1929, %v1679, 0.0
        %v1962 = vsel %vm1930, %v1678, 0.0
        %v1963 = vsel %vm1931, %v1677, 0.0
        %v1964 = vsel %vm1932, %v1676, 0.0
        %v1965 = vsel %vm1933, %v1675, 0.0
        %v1966 = vsel %vm1934, %v1674, 0.0
        %v1967 = vsel %vm1935, %v1673, 0.0
        %v1968 = vsel %vm1936, %v1672, 0.0
        %v1969 = vsel %vm1937, %v1671, 0.0
        %v1970 = vsel %vm1938, %v1670, 0.0
        %v1971 = vsel %vm1939, %v1669, 0.0
        %v1972 = vsel %vm1940, %v1668, 0.0
        %v1973 = vsel %vm1941, %v1667, 0.0
        %v1974 = vsel %vm1942, %v1666, 0.0
        %v1975 = vsel %vm1943, %v1665, 0.0
        %v1976 = vsel %vm1944, %v1664, 0.0
        %v1977 = vsel %vm1945, %v1663, 0.0
        %v1978 = vsel %vm1946, %v1662, 0.0
        %v1979 = vsel %vm1947, %v1661, 0.0
        %v1980 = vsel %vm1948, %v1660, 0.0
        %v1981 = vperm.slane %v1625, 3
        %v1982 = vmul.f32 %v1949, %v1981
        %v1983 = vmul.f32 %v1950, %v1981
        %v1984 = vmul.f32 %v1951, %v1981
        %v1985 = vmul.f32 %v1952, %v1981
        %v1986 = vmul.f32 %v1953, %v1981
        %v1987 = vmul.f32 %v1954, %v1981
        %v1988 = vmul.f32 %v1955, %v1981
        %v1989 = vmul.f32 %v1956, %v1981
        %v1990 = vmul.f32 %v1957, %v1981
        %v1991 = vmul.f32 %v1958, %v1981
        %v1992 = vmul.f32 %v1959, %v1981
        %v1993 = vmul.f32 %v1960, %v1981
        %v1994 = vmul.f32 %v1961, %v1981
        %v1995 = vmul.f32 %v1962, %v1981
        %v1996 = vmul.f32 %v1963, %v1981
        %v1997 = vmul.f32 %v1964, %v1981
        %v1998 = vmul.f32 %v1965, %v1981
        %v1999 = vmul.f32 %v1966, %v1981
        %v2000 = vmul.f32 %v1967, %v1981
        %v2001 = vmul.f32 %v1968, %v1981
        %v2002 = vmul.f32 %v1969, %v1981
        %v2003 = vmul.f32 %v1970, %v1981
        %v2004 = vmul.f32 %v1971, %v1981
        %v2005 = vmul.f32 %v1972, %v1981
        %v2006 = vmul.f32 %v1973, %v1981
        %v2007 = vmul.f32 %v1974, %v1981
        %v2008 = vmul.f32 %v1975, %v1981
        %v2009 = vmul.f32 %v1976, %v1981
        %v2010 = vmul.f32 %v1977, %v1981
        %v2011 = vmul.f32 %v1978, %v1981
        %v2012 = vmul.f32 %v1979, %v1981
        %v2013 = vmul.f32 %v1980, %v1981
        %v2014 = vadd.f32 %v1853, %v1982
        %v2015 = vadd.f32 %v1854, %v1983
        %v2016 = vadd.f32 %v1855, %v1984
        %v2017 = vadd.f32 %v1856, %v1985
        %v2018 = vadd.f32 %v1857, %v1986
        %v2019 = vadd.f32 %v1858, %v1987
        %v2020 = vadd.f32 %v1859, %v1988
        %v2021 = vadd.f32 %v1860, %v1989
        %v2022 = vadd.f32 %v1861, %v1990
        %v2023 = vadd.f32 %v1862, %v1991
        %v2024 = vadd.f32 %v1863, %v1992
        %v2025 = vadd.f32 %v1864, %v1993
        %v2026 = vadd.f32 %v1865, %v1994
        %v2027 = vadd.f32 %v1866, %v1995
        %v2028 = vadd.f32 %v1867, %v1996
        %v2029 = vadd.f32 %v1868, %v1997
        %v2030 = vadd.f32 %v1869, %v1998
        %v2031 = vadd.f32 %v1870, %v1999
        %v2032 = vadd.f32 %v1871, %v2000
        %v2033 = vadd.f32 %v1872, %v2001
        %v2034 = vadd.f32 %v1873, %v2002
        %v2035 = vadd.f32 %v1874, %v2003
        %v2036 = vadd.f32 %v1875, %v2004
        %v2037 = vadd.f32 %v1876, %v2005
        %v2038 = vadd.f32 %v1877, %v2006
        %v2039 = vadd.f32 %v1878, %v2007
        %v2040 = vadd.f32 %v1879, %v2008
        %v2041 = vadd.f32 %v1880, %v2009
        %v2042 = vadd.f32 %v1881, %v2010
        %v2043 = vadd.f32 %v1882, %v2011
        %v2044 = vadd.f32 %v1883, %v2012
        %v2045 = vadd.f32 %v1884, %v2013
        %vm2046 = vmand %vm1529, %vm1561
        %vm2047 = vmand %vm1530, %vm1562
        %vm2048 = vmand %vm1531, %vm1563
        %vm2049 = vmand %vm1532, %vm1564
        %vm2050 = vmand %vm1533, %vm1565
        %vm2051 = vmand %vm1534, %vm1566
        %vm2052 = vmand %vm1535, %vm1567
        %vm2053 = vmand %vm1536, %vm1568
        %vm2054 = vmand %vm1537, %vm1569
        %vm2055 = vmand %vm1538, %vm1570
        %vm2056 = vmand %vm1539, %vm1571
        %vm2057 = vmand %vm1540, %vm1572
        %vm2058 = vmand %vm1541, %vm1573
        %vm2059 = vmand %vm1542, %vm1574
        %vm2060 = vmand %vm1543, %vm1575
        %vm2061 = vmand %vm1544, %vm1576
        %vm2062 = vmand %vm1545, %vm1577
        %vm2063 = vmand %vm1546, %vm1578
        %vm2064 = vmand %vm1547, %vm1579
        %vm2065 = vmand %vm1548, %vm1580
        %vm2066 = vmand %vm1549, %vm1581
        %vm2067 = vmand %vm1550, %vm1582
        %vm2068 = vmand %vm1551, %vm1583
        %vm2069 = vmand %vm1552, %vm1584
        %vm2070 = vmand %vm1553, %vm1585
        %vm2071 = vmand %vm1554, %vm1586
        %vm2072 = vmand %vm1555, %vm1587
        %vm2073 = vmand %vm1556, %vm1588
        %vm2074 = vmand %vm1557, %vm1589
        %vm2075 = vmand %vm1558, %vm1590
        %vm2076 = vmand %vm1559, %vm1591
        %vm2077 = vmand %vm1560, %vm1592
        %v2078 = vsel %vm2046, 1, 0
        %v2079 = vsel %vm2047, 1, 0
        %v2080 = vsel %vm2048, 1, 0
        %v2081 = vsel %vm2049, 1, 0
        %v2082 = vsel %vm2050, 1, 0
        %v2083 = vsel %vm2051, 1, 0
        %v2084 = vsel %vm2052, 1, 0
        %v2085 = vsel %vm2053, 1, 0
        %v2086 = vsel %vm2054, 1, 0
        %v2087 = vsel %vm2055, 1, 0
        %v2088 = vsel %vm2056, 1, 0
        %v2089 = vsel %vm2057, 1, 0
        %v2090 = vsel %vm2058, 1, 0
        %v2091 = vsel %vm2059, 1, 0
        %v2092 = vsel %vm2060, 1, 0
        %v2093 = vsel %vm2061, 1, 0
        %v2094 = vsel %vm2062, 1, 0
        %v2095 = vsel %vm2063, 1, 0
        %v2096 = vsel %vm2064, 1, 0
        %v2097 = vsel %vm2065, 1, 0
        %v2098 = vsel %vm2066, 1, 0
        %v2099 = vsel %vm2067, 1, 0
        %v2100 = vsel %vm2068, 1, 0
        %v2101 = vsel %vm2069, 1, 0
        %v2102 = vsel %vm2070, 1, 0
        %v2103 = vsel %vm2071, 1, 0
        %v2104 = vsel %vm2072, 1, 0
        %v2105 = vsel %vm2073, 1, 0
        %v2106 = vsel %vm2074, 1, 0
        %v2107 = vsel %vm2075, 1, 0
        %v2108 = vsel %vm2076, 1, 0
        %v2109 = vsel %vm2077, 1, 0
        %vm2110 = vcmp.eq.s32.totalorder %v2078, 1
        %vm2111 = vcmp.eq.s32.totalorder %v2079, 1
        %vm2112 = vcmp.eq.s32.totalorder %v2080, 1
        %vm2113 = vcmp.eq.s32.totalorder %v2081, 1
        %vm2114 = vcmp.eq.s32.totalorder %v2082, 1
        %vm2115 = vcmp.eq.s32.totalorder %v2083, 1
        %vm2116 = vcmp.eq.s32.totalorder %v2084, 1
        %vm2117 = vcmp.eq.s32.totalorder %v2085, 1
        %vm2118 = vcmp.eq.s32.totalorder %v2086, 1
        %vm2119 = vcmp.eq.s32.totalorder %v2087, 1
        %vm2120 = vcmp.eq.s32.totalorder %v2088, 1
        %vm2121 = vcmp.eq.s32.totalorder %v2089, 1
        %vm2122 = vcmp.eq.s32.totalorder %v2090, 1
        %vm2123 = vcmp.eq.s32.totalorder %v2091, 1
        %vm2124 = vcmp.eq.s32.totalorder %v2092, 1
        %vm2125 = vcmp.eq.s32.totalorder %v2093, 1
        %vm2126 = vcmp.eq.s32.totalorder %v2094, 1
        %vm2127 = vcmp.eq.s32.totalorder %v2095, 1
        %vm2128 = vcmp.eq.s32.totalorder %v2096, 1
        %vm2129 = vcmp.eq.s32.totalorder %v2097, 1
        %vm2130 = vcmp.eq.s32.totalorder %v2098, 1
        %vm2131 = vcmp.eq.s32.totalorder %v2099, 1
        %vm2132 = vcmp.eq.s32.totalorder %v2100, 1
        %vm2133 = vcmp.eq.s32.totalorder %v2101, 1
        %vm2134 = vcmp.eq.s32.totalorder %v2102, 1
        %vm2135 = vcmp.eq.s32.totalorder %v2103, 1
        %vm2136 = vcmp.eq.s32.totalorder %v2104, 1
        %vm2137 = vcmp.eq.s32.totalorder %v2105, 1
        %vm2138 = vcmp.eq.s32.totalorder %v2106, 1
        %vm2139 = vcmp.eq.s32.totalorder %v2107, 1
        %vm2140 = vcmp.eq.s32.totalorder %v2108, 1
        %vm2141 = vcmp.eq.s32.totalorder %v2109, 1
        %v2142 = vsel %vm2110, %v1689, 0.0
        %v2143 = vsel %vm2111, %v1688, 0.0
        %v2144 = vsel %vm2112, %v1687, 0.0
        %v2145 = vsel %vm2113, %v1686, 0.0
        %v2146 = vsel %vm2114, %v1685, 0.0
        %v2147 = vsel %vm2115, %v1684, 0.0
        %v2148 = vsel %vm2116, %v1683, 0.0
        %v2149 = vsel %vm2117, %v1682, 0.0
        %v2150 = vsel %vm2118, %v1681, 0.0
        %v2151 = vsel %vm2119, %v1680, 0.0
        %v2152 = vsel %vm2120, %v1679, 0.0
        %v2153 = vsel %vm2121, %v1678, 0.0
        %v2154 = vsel %vm2122, %v1677, 0.0
        %v2155 = vsel %vm2123, %v1676, 0.0
        %v2156 = vsel %vm2124, %v1675, 0.0
        %v2157 = vsel %vm2125, %v1674, 0.0
        %v2158 = vsel %vm2126, %v1673, 0.0
        %v2159 = vsel %vm2127, %v1672, 0.0
        %v2160 = vsel %vm2128, %v1671, 0.0
        %v2161 = vsel %vm2129, %v1670, 0.0
        %v2162 = vsel %vm2130, %v1669, 0.0
        %v2163 = vsel %vm2131, %v1668, 0.0
        %v2164 = vsel %vm2132, %v1667, 0.0
        %v2165 = vsel %vm2133, %v1666, 0.0
        %v2166 = vsel %vm2134, %v1665, 0.0
        %v2167 = vsel %vm2135, %v1664, 0.0
        %v2168 = vsel %vm2136, %v1663, 0.0
        %v2169 = vsel %vm2137, %v1662, 0.0
        %v2170 = vsel %vm2138, %v1661, 0.0
        %v2171 = vsel %vm2139, %v1660, 0.0
        %v2172 = vsel %vm2140, %v1691, 0.0
        %v2173 = vsel %vm2141, %v1690, 0.0
        %v2174 = vperm.slane %v1625, 6
        %v2175 = vmul.f32 %v2142, %v2174
        %v2176 = vmul.f32 %v2143, %v2174
        %v2177 = vmul.f32 %v2144, %v2174
        %v2178 = vmul.f32 %v2145, %v2174
        %v2179 = vmul.f32 %v2146, %v2174
        %v2180 = vmul.f32 %v2147, %v2174
        %v2181 = vmul.f32 %v2148, %v2174
        %v2182 = vmul.f32 %v2149, %v2174
        %v2183 = vmul.f32 %v2150, %v2174
        %v2184 = vmul.f32 %v2151, %v2174
        %v2185 = vmul.f32 %v2152, %v2174
        %v2186 = vmul.f32 %v2153, %v2174
        %v2187 = vmul.f32 %v2154, %v2174
        %v2188 = vmul.f32 %v2155, %v2174
        %v2189 = vmul.f32 %v2156, %v2174
        %v2190 = vmul.f32 %v2157, %v2174
        %v2191 = vmul.f32 %v2158, %v2174
        %v2192 = vmul.f32 %v2159, %v2174
        %v2193 = vmul.f32 %v2160, %v2174
        %v2194 = vmul.f32 %v2161, %v2174
        %v2195 = vmul.f32 %v2162, %v2174
        %v2196 = vmul.f32 %v2163, %v2174
        %v2197 = vmul.f32 %v2164, %v2174
        %v2198 = vmul.f32 %v2165, %v2174
        %v2199 = vmul.f32 %v2166, %v2174
        %v2200 = vmul.f32 %v2167, %v2174
        %v2201 = vmul.f32 %v2168, %v2174
        %v2202 = vmul.f32 %v2169, %v2174
        %v2203 = vmul.f32 %v2170, %v2174
        %v2204 = vmul.f32 %v2171, %v2174
        %v2205 = vmul.f32 %v2172, %v2174
        %v2206 = vmul.f32 %v2173, %v2174
        %v2207 = vadd.f32 %v2014, %v2175
        %v2208 = vadd.f32 %v2015, %v2176
        %v2209 = vadd.f32 %v2016, %v2177
        %v2210 = vadd.f32 %v2017, %v2178
        %v2211 = vadd.f32 %v2018, %v2179
        %v2212 = vadd.f32 %v2019, %v2180
        %v2213 = vadd.f32 %v2020, %v2181
        %v2214 = vadd.f32 %v2021, %v2182
        %v2215 = vadd.f32 %v2022, %v2183
        %v2216 = vadd.f32 %v2023, %v2184
        %v2217 = vadd.f32 %v2024, %v2185
        %v2218 = vadd.f32 %v2025, %v2186
        %v2219 = vadd.f32 %v2026, %v2187
        %v2220 = vadd.f32 %v2027, %v2188
        %v2221 = vadd.f32 %v2028, %v2189
        %v2222 = vadd.f32 %v2029, %v2190
        %v2223 = vadd.f32 %v2030, %v2191
        %v2224 = vadd.f32 %v2031, %v2192
        %v2225 = vadd.f32 %v2032, %v2193
        %v2226 = vadd.f32 %v2033, %v2194
        %v2227 = vadd.f32 %v2034, %v2195
        %v2228 = vadd.f32 %v2035, %v2196
        %v2229 = vadd.f32 %v2036, %v2197
        %v2230 = vadd.f32 %v2037, %v2198
        %v2231 = vadd.f32 %v2038, %v2199
        %v2232 = vadd.f32 %v2039, %v2200
        %v2233 = vadd.f32 %v2040, %v2201
        %v2234 = vadd.f32 %v2041, %v2202
        %v2235 = vadd.f32 %v2042, %v2203
        %v2236 = vadd.f32 %v2043, %v2204
        %v2237 = vadd.f32 %v2044, %v2205
        %v2238 = vadd.f32 %v2045, %v2206
        %v2239 = vsel %vm1497, 1, 0
        %v2240 = vsel %vm1498, 1, 0
        %v2241 = vsel %vm1499, 1, 0
        %v2242 = vsel %vm1500, 1, 0
        %v2243 = vsel %vm1501, 1, 0
        %v2244 = vsel %vm1502, 1, 0
        %v2245 = vsel %vm1503, 1, 0
        %v2246 = vsel %vm1504, 1, 0
        %v2247 = vsel %vm1505, 1, 0
        %v2248 = vsel %vm1506, 1, 0
        %v2249 = vsel %vm1507, 1, 0
        %v2250 = vsel %vm1508, 1, 0
        %v2251 = vsel %vm1509, 1, 0
        %v2252 = vsel %vm1510, 1, 0
        %v2253 = vsel %vm1511, 1, 0
        %v2254 = vsel %vm1512, 1, 0
        %v2255 = vsel %vm1513, 1, 0
        %v2256 = vsel %vm1514, 1, 0
        %v2257 = vsel %vm1515, 1, 0
        %v2258 = vsel %vm1516, 1, 0
        %v2259 = vsel %vm1517, 1, 0
        %v2260 = vsel %vm1518, 1, 0
        %v2261 = vsel %vm1519, 1, 0
        %v2262 = vsel %vm1520, 1, 0
        %v2263 = vsel %vm1521, 1, 0
        %v2264 = vsel %vm1522, 1, 0
        %v2265 = vsel %vm1523, 1, 0
        %v2266 = vsel %vm1524, 1, 0
        %v2267 = vsel %vm1525, 1, 0
        %v2268 = vsel %vm1526, 1, 0
        %v2269 = vsel %vm1527, 1, 0
        %v2270 = vsel %vm1528, 1, 0
        %vm2271 = vcmp.eq.s32.totalorder %v2239, 1
        %vm2272 = vcmp.eq.s32.totalorder %v2240, 1
        %vm2273 = vcmp.eq.s32.totalorder %v2241, 1
        %vm2274 = vcmp.eq.s32.totalorder %v2242, 1
        %vm2275 = vcmp.eq.s32.totalorder %v2243, 1
        %vm2276 = vcmp.eq.s32.totalorder %v2244, 1
        %vm2277 = vcmp.eq.s32.totalorder %v2245, 1
        %vm2278 = vcmp.eq.s32.totalorder %v2246, 1
        %vm2279 = vcmp.eq.s32.totalorder %v2247, 1
        %vm2280 = vcmp.eq.s32.totalorder %v2248, 1
        %vm2281 = vcmp.eq.s32.totalorder %v2249, 1
        %vm2282 = vcmp.eq.s32.totalorder %v2250, 1
        %vm2283 = vcmp.eq.s32.totalorder %v2251, 1
        %vm2284 = vcmp.eq.s32.totalorder %v2252, 1
        %vm2285 = vcmp.eq.s32.totalorder %v2253, 1
        %vm2286 = vcmp.eq.s32.totalorder %v2254, 1
        %vm2287 = vcmp.eq.s32.totalorder %v2255, 1
        %vm2288 = vcmp.eq.s32.totalorder %v2256, 1
        %vm2289 = vcmp.eq.s32.totalorder %v2257, 1
        %vm2290 = vcmp.eq.s32.totalorder %v2258, 1
        %vm2291 = vcmp.eq.s32.totalorder %v2259, 1
        %vm2292 = vcmp.eq.s32.totalorder %v2260, 1
        %vm2293 = vcmp.eq.s32.totalorder %v2261, 1
        %vm2294 = vcmp.eq.s32.totalorder %v2262, 1
        %vm2295 = vcmp.eq.s32.totalorder %v2263, 1
        %vm2296 = vcmp.eq.s32.totalorder %v2264, 1
        %vm2297 = vcmp.eq.s32.totalorder %v2265, 1
        %vm2298 = vcmp.eq.s32.totalorder %v2266, 1
        %vm2299 = vcmp.eq.s32.totalorder %v2267, 1
        %vm2300 = vcmp.eq.s32.totalorder %v2268, 1
        %vm2301 = vcmp.eq.s32.totalorder %v2269, 1
        %vm2302 = vcmp.eq.s32.totalorder %v2270, 1
        %v2303 = vsel %vm2271, %v1046, 0.0
        %v2304 = vsel %vm2272, %v1047, 0.0
        %v2305 = vsel %vm2273, %v1016, 0.0
        %v2306 = vsel %vm2274, %v1017, 0.0
        %v2307 = vsel %vm2275, %v1018, 0.0
        %v2308 = vsel %vm2276, %v1019, 0.0
        %v2309 = vsel %vm2277, %v1020, 0.0
        %v2310 = vsel %vm2278, %v1021, 0.0
        %v2311 = vsel %vm2279, %v1022, 0.0
        %v2312 = vsel %vm2280, %v1023, 0.0
        %v2313 = vsel %vm2281, %v1024, 0.0
        %v2314 = vsel %vm2282, %v1025, 0.0
        %v2315 = vsel %vm2283, %v1026, 0.0
        %v2316 = vsel %vm2284, %v1027, 0.0
        %v2317 = vsel %vm2285, %v1028, 0.0
        %v2318 = vsel %vm2286, %v1029, 0.0
        %v2319 = vsel %vm2287, %v1030, 0.0
        %v2320 = vsel %vm2288, %v1031, 0.0
        %v2321 = vsel %vm2289, %v1032, 0.0
        %v2322 = vsel %vm2290, %v1033, 0.0
        %v2323 = vsel %vm2291, %v1034, 0.0
        %v2324 = vsel %vm2292, %v1035, 0.0
        %v2325 = vsel %vm2293, %v1036, 0.0
        %v2326 = vsel %vm2294, %v1037, 0.0
        %v2327 = vsel %vm2295, %v1038, 0.0
        %v2328 = vsel %vm2296, %v1039, 0.0
        %v2329 = vsel %vm2297, %v1040, 0.0
        %v2330 = vsel %vm2298, %v1041, 0.0
        %v2331 = vsel %vm2299, %v1042, 0.0
        %v2332 = vsel %vm2300, %v1043, 0.0
        %v2333 = vsel %vm2301, %v1044, 0.0
        %v2334 = vsel %vm2302, %v1045, 0.0
        %v2335 = vperm.slane %v1625, 1
        %v2336 = vmul.f32 %v2303, %v2335
        %v2337 = vmul.f32 %v2304, %v2335
        %v2338 = vmul.f32 %v2305, %v2335
        %v2339 = vmul.f32 %v2306, %v2335
        %v2340 = vmul.f32 %v2307, %v2335
        %v2341 = vmul.f32 %v2308, %v2335
        %v2342 = vmul.f32 %v2309, %v2335
        %v2343 = vmul.f32 %v2310, %v2335
        %v2344 = vmul.f32 %v2311, %v2335
        %v2345 = vmul.f32 %v2312, %v2335
        %v2346 = vmul.f32 %v2313, %v2335
        %v2347 = vmul.f32 %v2314, %v2335
        %v2348 = vmul.f32 %v2315, %v2335
        %v2349 = vmul.f32 %v2316, %v2335
        %v2350 = vmul.f32 %v2317, %v2335
        %v2351 = vmul.f32 %v2318, %v2335
        %v2352 = vmul.f32 %v2319, %v2335
        %v2353 = vmul.f32 %v2320, %v2335
        %v2354 = vmul.f32 %v2321, %v2335
        %v2355 = vmul.f32 %v2322, %v2335
        %v2356 = vmul.f32 %v2323, %v2335
        %v2357 = vmul.f32 %v2324, %v2335
        %v2358 = vmul.f32 %v2325, %v2335
        %v2359 = vmul.f32 %v2326, %v2335
        %v2360 = vmul.f32 %v2327, %v2335
        %v2361 = vmul.f32 %v2328, %v2335
        %v2362 = vmul.f32 %v2329, %v2335
        %v2363 = vmul.f32 %v2330, %v2335
        %v2364 = vmul.f32 %v2331, %v2335
        %v2365 = vmul.f32 %v2332, %v2335
        %v2366 = vmul.f32 %v2333, %v2335
        %v2367 = vmul.f32 %v2334, %v2335
        %v2368 = vadd.f32 %v2207, %v2336
        %v2369 = vadd.f32 %v2208, %v2337
        %v2370 = vadd.f32 %v2209, %v2338
        %v2371 = vadd.f32 %v2210, %v2339
        %v2372 = vadd.f32 %v2211, %v2340
        %v2373 = vadd.f32 %v2212, %v2341
        %v2374 = vadd.f32 %v2213, %v2342
        %v2375 = vadd.f32 %v2214, %v2343
        %v2376 = vadd.f32 %v2215, %v2344
        %v2377 = vadd.f32 %v2216, %v2345
        %v2378 = vadd.f32 %v2217, %v2346
        %v2379 = vadd.f32 %v2218, %v2347
        %v2380 = vadd.f32 %v2219, %v2348
        %v2381 = vadd.f32 %v2220, %v2349
        %v2382 = vadd.f32 %v2221, %v2350
        %v2383 = vadd.f32 %v2222, %v2351
        %v2384 = vadd.f32 %v2223, %v2352
        %v2385 = vadd.f32 %v2224, %v2353
        %v2386 = vadd.f32 %v2225, %v2354
        %v2387 = vadd.f32 %v2226, %v2355
        %v2388 = vadd.f32 %v2227, %v2356
        %v2389 = vadd.f32 %v2228, %v2357
        %v2390 = vadd.f32 %v2229, %v2358
        %v2391 = vadd.f32 %v2230, %v2359
        %v2392 = vadd.f32 %v2231, %v2360
        %v2393 = vadd.f32 %v2232, %v2361
        %v2394 = vadd.f32 %v2233, %v2362
        %v2395 = vadd.f32 %v2234, %v2363
        %v2396 = vadd.f32 %v2235, %v2364
        %v2397 = vadd.f32 %v2236, %v2365
        %v2398 = vadd.f32 %v2237, %v2366
        %v2399 = vadd.f32 %v2238, %v2367
        %v2400 = vperm.slane %v1625, 4
        %v2401 = vmul.f32 %v1016, %v2400
        %v2402 = vmul.f32 %v1017, %v2400
        %v2403 = vmul.f32 %v1018, %v2400
        %v2404 = vmul.f32 %v1019, %v2400
        %v2405 = vmul.f32 %v1020, %v2400
        %v2406 = vmul.f32 %v1021, %v2400
        %v2407 = vmul.f32 %v1022, %v2400
        %v2408 = vmul.f32 %v1023, %v2400
        %v2409 = vmul.f32 %v1024, %v2400
        %v2410 = vmul.f32 %v1025, %v2400
        %v2411 = vmul.f32 %v1026, %v2400
        %v2412 = vmul.f32 %v1027, %v2400
        %v2413 = vmul.f32 %v1028, %v2400
        %v2414 = vmul.f32 %v1029, %v2400
        %v2415 = vmul.f32 %v1030, %v2400
        %v2416 = vmul.f32 %v1031, %v2400
        %v2417 = vmul.f32 %v1032, %v2400
        %v2418 = vmul.f32 %v1033, %v2400
        %v2419 = vmul.f32 %v1034, %v2400
        %v2420 = vmul.f32 %v1035, %v2400
        %v2421 = vmul.f32 %v1036, %v2400
        %v2422 = vmul.f32 %v1037, %v2400
        %v2423 = vmul.f32 %v1038, %v2400
        %v2424 = vmul.f32 %v1039, %v2400
        %v2425 = vmul.f32 %v1040, %v2400
        %v2426 = vmul.f32 %v1041, %v2400
        %v2427 = vmul.f32 %v1042, %v2400
        %v2428 = vmul.f32 %v1043, %v2400
        %v2429 = vmul.f32 %v1044, %v2400
        %v2430 = vmul.f32 %v1045, %v2400
        %v2431 = vmul.f32 %v1046, %v2400
        %v2432 = vmul.f32 %v1047, %v2400
        %v2433 = vadd.f32 %v2368, %v2401
        %v2434 = vadd.f32 %v2369, %v2402
        %v2435 = vadd.f32 %v2370, %v2403
        %v2436 = vadd.f32 %v2371, %v2404
        %v2437 = vadd.f32 %v2372, %v2405
        %v2438 = vadd.f32 %v2373, %v2406
        %v2439 = vadd.f32 %v2374, %v2407
        %v2440 = vadd.f32 %v2375, %v2408
        %v2441 = vadd.f32 %v2376, %v2409
        %v2442 = vadd.f32 %v2377, %v2410
        %v2443 = vadd.f32 %v2378, %v2411
        %v2444 = vadd.f32 %v2379, %v2412
        %v2445 = vadd.f32 %v2380, %v2413
        %v2446 = vadd.f32 %v2381, %v2414
        %v2447 = vadd.f32 %v2382, %v2415
        %v2448 = vadd.f32 %v2383, %v2416
        %v2449 = vadd.f32 %v2384, %v2417
        %v2450 = vadd.f32 %v2385, %v2418
        %v2451 = vadd.f32 %v2386, %v2419
        %v2452 = vadd.f32 %v2387, %v2420
        %v2453 = vadd.f32 %v2388, %v2421
        %v2454 = vadd.f32 %v2389, %v2422
        %v2455 = vadd.f32 %v2390, %v2423
        %v2456 = vadd.f32 %v2391, %v2424
        %v2457 = vadd.f32 %v2392, %v2425
        %v2458 = vadd.f32 %v2393, %v2426
        %v2459 = vadd.f32 %v2394, %v2427
        %v2460 = vadd.f32 %v2395, %v2428
        %v2461 = vadd.f32 %v2396, %v2429
        %v2462 = vadd.f32 %v2397, %v2430
        %v2463 = vadd.f32 %v2398, %v2431
        %v2464 = vadd.f32 %v2399, %v2432
        %v2465 = vsel %vm1529, 1, 0
        %v2466 = vsel %vm1530, 1, 0
        %v2467 = vsel %vm1531, 1, 0
        %v2468 = vsel %vm1532, 1, 0
        %v2469 = vsel %vm1533, 1, 0
        %v2470 = vsel %vm1534, 1, 0
        %v2471 = vsel %vm1535, 1, 0
        %v2472 = vsel %vm1536, 1, 0
        %v2473 = vsel %vm1537, 1, 0
        %v2474 = vsel %vm1538, 1, 0
        %v2475 = vsel %vm1539, 1, 0
        %v2476 = vsel %vm1540, 1, 0
        %v2477 = vsel %vm1541, 1, 0
        %v2478 = vsel %vm1542, 1, 0
        %v2479 = vsel %vm1543, 1, 0
        %v2480 = vsel %vm1544, 1, 0
        %v2481 = vsel %vm1545, 1, 0
        %v2482 = vsel %vm1546, 1, 0
        %v2483 = vsel %vm1547, 1, 0
        %v2484 = vsel %vm1548, 1, 0
        %v2485 = vsel %vm1549, 1, 0
        %v2486 = vsel %vm1550, 1, 0
        %v2487 = vsel %vm1551, 1, 0
        %v2488 = vsel %vm1552, 1, 0
        %v2489 = vsel %vm1553, 1, 0
        %v2490 = vsel %vm1554, 1, 0
        %v2491 = vsel %vm1555, 1, 0
        %v2492 = vsel %vm1556, 1, 0
        %v2493 = vsel %vm1557, 1, 0
        %v2494 = vsel %vm1558, 1, 0
        %v2495 = vsel %vm1559, 1, 0
        %v2496 = vsel %vm1560, 1, 0
        %vm2497 = vcmp.eq.s32.totalorder %v2465, 1
        %vm2498 = vcmp.eq.s32.totalorder %v2466, 1
        %vm2499 = vcmp.eq.s32.totalorder %v2467, 1
        %vm2500 = vcmp.eq.s32.totalorder %v2468, 1
        %vm2501 = vcmp.eq.s32.totalorder %v2469, 1
        %vm2502 = vcmp.eq.s32.totalorder %v2470, 1
        %vm2503 = vcmp.eq.s32.totalorder %v2471, 1
        %vm2504 = vcmp.eq.s32.totalorder %v2472, 1
        %vm2505 = vcmp.eq.s32.totalorder %v2473, 1
        %vm2506 = vcmp.eq.s32.totalorder %v2474, 1
        %vm2507 = vcmp.eq.s32.totalorder %v2475, 1
        %vm2508 = vcmp.eq.s32.totalorder %v2476, 1
        %vm2509 = vcmp.eq.s32.totalorder %v2477, 1
        %vm2510 = vcmp.eq.s32.totalorder %v2478, 1
        %vm2511 = vcmp.eq.s32.totalorder %v2479, 1
        %vm2512 = vcmp.eq.s32.totalorder %v2480, 1
        %vm2513 = vcmp.eq.s32.totalorder %v2481, 1
        %vm2514 = vcmp.eq.s32.totalorder %v2482, 1
        %vm2515 = vcmp.eq.s32.totalorder %v2483, 1
        %vm2516 = vcmp.eq.s32.totalorder %v2484, 1
        %vm2517 = vcmp.eq.s32.totalorder %v2485, 1
        %vm2518 = vcmp.eq.s32.totalorder %v2486, 1
        %vm2519 = vcmp.eq.s32.totalorder %v2487, 1
        %vm2520 = vcmp.eq.s32.totalorder %v2488, 1
        %vm2521 = vcmp.eq.s32.totalorder %v2489, 1
        %vm2522 = vcmp.eq.s32.totalorder %v2490, 1
        %vm2523 = vcmp.eq.s32.totalorder %v2491, 1
        %vm2524 = vcmp.eq.s32.totalorder %v2492, 1
        %vm2525 = vcmp.eq.s32.totalorder %v2493, 1
        %vm2526 = vcmp.eq.s32.totalorder %v2494, 1
        %vm2527 = vcmp.eq.s32.totalorder %v2495, 1
        %vm2528 = vcmp.eq.s32.totalorder %v2496, 1
        %v2529 = vsel %vm2497, %v1018, 0.0
        %v2530 = vsel %vm2498, %v1019, 0.0
        %v2531 = vsel %vm2499, %v1020, 0.0
        %v2532 = vsel %vm2500, %v1021, 0.0
        %v2533 = vsel %vm2501, %v1022, 0.0
        %v2534 = vsel %vm2502, %v1023, 0.0
        %v2535 = vsel %vm2503, %v1024, 0.0
        %v2536 = vsel %vm2504, %v1025, 0.0
        %v2537 = vsel %vm2505, %v1026, 0.0
        %v2538 = vsel %vm2506, %v1027, 0.0
        %v2539 = vsel %vm2507, %v1028, 0.0
        %v2540 = vsel %vm2508, %v1029, 0.0
        %v2541 = vsel %vm2509, %v1030, 0.0
        %v2542 = vsel %vm2510, %v1031, 0.0
        %v2543 = vsel %vm2511, %v1032, 0.0
        %v2544 = vsel %vm2512, %v1033, 0.0
        %v2545 = vsel %vm2513, %v1034, 0.0
        %v2546 = vsel %vm2514, %v1035, 0.0
        %v2547 = vsel %vm2515, %v1036, 0.0
        %v2548 = vsel %vm2516, %v1037, 0.0
        %v2549 = vsel %vm2517, %v1038, 0.0
        %v2550 = vsel %vm2518, %v1039, 0.0
        %v2551 = vsel %vm2519, %v1040, 0.0
        %v2552 = vsel %vm2520, %v1041, 0.0
        %v2553 = vsel %vm2521, %v1042, 0.0
        %v2554 = vsel %vm2522, %v1043, 0.0
        %v2555 = vsel %vm2523, %v1044, 0.0
        %v2556 = vsel %vm2524, %v1045, 0.0
        %v2557 = vsel %vm2525, %v1046, 0.0
        %v2558 = vsel %vm2526, %v1047, 0.0
        %v2559 = vsel %vm2527, %v1016, 0.0
        %v2560 = vsel %vm2528, %v1017, 0.0
        %v2561 = vperm.slane %v1625, 7
        %v2562 = vmul.f32 %v2529, %v2561
        %v2563 = vmul.f32 %v2530, %v2561
        %v2564 = vmul.f32 %v2531, %v2561
        %v2565 = vmul.f32 %v2532, %v2561
        %v2566 = vmul.f32 %v2533, %v2561
        %v2567 = vmul.f32 %v2534, %v2561
        %v2568 = vmul.f32 %v2535, %v2561
        %v2569 = vmul.f32 %v2536, %v2561
        %v2570 = vmul.f32 %v2537, %v2561
        %v2571 = vmul.f32 %v2538, %v2561
        %v2572 = vmul.f32 %v2539, %v2561
        %v2573 = vmul.f32 %v2540, %v2561
        %v2574 = vmul.f32 %v2541, %v2561
        %v2575 = vmul.f32 %v2542, %v2561
        %v2576 = vmul.f32 %v2543, %v2561
        %v2577 = vmul.f32 %v2544, %v2561
        %v2578 = vmul.f32 %v2545, %v2561
        %v2579 = vmul.f32 %v2546, %v2561
        %v2580 = vmul.f32 %v2547, %v2561
        %v2581 = vmul.f32 %v2548, %v2561
        %v2582 = vmul.f32 %v2549, %v2561
        %v2583 = vmul.f32 %v2550, %v2561
        %v2584 = vmul.f32 %v2551, %v2561
        %v2585 = vmul.f32 %v2552, %v2561
        %v2586 = vmul.f32 %v2553, %v2561
        %v2587 = vmul.f32 %v2554, %v2561
        %v2588 = vmul.f32 %v2555, %v2561
        %v2589 = vmul.f32 %v2556, %v2561
        %v2590 = vmul.f32 %v2557, %v2561
        %v2591 = vmul.f32 %v2558, %v2561
        %v2592 = vmul.f32 %v2559, %v2561
        %v2593 = vmul.f32 %v2560, %v2561
        %v2594 = vadd.f32 %v2433, %v2562
        %v2595 = vadd.f32 %v2434, %v2563
        %v2596 = vadd.f32 %v2435, %v2564
        %v2597 = vadd.f32 %v2436, %v2565
        %v2598 = vadd.f32 %v2437, %v2566
        %v2599 = vadd.f32 %v2438, %v2567
        %v2600 = vadd.f32 %v2439, %v2568
        %v2601 = vadd.f32 %v2440, %v2569
        %v2602 = vadd.f32 %v2441, %v2570
        %v2603 = vadd.f32 %v2442, %v2571
        %v2604 = vadd.f32 %v2443, %v2572
        %v2605 = vadd.f32 %v2444, %v2573
        %v2606 = vadd.f32 %v2445, %v2574
        %v2607 = vadd.f32 %v2446, %v2575
        %v2608 = vadd.f32 %v2447, %v2576
        %v2609 = vadd.f32 %v2448, %v2577
        %v2610 = vadd.f32 %v2449, %v2578
        %v2611 = vadd.f32 %v2450, %v2579
        %v2612 = vadd.f32 %v2451, %v2580
        %v2613 = vadd.f32 %v2452, %v2581
        %v2614 = vadd.f32 %v2453, %v2582
        %v2615 = vadd.f32 %v2454, %v2583
        %v2616 = vadd.f32 %v2455, %v2584
        %v2617 = vadd.f32 %v2456, %v2585
        %v2618 = vadd.f32 %v2457, %v2586
        %v2619 = vadd.f32 %v2458, %v2587
        %v2620 = vadd.f32 %v2459, %v2588
        %v2621 = vadd.f32 %v2460, %v2589
        %v2622 = vadd.f32 %v2461, %v2590
        %v2623 = vadd.f32 %v2462, %v2591
        %v2624 = vadd.f32 %v2463, %v2592
        %v2625 = vadd.f32 %v2464, %v2593
        %v2626 = vrot.slane %v1016, 1
        %v2627 = vrot.slane %v1017, 1
        %v2628 = vrot.slane %v1018, 1
        %v2629 = vrot.slane %v1019, 1
        %v2630 = vrot.slane %v1020, 1
        %v2631 = vrot.slane %v1021, 1
        %v2632 = vrot.slane %v1022, 1
        %v2633 = vrot.slane %v1023, 1
        %v2634 = vrot.slane %v1024, 1
        %v2635 = vrot.slane %v1025, 1
        %v2636 = vrot.slane %v1026, 1
        %v2637 = vrot.slane %v1027, 1
        %v2638 = vrot.slane %v1028, 1
        %v2639 = vrot.slane %v1029, 1
        %v2640 = vrot.slane %v1030, 1
        %v2641 = vrot.slane %v1031, 1
        %v2642 = vrot.slane %v1032, 1
        %v2643 = vrot.slane %v1033, 1
        %v2644 = vrot.slane %v1034, 1
        %v2645 = vrot.slane %v1035, 1
        %v2646 = vrot.slane %v1036, 1
        %v2647 = vrot.slane %v1037, 1
        %v2648 = vrot.slane %v1038, 1
        %v2649 = vrot.slane %v1039, 1
        %v2650 = vrot.slane %v1040, 1
        %v2651 = vrot.slane %v1041, 1
        %v2652 = vrot.slane %v1042, 1
        %v2653 = vrot.slane %v1043, 1
        %v2654 = vrot.slane %v1044, 1
        %v2655 = vrot.slane %v1045, 1
        %v2656 = vrot.slane %v1046, 1
        %v2657 = vrot.slane %v1047, 1
        %vm2658 = vcmp.lt.s32.totalorder %v1049, 7
        %v2659 = vsel %vm2658, %v2656, %v2657
        %v2660 = vsel %vm2658, %v2655, %v2656
        %v2661 = vsel %vm2658, %v2654, %v2655
        %v2662 = vsel %vm2658, %v2653, %v2654
        %v2663 = vsel %vm2658, %v2652, %v2653
        %v2664 = vsel %vm2658, %v2651, %v2652
        %v2665 = vsel %vm2658, %v2650, %v2651
        %v2666 = vsel %vm2658, %v2649, %v2650
        %v2667 = vsel %vm2658, %v2648, %v2649
        %v2668 = vsel %vm2658, %v2647, %v2648
        %v2669 = vsel %vm2658, %v2646, %v2647
        %v2670 = vsel %vm2658, %v2645, %v2646
        %v2671 = vsel %vm2658, %v2644, %v2645
        %v2672 = vsel %vm2658, %v2643, %v2644
        %v2673 = vsel %vm2658, %v2642, %v2643
        %v2674 = vsel %vm2658, %v2641, %v2642
        %v2675 = vsel %vm2658, %v2640, %v2641
        %v2676 = vsel %vm2658, %v2639, %v2640
        %v2677 = vsel %vm2658, %v2638, %v2639
        %v2678 = vsel %vm2658, %v2637, %v2638
        %v2679 = vsel %vm2658, %v2636, %v2637
        %v2680 = vsel %vm2658, %v2635, %v2636
        %v2681 = vsel %vm2658, %v2634, %v2635
        %v2682 = vsel %vm2658, %v2633, %v2634
        %v2683 = vsel %vm2658, %v2632, %v2633
        %v2684 = vsel %vm2658, %v2631, %v2632
        %v2685 = vsel %vm2658, %v2630, %v2631
        %v2686 = vsel %vm2658, %v2629, %v2630
        %v2687 = vsel %vm2658, %v2628, %v2629
        %v2688 = vsel %vm2658, %v2627, %v2628
        %v2689 = vsel %vm2658, %v2626, %v2627
        %v2690 = vsel %vm2658, %v2657, %v2626
        %vm2691 = vmand %vm1497, %vm1593
        %vm2692 = vmand %vm1498, %vm1594
        %vm2693 = vmand %vm1499, %vm1595
        %vm2694 = vmand %vm1500, %vm1596
        %vm2695 = vmand %vm1501, %vm1597
        %vm2696 = vmand %vm1502, %vm1598
        %vm2697 = vmand %vm1503, %vm1599
        %vm2698 = vmand %vm1504, %vm1600
        %vm2699 = vmand %vm1505, %vm1601
        %vm2700 = vmand %vm1506, %vm1602
        %vm2701 = vmand %vm1507, %vm1603
        %vm2702 = vmand %vm1508, %vm1604
        %vm2703 = vmand %vm1509, %vm1605
        %vm2704 = vmand %vm1510, %vm1606
        %vm2705 = vmand %vm1511, %vm1607
        %vm2706 = vmand %vm1512, %vm1608
        %vm2707 = vmand %vm1513, %vm1609
        %vm2708 = vmand %vm1514, %vm1610
        %vm2709 = vmand %vm1515, %vm1611
        %vm2710 = vmand %vm1516, %vm1612
        %vm2711 = vmand %vm1517, %vm1613
        %vm2712 = vmand %vm1518, %vm1614
        %vm2713 = vmand %vm1519, %vm1615
        %vm2714 = vmand %vm1520, %vm1616
        %vm2715 = vmand %vm1521, %vm1617
        %vm2716 = vmand %vm1522, %vm1618
        %vm2717 = vmand %vm1523, %vm1619
        %vm2718 = vmand %vm1524, %vm1620
        %vm2719 = vmand %vm1525, %vm1621
        %vm2720 = vmand %vm1526, %vm1622
        %vm2721 = vmand %vm1527, %vm1623
        %vm2722 = vmand %vm1528, %vm1624
        %v2723 = vsel %vm2691, 1, 0
        %v2724 = vsel %vm2692, 1, 0
        %v2725 = vsel %vm2693, 1, 0
        %v2726 = vsel %vm2694, 1, 0
        %v2727 = vsel %vm2695, 1, 0
        %v2728 = vsel %vm2696, 1, 0
        %v2729 = vsel %vm2697, 1, 0
        %v2730 = vsel %vm2698, 1, 0
        %v2731 = vsel %vm2699, 1, 0
        %v2732 = vsel %vm2700, 1, 0
        %v2733 = vsel %vm2701, 1, 0
        %v2734 = vsel %vm2702, 1, 0
        %v2735 = vsel %vm2703, 1, 0
        %v2736 = vsel %vm2704, 1, 0
        %v2737 = vsel %vm2705, 1, 0
        %v2738 = vsel %vm2706, 1, 0
        %v2739 = vsel %vm2707, 1, 0
        %v2740 = vsel %vm2708, 1, 0
        %v2741 = vsel %vm2709, 1, 0
        %v2742 = vsel %vm2710, 1, 0
        %v2743 = vsel %vm2711, 1, 0
        %v2744 = vsel %vm2712, 1, 0
        %v2745 = vsel %vm2713, 1, 0
        %v2746 = vsel %vm2714, 1, 0
        %v2747 = vsel %vm2715, 1, 0
        %v2748 = vsel %vm2716, 1, 0
        %v2749 = vsel %vm2717, 1, 0
        %v2750 = vsel %vm2718, 1, 0
        %v2751 = vsel %vm2719, 1, 0
        %v2752 = vsel %vm2720, 1, 0
        %v2753 = vsel %vm2721, 1, 0
        %v2754 = vsel %vm2722, 1, 0
        %vm2755 = vcmp.eq.s32.totalorder %v2723, 1
        %vm2756 = vcmp.eq.s32.totalorder %v2724, 1
        %vm2757 = vcmp.eq.s32.totalorder %v2725, 1
        %vm2758 = vcmp.eq.s32.totalorder %v2726, 1
        %vm2759 = vcmp.eq.s32.totalorder %v2727, 1
        %vm2760 = vcmp.eq.s32.totalorder %v2728, 1
        %vm2761 = vcmp.eq.s32.totalorder %v2729, 1
        %vm2762 = vcmp.eq.s32.totalorder %v2730, 1
        %vm2763 = vcmp.eq.s32.totalorder %v2731, 1
        %vm2764 = vcmp.eq.s32.totalorder %v2732, 1
        %vm2765 = vcmp.eq.s32.totalorder %v2733, 1
        %vm2766 = vcmp.eq.s32.totalorder %v2734, 1
        %vm2767 = vcmp.eq.s32.totalorder %v2735, 1
        %vm2768 = vcmp.eq.s32.totalorder %v2736, 1
        %vm2769 = vcmp.eq.s32.totalorder %v2737, 1
        %vm2770 = vcmp.eq.s32.totalorder %v2738, 1
        %vm2771 = vcmp.eq.s32.totalorder %v2739, 1
        %vm2772 = vcmp.eq.s32.totalorder %v2740, 1
        %vm2773 = vcmp.eq.s32.totalorder %v2741, 1
        %vm2774 = vcmp.eq.s32.totalorder %v2742, 1
        %vm2775 = vcmp.eq.s32.totalorder %v2743, 1
        %vm2776 = vcmp.eq.s32.totalorder %v2744, 1
        %vm2777 = vcmp.eq.s32.totalorder %v2745, 1
        %vm2778 = vcmp.eq.s32.totalorder %v2746, 1
        %vm2779 = vcmp.eq.s32.totalorder %v2747, 1
        %vm2780 = vcmp.eq.s32.totalorder %v2748, 1
        %vm2781 = vcmp.eq.s32.totalorder %v2749, 1
        %vm2782 = vcmp.eq.s32.totalorder %v2750, 1
        %vm2783 = vcmp.eq.s32.totalorder %v2751, 1
        %vm2784 = vcmp.eq.s32.totalorder %v2752, 1
        %vm2785 = vcmp.eq.s32.totalorder %v2753, 1
        %vm2786 = vcmp.eq.s32.totalorder %v2754, 1
        %v2787 = vsel %vm2755, %v2659, 0.0
        %v2788 = vsel %vm2756, %v2690, 0.0
        %v2789 = vsel %vm2757, %v2689, 0.0
        %v2790 = vsel %vm2758, %v2688, 0.0
        %v2791 = vsel %vm2759, %v2687, 0.0
        %v2792 = vsel %vm2760, %v2686, 0.0
        %v2793 = vsel %vm2761, %v2685, 0.0
        %v2794 = vsel %vm2762, %v2684, 0.0
        %v2795 = vsel %vm2763, %v2683, 0.0
        %v2796 = vsel %vm2764, %v2682, 0.0
        %v2797 = vsel %vm2765, %v2681, 0.0
        %v2798 = vsel %vm2766, %v2680, 0.0
        %v2799 = vsel %vm2767, %v2679, 0.0
        %v2800 = vsel %vm2768, %v2678, 0.0
        %v2801 = vsel %vm2769, %v2677, 0.0
        %v2802 = vsel %vm2770, %v2676, 0.0
        %v2803 = vsel %vm2771, %v2675, 0.0
        %v2804 = vsel %vm2772, %v2674, 0.0
        %v2805 = vsel %vm2773, %v2673, 0.0
        %v2806 = vsel %vm2774, %v2672, 0.0
        %v2807 = vsel %vm2775, %v2671, 0.0
        %v2808 = vsel %vm2776, %v2670, 0.0
        %v2809 = vsel %vm2777, %v2669, 0.0
        %v2810 = vsel %vm2778, %v2668, 0.0
        %v2811 = vsel %vm2779, %v2667, 0.0
        %v2812 = vsel %vm2780, %v2666, 0.0
        %v2813 = vsel %vm2781, %v2665, 0.0
        %v2814 = vsel %vm2782, %v2664, 0.0
        %v2815 = vsel %vm2783, %v2663, 0.0
        %v2816 = vsel %vm2784, %v2662, 0.0
        %v2817 = vsel %vm2785, %v2661, 0.0
        %v2818 = vsel %vm2786, %v2660, 0.0
        %v2819 = vperm.slane %v1625, 2
        %v2820 = vmul.f32 %v2787, %v2819
        %v2821 = vmul.f32 %v2788, %v2819
        %v2822 = vmul.f32 %v2789, %v2819
        %v2823 = vmul.f32 %v2790, %v2819
        %v2824 = vmul.f32 %v2791, %v2819
        %v2825 = vmul.f32 %v2792, %v2819
        %v2826 = vmul.f32 %v2793, %v2819
        %v2827 = vmul.f32 %v2794, %v2819
        %v2828 = vmul.f32 %v2795, %v2819
        %v2829 = vmul.f32 %v2796, %v2819
        %v2830 = vmul.f32 %v2797, %v2819
        %v2831 = vmul.f32 %v2798, %v2819
        %v2832 = vmul.f32 %v2799, %v2819
        %v2833 = vmul.f32 %v2800, %v2819
        %v2834 = vmul.f32 %v2801, %v2819
        %v2835 = vmul.f32 %v2802, %v2819
        %v2836 = vmul.f32 %v2803, %v2819
        %v2837 = vmul.f32 %v2804, %v2819
        %v2838 = vmul.f32 %v2805, %v2819
        %v2839 = vmul.f32 %v2806, %v2819
        %v2840 = vmul.f32 %v2807, %v2819
        %v2841 = vmul.f32 %v2808, %v2819
        %v2842 = vmul.f32 %v2809, %v2819
        %v2843 = vmul.f32 %v2810, %v2819
        %v2844 = vmul.f32 %v2811, %v2819
        %v2845 = vmul.f32 %v2812, %v2819
        %v2846 = vmul.f32 %v2813, %v2819
        %v2847 = vmul.f32 %v2814, %v2819
        %v2848 = vmul.f32 %v2815, %v2819
        %v2849 = vmul.f32 %v2816, %v2819
        %v2850 = vmul.f32 %v2817, %v2819
        %v2851 = vmul.f32 %v2818, %v2819
        %v2852 = vadd.f32 %v2594, %v2820
        %v2853 = vadd.f32 %v2595, %v2821
        %v2854 = vadd.f32 %v2596, %v2822
        %v2855 = vadd.f32 %v2597, %v2823
        %v2856 = vadd.f32 %v2598, %v2824
        %v2857 = vadd.f32 %v2599, %v2825
        %v2858 = vadd.f32 %v2600, %v2826
        %v2859 = vadd.f32 %v2601, %v2827
        %v2860 = vadd.f32 %v2602, %v2828
        %v2861 = vadd.f32 %v2603, %v2829
        %v2862 = vadd.f32 %v2604, %v2830
        %v2863 = vadd.f32 %v2605, %v2831
        %v2864 = vadd.f32 %v2606, %v2832
        %v2865 = vadd.f32 %v2607, %v2833
        %v2866 = vadd.f32 %v2608, %v2834
        %v2867 = vadd.f32 %v2609, %v2835
        %v2868 = vadd.f32 %v2610, %v2836
        %v2869 = vadd.f32 %v2611, %v2837
        %v2870 = vadd.f32 %v2612, %v2838
        %v2871 = vadd.f32 %v2613, %v2839
        %v2872 = vadd.f32 %v2614, %v2840
        %v2873 = vadd.f32 %v2615, %v2841
        %v2874 = vadd.f32 %v2616, %v2842
        %v2875 = vadd.f32 %v2617, %v2843
        %v2876 = vadd.f32 %v2618, %v2844
        %v2877 = vadd.f32 %v2619, %v2845
        %v2878 = vadd.f32 %v2620, %v2846
        %v2879 = vadd.f32 %v2621, %v2847
        %v2880 = vadd.f32 %v2622, %v2848
        %v2881 = vadd.f32 %v2623, %v2849
        %v2882 = vadd.f32 %v2624, %v2850
        %v2883 = vadd.f32 %v2625, %v2851
        %v2884 = vsel %vm1593, 1, 0
        %v2885 = vsel %vm1594, 1, 0
        %v2886 = vsel %vm1595, 1, 0
        %v2887 = vsel %vm1596, 1, 0
        %v2888 = vsel %vm1597, 1, 0
        %v2889 = vsel %vm1598, 1, 0
        %v2890 = vsel %vm1599, 1, 0
        %v2891 = vsel %vm1600, 1, 0
        %v2892 = vsel %vm1601, 1, 0
        %v2893 = vsel %vm1602, 1, 0
        %v2894 = vsel %vm1603, 1, 0
        %v2895 = vsel %vm1604, 1, 0
        %v2896 = vsel %vm1605, 1, 0
        %v2897 = vsel %vm1606, 1, 0
        %v2898 = vsel %vm1607, 1, 0
        %v2899 = vsel %vm1608, 1, 0
        %v2900 = vsel %vm1609, 1, 0
        %v2901 = vsel %vm1610, 1, 0
        %v2902 = vsel %vm1611, 1, 0
        %v2903 = vsel %vm1612, 1, 0
        %v2904 = vsel %vm1613, 1, 0
        %v2905 = vsel %vm1614, 1, 0
        %v2906 = vsel %vm1615, 1, 0
        %v2907 = vsel %vm1616, 1, 0
        %v2908 = vsel %vm1617, 1, 0
        %v2909 = vsel %vm1618, 1, 0
        %v2910 = vsel %vm1619, 1, 0
        %v2911 = vsel %vm1620, 1, 0
        %v2912 = vsel %vm1621, 1, 0
        %v2913 = vsel %vm1622, 1, 0
        %v2914 = vsel %vm1623, 1, 0
        %v2915 = vsel %vm1624, 1, 0
        %vm2916 = vcmp.eq.s32.totalorder %v2884, 1
        %vm2917 = vcmp.eq.s32.totalorder %v2885, 1
        %vm2918 = vcmp.eq.s32.totalorder %v2886, 1
        %vm2919 = vcmp.eq.s32.totalorder %v2887, 1
        %vm2920 = vcmp.eq.s32.totalorder %v2888, 1
        %vm2921 = vcmp.eq.s32.totalorder %v2889, 1
        %vm2922 = vcmp.eq.s32.totalorder %v2890, 1
        %vm2923 = vcmp.eq.s32.totalorder %v2891, 1
        %vm2924 = vcmp.eq.s32.totalorder %v2892, 1
        %vm2925 = vcmp.eq.s32.totalorder %v2893, 1
        %vm2926 = vcmp.eq.s32.totalorder %v2894, 1
        %vm2927 = vcmp.eq.s32.totalorder %v2895, 1
        %vm2928 = vcmp.eq.s32.totalorder %v2896, 1
        %vm2929 = vcmp.eq.s32.totalorder %v2897, 1
        %vm2930 = vcmp.eq.s32.totalorder %v2898, 1
        %vm2931 = vcmp.eq.s32.totalorder %v2899, 1
        %vm2932 = vcmp.eq.s32.totalorder %v2900, 1
        %vm2933 = vcmp.eq.s32.totalorder %v2901, 1
        %vm2934 = vcmp.eq.s32.totalorder %v2902, 1
        %vm2935 = vcmp.eq.s32.totalorder %v2903, 1
        %vm2936 = vcmp.eq.s32.totalorder %v2904, 1
        %vm2937 = vcmp.eq.s32.totalorder %v2905, 1
        %vm2938 = vcmp.eq.s32.totalorder %v2906, 1
        %vm2939 = vcmp.eq.s32.totalorder %v2907, 1
        %vm2940 = vcmp.eq.s32.totalorder %v2908, 1
        %vm2941 = vcmp.eq.s32.totalorder %v2909, 1
        %vm2942 = vcmp.eq.s32.totalorder %v2910, 1
        %vm2943 = vcmp.eq.s32.totalorder %v2911, 1
        %vm2944 = vcmp.eq.s32.totalorder %v2912, 1
        %vm2945 = vcmp.eq.s32.totalorder %v2913, 1
        %vm2946 = vcmp.eq.s32.totalorder %v2914, 1
        %vm2947 = vcmp.eq.s32.totalorder %v2915, 1
        %v2948 = vsel %vm2916, %v2689, 0.0
        %v2949 = vsel %vm2917, %v2688, 0.0
        %v2950 = vsel %vm2918, %v2687, 0.0
        %v2951 = vsel %vm2919, %v2686, 0.0
        %v2952 = vsel %vm2920, %v2685, 0.0
        %v2953 = vsel %vm2921, %v2684, 0.0
        %v2954 = vsel %vm2922, %v2683, 0.0
        %v2955 = vsel %vm2923, %v2682, 0.0
        %v2956 = vsel %vm2924, %v2681, 0.0
        %v2957 = vsel %vm2925, %v2680, 0.0
        %v2958 = vsel %vm2926, %v2679, 0.0
        %v2959 = vsel %vm2927, %v2678, 0.0
        %v2960 = vsel %vm2928, %v2677, 0.0
        %v2961 = vsel %vm2929, %v2676, 0.0
        %v2962 = vsel %vm2930, %v2675, 0.0
        %v2963 = vsel %vm2931, %v2674, 0.0
        %v2964 = vsel %vm2932, %v2673, 0.0
        %v2965 = vsel %vm2933, %v2672, 0.0
        %v2966 = vsel %vm2934, %v2671, 0.0
        %v2967 = vsel %vm2935, %v2670, 0.0
        %v2968 = vsel %vm2936, %v2669, 0.0
        %v2969 = vsel %vm2937, %v2668, 0.0
        %v2970 = vsel %vm2938, %v2667, 0.0
        %v2971 = vsel %vm2939, %v2666, 0.0
        %v2972 = vsel %vm2940, %v2665, 0.0
        %v2973 = vsel %vm2941, %v2664, 0.0
        %v2974 = vsel %vm2942, %v2663, 0.0
        %v2975 = vsel %vm2943, %v2662, 0.0
        %v2976 = vsel %vm2944, %v2661, 0.0
        %v2977 = vsel %vm2945, %v2660, 0.0
        %v2978 = vsel %vm2946, %v2659, 0.0
        %v2979 = vsel %vm2947, %v2690, 0.0
        %v2980 = vperm.slane %v1625, 5
        %v2981 = vmul.f32 %v2948, %v2980
        %v2982 = vmul.f32 %v2949, %v2980
        %v2983 = vmul.f32 %v2950, %v2980
        %v2984 = vmul.f32 %v2951, %v2980
        %v2985 = vmul.f32 %v2952, %v2980
        %v2986 = vmul.f32 %v2953, %v2980
        %v2987 = vmul.f32 %v2954, %v2980
        %v2988 = vmul.f32 %v2955, %v2980
        %v2989 = vmul.f32 %v2956, %v2980
        %v2990 = vmul.f32 %v2957, %v2980
        %v2991 = vmul.f32 %v2958, %v2980
        %v2992 = vmul.f32 %v2959, %v2980
        %v2993 = vmul.f32 %v2960, %v2980
        %v2994 = vmul.f32 %v2961, %v2980
        %v2995 = vmul.f32 %v2962, %v2980
        %v2996 = vmul.f32 %v2963, %v2980
        %v2997 = vmul.f32 %v2964, %v2980
        %v2998 = vmul.f32 %v2965, %v2980
        %v2999 = vmul.f32 %v2966, %v2980
        %v3000 = vmul.f32 %v2967, %v2980
        %v3001 = vmul.f32 %v2968, %v2980
        %v3002 = vmul.f32 %v2969, %v2980
        %v3003 = vmul.f32 %v2970, %v2980
        %v3004 = vmul.f32 %v2971, %v2980
        %v3005 = vmul.f32 %v2972, %v2980
        %v3006 = vmul.f32 %v2973, %v2980
        %v3007 = vmul.f32 %v2974, %v2980
        %v3008 = vmul.f32 %v2975, %v2980
        %v3009 = vmul.f32 %v2976, %v2980
        %v3010 = vmul.f32 %v2977, %v2980
        %v3011 = vmul.f32 %v2978, %v2980
        %v3012 = vmul.f32 %v2979, %v2980
        %v3013 = vadd.f32 %v2852, %v2981
        %v3014 = vadd.f32 %v2853, %v2982
        %v3015 = vadd.f32 %v2854, %v2983
        %v3016 = vadd.f32 %v2855, %v2984
        %v3017 = vadd.f32 %v2856, %v2985
        %v3018 = vadd.f32 %v2857, %v2986
        %v3019 = vadd.f32 %v2858, %v2987
        %v3020 = vadd.f32 %v2859, %v2988
        %v3021 = vadd.f32 %v2860, %v2989
        %v3022 = vadd.f32 %v2861, %v2990
        %v3023 = vadd.f32 %v2862, %v2991
        %v3024 = vadd.f32 %v2863, %v2992
        %v3025 = vadd.f32 %v2864, %v2993
        %v3026 = vadd.f32 %v2865, %v2994
        %v3027 = vadd.f32 %v2866, %v2995
        %v3028 = vadd.f32 %v2867, %v2996
        %v3029 = vadd.f32 %v2868, %v2997
        %v3030 = vadd.f32 %v2869, %v2998
        %v3031 = vadd.f32 %v2870, %v2999
        %v3032 = vadd.f32 %v2871, %v3000
        %v3033 = vadd.f32 %v2872, %v3001
        %v3034 = vadd.f32 %v2873, %v3002
        %v3035 = vadd.f32 %v2874, %v3003
        %v3036 = vadd.f32 %v2875, %v3004
        %v3037 = vadd.f32 %v2876, %v3005
        %v3038 = vadd.f32 %v2877, %v3006
        %v3039 = vadd.f32 %v2878, %v3007
        %v3040 = vadd.f32 %v2879, %v3008
        %v3041 = vadd.f32 %v2880, %v3009
        %v3042 = vadd.f32 %v2881, %v3010
        %v3043 = vadd.f32 %v2882, %v3011
        %v3044 = vadd.f32 %v2883, %v3012
        %vm3045 = vmand %vm1529, %vm1593
        %vm3046 = vmand %vm1530, %vm1594
        %vm3047 = vmand %vm1531, %vm1595
        %vm3048 = vmand %vm1532, %vm1596
        %vm3049 = vmand %vm1533, %vm1597
        %vm3050 = vmand %vm1534, %vm1598
        %vm3051 = vmand %vm1535, %vm1599
        %vm3052 = vmand %vm1536, %vm1600
        %vm3053 = vmand %vm1537, %vm1601
        %vm3054 = vmand %vm1538, %vm1602
        %vm3055 = vmand %vm1539, %vm1603
        %vm3056 = vmand %vm1540, %vm1604
        %vm3057 = vmand %vm1541, %vm1605
        %vm3058 = vmand %vm1542, %vm1606
        %vm3059 = vmand %vm1543, %vm1607
        %vm3060 = vmand %vm1544, %vm1608
        %vm3061 = vmand %vm1545, %vm1609
        %vm3062 = vmand %vm1546, %vm1610
        %vm3063 = vmand %vm1547, %vm1611
        %vm3064 = vmand %vm1548, %vm1612
        %vm3065 = vmand %vm1549, %vm1613
        %vm3066 = vmand %vm1550, %vm1614
        %vm3067 = vmand %vm1551, %vm1615
        %vm3068 = vmand %vm1552, %vm1616
        %vm3069 = vmand %vm1553, %vm1617
        %vm3070 = vmand %vm1554, %vm1618
        %vm3071 = vmand %vm1555, %vm1619
        %vm3072 = vmand %vm1556, %vm1620
        %vm3073 = vmand %vm1557, %vm1621
        %vm3074 = vmand %vm1558, %vm1622
        %vm3075 = vmand %vm1559, %vm1623
        %vm3076 = vmand %vm1560, %vm1624
        %v3077 = vsel %vm3045, 1, 0
        %v3078 = vsel %vm3046, 1, 0
        %v3079 = vsel %vm3047, 1, 0
        %v3080 = vsel %vm3048, 1, 0
        %v3081 = vsel %vm3049, 1, 0
        %v3082 = vsel %vm3050, 1, 0
        %v3083 = vsel %vm3051, 1, 0
        %v3084 = vsel %vm3052, 1, 0
        %v3085 = vsel %vm3053, 1, 0
        %v3086 = vsel %vm3054, 1, 0
        %v3087 = vsel %vm3055, 1, 0
        %v3088 = vsel %vm3056, 1, 0
        %v3089 = vsel %vm3057, 1, 0
        %v3090 = vsel %vm3058, 1, 0
        %v3091 = vsel %vm3059, 1, 0
        %v3092 = vsel %vm3060, 1, 0
        %v3093 = vsel %vm3061, 1, 0
        %v3094 = vsel %vm3062, 1, 0
        %v3095 = vsel %vm3063, 1, 0
        %v3096 = vsel %vm3064, 1, 0
        %v3097 = vsel %vm3065, 1, 0
        %v3098 = vsel %vm3066, 1, 0
        %v3099 = vsel %vm3067, 1, 0
        %v3100 = vsel %vm3068, 1, 0
        %v3101 = vsel %vm3069, 1, 0
        %v3102 = vsel %vm3070, 1, 0
        %v3103 = vsel %vm3071, 1, 0
        %v3104 = vsel %vm3072, 1, 0
        %v3105 = vsel %vm3073, 1, 0
        %v3106 = vsel %vm3074, 1, 0
        %v3107 = vsel %vm3075, 1, 0
        %v3108 = vsel %vm3076, 1, 0
        %vm3109 = vcmp.eq.s32.totalorder %v3077, 1
        %vm3110 = vcmp.eq.s32.totalorder %v3078, 1
        %vm3111 = vcmp.eq.s32.totalorder %v3079, 1
        %vm3112 = vcmp.eq.s32.totalorder %v3080, 1
        %vm3113 = vcmp.eq.s32.totalorder %v3081, 1
        %vm3114 = vcmp.eq.s32.totalorder %v3082, 1
        %vm3115 = vcmp.eq.s32.totalorder %v3083, 1
        %vm3116 = vcmp.eq.s32.totalorder %v3084, 1
        %vm3117 = vcmp.eq.s32.totalorder %v3085, 1
        %vm3118 = vcmp.eq.s32.totalorder %v3086, 1
        %vm3119 = vcmp.eq.s32.totalorder %v3087, 1
        %vm3120 = vcmp.eq.s32.totalorder %v3088, 1
        %vm3121 = vcmp.eq.s32.totalorder %v3089, 1
        %vm3122 = vcmp.eq.s32.totalorder %v3090, 1
        %vm3123 = vcmp.eq.s32.totalorder %v3091, 1
        %vm3124 = vcmp.eq.s32.totalorder %v3092, 1
        %vm3125 = vcmp.eq.s32.totalorder %v3093, 1
        %vm3126 = vcmp.eq.s32.totalorder %v3094, 1
        %vm3127 = vcmp.eq.s32.totalorder %v3095, 1
        %vm3128 = vcmp.eq.s32.totalorder %v3096, 1
        %vm3129 = vcmp.eq.s32.totalorder %v3097, 1
        %vm3130 = vcmp.eq.s32.totalorder %v3098, 1
        %vm3131 = vcmp.eq.s32.totalorder %v3099, 1
        %vm3132 = vcmp.eq.s32.totalorder %v3100, 1
        %vm3133 = vcmp.eq.s32.totalorder %v3101, 1
        %vm3134 = vcmp.eq.s32.totalorder %v3102, 1
        %vm3135 = vcmp.eq.s32.totalorder %v3103, 1
        %vm3136 = vcmp.eq.s32.totalorder %v3104, 1
        %vm3137 = vcmp.eq.s32.totalorder %v3105, 1
        %vm3138 = vcmp.eq.s32.totalorder %v3106, 1
        %vm3139 = vcmp.eq.s32.totalorder %v3107, 1
        %vm3140 = vcmp.eq.s32.totalorder %v3108, 1
        %v3141 = vsel %vm3109, %v2687, 0.0
        %v3142 = vsel %vm3110, %v2686, 0.0
        %v3143 = vsel %vm3111, %v2685, 0.0
        %v3144 = vsel %vm3112, %v2684, 0.0
        %v3145 = vsel %vm3113, %v2683, 0.0
        %v3146 = vsel %vm3114, %v2682, 0.0
        %v3147 = vsel %vm3115, %v2681, 0.0
        %v3148 = vsel %vm3116, %v2680, 0.0
        %v3149 = vsel %vm3117, %v2679, 0.0
        %v3150 = vsel %vm3118, %v2678, 0.0
        %v3151 = vsel %vm3119, %v2677, 0.0
        %v3152 = vsel %vm3120, %v2676, 0.0
        %v3153 = vsel %vm3121, %v2675, 0.0
        %v3154 = vsel %vm3122, %v2674, 0.0
        %v3155 = vsel %vm3123, %v2673, 0.0
        %v3156 = vsel %vm3124, %v2672, 0.0
        %v3157 = vsel %vm3125, %v2671, 0.0
        %v3158 = vsel %vm3126, %v2670, 0.0
        %v3159 = vsel %vm3127, %v2669, 0.0
        %v3160 = vsel %vm3128, %v2668, 0.0
        %v3161 = vsel %vm3129, %v2667, 0.0
        %v3162 = vsel %vm3130, %v2666, 0.0
        %v3163 = vsel %vm3131, %v2665, 0.0
        %v3164 = vsel %vm3132, %v2664, 0.0
        %v3165 = vsel %vm3133, %v2663, 0.0
        %v3166 = vsel %vm3134, %v2662, 0.0
        %v3167 = vsel %vm3135, %v2661, 0.0
        %v3168 = vsel %vm3136, %v2660, 0.0
        %v3169 = vsel %vm3137, %v2659, 0.0
        %v3170 = vsel %vm3138, %v2690, 0.0
        %v3171 = vsel %vm3139, %v2689, 0.0
        %v3172 = vsel %vm3140, %v2688, 0.0
        %v3173 = vperm.slane %v1626, 0
        %v3174 = vmul.f32 %v3141, %v3173
        %v3175 = vmul.f32 %v3142, %v3173
        %v3176 = vmul.f32 %v3143, %v3173
        %v3177 = vmul.f32 %v3144, %v3173
        %v3178 = vmul.f32 %v3145, %v3173
        %v3179 = vmul.f32 %v3146, %v3173
        %v3180 = vmul.f32 %v3147, %v3173
        %v3181 = vmul.f32 %v3148, %v3173
        %v3182 = vmul.f32 %v3149, %v3173
        %v3183 = vmul.f32 %v3150, %v3173
        %v3184 = vmul.f32 %v3151, %v3173
        %v3185 = vmul.f32 %v3152, %v3173
        %v3186 = vmul.f32 %v3153, %v3173
        %v3187 = vmul.f32 %v3154, %v3173
        %v3188 = vmul.f32 %v3155, %v3173
        %v3189 = vmul.f32 %v3156, %v3173
        %v3190 = vmul.f32 %v3157, %v3173
        %v3191 = vmul.f32 %v3158, %v3173
        %v3192 = vmul.f32 %v3159, %v3173
        %v3193 = vmul.f32 %v3160, %v3173
        %v3194 = vmul.f32 %v3161, %v3173
        %v3195 = vmul.f32 %v3162, %v3173
        %v3196 = vmul.f32 %v3163, %v3173
        %v3197 = vmul.f32 %v3164, %v3173
        %v3198 = vmul.f32 %v3165, %v3173
        %v3199 = vmul.f32 %v3166, %v3173
        %v3200 = vmul.f32 %v3167, %v3173
        %v3201 = vmul.f32 %v3168, %v3173
        %v3202 = vmul.f32 %v3169, %v3173
        %v3203 = vmul.f32 %v3170, %v3173
        %v3204 = vmul.f32 %v3171, %v3173
        %v3205 = vmul.f32 %v3172, %v3173
        %v3206 = vadd.f32 %v3013, %v3174
        %v3207 = vadd.f32 %v3014, %v3175
        %v3208 = vadd.f32 %v3015, %v3176
        %v3209 = vadd.f32 %v3016, %v3177
        %v3210 = vadd.f32 %v3017, %v3178
        %v3211 = vadd.f32 %v3018, %v3179
        %v3212 = vadd.f32 %v3019, %v3180
        %v3213 = vadd.f32 %v3020, %v3181
        %v3214 = vadd.f32 %v3021, %v3182
        %v3215 = vadd.f32 %v3022, %v3183
        %v3216 = vadd.f32 %v3023, %v3184
        %v3217 = vadd.f32 %v3024, %v3185
        %v3218 = vadd.f32 %v3025, %v3186
        %v3219 = vadd.f32 %v3026, %v3187
        %v3220 = vadd.f32 %v3027, %v3188
        %v3221 = vadd.f32 %v3028, %v3189
        %v3222 = vadd.f32 %v3029, %v3190
        %v3223 = vadd.f32 %v3030, %v3191
        %v3224 = vadd.f32 %v3031, %v3192
        %v3225 = vadd.f32 %v3032, %v3193
        %v3226 = vadd.f32 %v3033, %v3194
        %v3227 = vadd.f32 %v3034, %v3195
        %v3228 = vadd.f32 %v3035, %v3196
        %v3229 = vadd.f32 %v3036, %v3197
        %v3230 = vadd.f32 %v3037, %v3198
        %v3231 = vadd.f32 %v3038, %v3199
        %v3232 = vadd.f32 %v3039, %v3200
        %v3233 = vadd.f32 %v3040, %v3201
        %v3234 = vadd.f32 %v3041, %v3202
        %v3235 = vadd.f32 %v3042, %v3203
        %v3236 = vadd.f32 %v3043, %v3204
        %v3237 = vadd.f32 %v3044, %v3205
        %v3238 = vld [vmem:[%s480] sm:$0x1]
        %v3240 = vperm.slane %v3238, 0
        %v3242 = vadd.f32 %v3206, %v3240
        %v3243 = vadd.f32 %v3207, %v3240
        %v3244 = vadd.f32 %v3208, %v3240
        %v3245 = vadd.f32 %v3209, %v3240
        %v3246 = vadd.f32 %v3210, %v3240
        %v3247 = vadd.f32 %v3211, %v3240
        %v3248 = vadd.f32 %v3212, %v3240
        %v3249 = vadd.f32 %v3213, %v3240
        %v3250 = vadd.f32 %v3214, %v3240
        %v3251 = vadd.f32 %v3215, %v3240
        %v3252 = vadd.f32 %v3216, %v3240
        %v3253 = vadd.f32 %v3217, %v3240
        %v3254 = vadd.f32 %v3218, %v3240
        %v3255 = vadd.f32 %v3219, %v3240
        %v3256 = vadd.f32 %v3220, %v3240
        %v3257 = vadd.f32 %v3221, %v3240
        %v3258 = vadd.f32 %v3222, %v3240
        %v3259 = vadd.f32 %v3223, %v3240
        %v3260 = vadd.f32 %v3224, %v3240
        %v3261 = vadd.f32 %v3225, %v3240
        %v3262 = vadd.f32 %v3226, %v3240
        %v3263 = vadd.f32 %v3227, %v3240
        %v3264 = vadd.f32 %v3228, %v3240
        %v3265 = vadd.f32 %v3229, %v3240
        %v3266 = vadd.f32 %v3230, %v3240
        %v3267 = vadd.f32 %v3231, %v3240
        %v3268 = vadd.f32 %v3232, %v3240
        %v3269 = vadd.f32 %v3233, %v3240
        %v3270 = vadd.f32 %v3234, %v3240
        %v3271 = vadd.f32 %v3235, %v3240
        %v3272 = vadd.f32 %v3236, %v3240
        %v3273 = vadd.f32 %v3237, %v3240
        %v3274 = vpack.c.bf16 %v3243, %v3242
        %v3275 = vpack.c.bf16 %v3245, %v3244
        %v3276 = vpack.c.bf16 %v3247, %v3246
        %v3277 = vpack.c.bf16 %v3249, %v3248
        %v3278 = vpack.c.bf16 %v3251, %v3250
        %v3279 = vpack.c.bf16 %v3253, %v3252
        %v3280 = vpack.c.bf16 %v3255, %v3254
        %v3281 = vpack.c.bf16 %v3257, %v3256
        %v3282 = vpack.c.bf16 %v3259, %v3258
        %v3283 = vpack.c.bf16 %v3261, %v3260
        %v3284 = vpack.c.bf16 %v3263, %v3262
        %v3285 = vpack.c.bf16 %v3265, %v3264
        %v3286 = vpack.c.bf16 %v3267, %v3266
        %v3287 = vpack.c.bf16 %v3269, %v3268
        %v3288 = vpack.c.bf16 %v3271, %v3270
        %v3289 = vpack.c.bf16 %v3273, %v3272
        %v3290 = vld [vmem:[#allocation8] sm:$0xf]
        %v3291 = vld [vmem:[#allocation8 + $0x4] sm:$0xf]
        %v3292 = vld [vmem:[#allocation8 + $0x8] sm:$0xf]
        %v3293 = vld [vmem:[#allocation8 + $0xc] sm:$0xf]
        %v3294 = vld [vmem:[#allocation8 + $0x10] sm:$0xf]
        %v3295 = vld [vmem:[#allocation8 + $0x14] sm:$0xf]
        %v3296 = vld [vmem:[#allocation8 + $0x18] sm:$0xf]
        %v3297 = vld [vmem:[#allocation8 + $0x1c] sm:$0xf]
        %v3298 = vld [vmem:[#allocation8 + $0x20] sm:$0xf]
        %v3299 = vld [vmem:[#allocation8 + $0x24] sm:$0xf]
        %v3300 = vld [vmem:[#allocation8 + $0x28] sm:$0xf]
        %v3301 = vld [vmem:[#allocation8 + $0x2c] sm:$0xf]
        %v3302 = vld [vmem:[#allocation8 + $0x30] sm:$0xf]
        %v3303 = vld [vmem:[#allocation8 + $0x34] sm:$0xf]
        %v3304 = vld [vmem:[#allocation8 + $0x38] sm:$0xf]
        %v3305 = vld [vmem:[#allocation8 + $0x3c] sm:$0xf]
        %v3322 = vunpack.c.l.b16 %v3290
        %v3323 = vunpack.c.l.b16 %v3291
        %v3324 = vunpack.c.l.b16 %v3292
        %v3325 = vunpack.c.l.b16 %v3293
        %v3326 = vunpack.c.l.b16 %v3294
        %v3327 = vunpack.c.l.b16 %v3295
        %v3328 = vunpack.c.l.b16 %v3296
        %v3329 = vunpack.c.l.b16 %v3297
        %v3330 = vunpack.c.l.b16 %v3298
        %v3331 = vunpack.c.l.b16 %v3299
        %v3332 = vunpack.c.l.b16 %v3300
        %v3333 = vunpack.c.l.b16 %v3301
        %v3334 = vunpack.c.l.b16 %v3302
        %v3335 = vunpack.c.l.b16 %v3303
        %v3336 = vunpack.c.l.b16 %v3304
        %v3337 = vunpack.c.l.b16 %v3305
        %v3338 = vpack.c.b16 %v3323, %v3322
        %v3339 = vpack.c.b16 %v3325, %v3324
        %v3340 = vpack.c.b16 %v3327, %v3326
        %v3341 = vpack.c.b16 %v3329, %v3328
        %v3342 = vpack.c.b16 %v3331, %v3330
        %v3343 = vpack.c.b16 %v3333, %v3332
        %v3344 = vpack.c.b16 %v3335, %v3334
        %v3345 = vpack.c.b16 %v3337, %v3336
        %3354 = vmatpush.bf16.msra.mxu0 %v3345
        %3355 = vmatpush.bf16.msra.mxu0 %v3344
        %3356 = vmatpush.bf16.msra.mxu0 %v3343
        %3357 = vmatpush.bf16.msra.mxu0 %v3342
        %3358 = vmatpush.bf16.msra.mxu0 %v3341
        %3359 = vmatpush.bf16.msra.mxu0 %v3340
        %3360 = vmatpush.bf16.msra.mxu0 %v3339
        %3361 = vmatpush.bf16.msra.mxu0 %v3338
        %3362 = vmatmul.bf16.gmra.mxu0 %v3274
        %v3363 = vpop.f32.mrf.mxu0
        %v3364 = vadd.f32 0.0, %v3363
        %v3365 = vpop.f32.mrf.mxu0
        %v3366 = vadd.f32 0.0, %v3365
        %3367 = vmatmul.bf16.gmra.mxu0 %v3275
        %v3368 = vpop.f32.mrf.mxu0
        %v3369 = vadd.f32 0.0, %v3368
        %v3370 = vpop.f32.mrf.mxu0
        %v3371 = vadd.f32 0.0, %v3370
        %3372 = vmatmul.bf16.gmra.mxu0 %v3276
        %v3373 = vpop.f32.mrf.mxu0
        %v3374 = vadd.f32 0.0, %v3373
        %v3375 = vpop.f32.mrf.mxu0
        %v3376 = vadd.f32 0.0, %v3375
        %3377 = vmatmul.bf16.gmra.mxu0 %v3277
        %v3378 = vpop.f32.mrf.mxu0
        %v3379 = vadd.f32 0.0, %v3378
        %v3380 = vpop.f32.mrf.mxu0
        %v3381 = vadd.f32 0.0, %v3380
        %3382 = vmatmul.bf16.gmra.mxu0 %v3278
        %v3383 = vpop.f32.mrf.mxu0
        %v3384 = vadd.f32 0.0, %v3383
        %v3385 = vpop.f32.mrf.mxu0
        %v3386 = vadd.f32 0.0, %v3385
        %3387 = vmatmul.bf16.gmra.mxu0 %v3279
        %v3388 = vpop.f32.mrf.mxu0
        %v3389 = vadd.f32 0.0, %v3388
        %v3390 = vpop.f32.mrf.mxu0
        %v3391 = vadd.f32 0.0, %v3390
        %3392 = vmatmul.bf16.gmra.mxu0 %v3280
        %v3393 = vpop.f32.mrf.mxu0
        %v3394 = vadd.f32 0.0, %v3393
        %v3395 = vpop.f32.mrf.mxu0
        %v3396 = vadd.f32 0.0, %v3395
        %3397 = vmatmul.bf16.gmra.mxu0 %v3281
        %v3398 = vpop.f32.mrf.mxu0
        %v3399 = vadd.f32 0.0, %v3398
        %v3400 = vpop.f32.mrf.mxu0
        %v3401 = vadd.f32 0.0, %v3400
        %3402 = vmatmul.bf16.gmra.mxu0 %v3282
        %v3403 = vpop.f32.mrf.mxu0
        %v3404 = vadd.f32 0.0, %v3403
        %v3405 = vpop.f32.mrf.mxu0
        %v3406 = vadd.f32 0.0, %v3405
        %3407 = vmatmul.bf16.gmra.mxu0 %v3283
        %v3408 = vpop.f32.mrf.mxu0
        %v3409 = vadd.f32 0.0, %v3408
        %v3410 = vpop.f32.mrf.mxu0
        %v3411 = vadd.f32 0.0, %v3410
        %3412 = vmatmul.bf16.gmra.mxu0 %v3284
        %v3413 = vpop.f32.mrf.mxu0
        %v3414 = vadd.f32 0.0, %v3413
        %v3415 = vpop.f32.mrf.mxu0
        %v3416 = vadd.f32 0.0, %v3415
        %3417 = vmatmul.bf16.gmra.mxu0 %v3285
        %v3418 = vpop.f32.mrf.mxu0
        %v3419 = vadd.f32 0.0, %v3418
        %v3420 = vpop.f32.mrf.mxu0
        %v3421 = vadd.f32 0.0, %v3420
        %3422 = vmatmul.bf16.gmra.mxu0 %v3286
        %v3423 = vpop.f32.mrf.mxu0
        %v3424 = vadd.f32 0.0, %v3423
        %v3425 = vpop.f32.mrf.mxu0
        %v3426 = vadd.f32 0.0, %v3425
        %3427 = vmatmul.bf16.gmra.mxu0 %v3287
        %v3428 = vpop.f32.mrf.mxu0
        %v3429 = vadd.f32 0.0, %v3428
        %v3430 = vpop.f32.mrf.mxu0
        %v3431 = vadd.f32 0.0, %v3430
        %3432 = vmatmul.bf16.gmra.mxu0 %v3288
        %v3433 = vpop.f32.mrf.mxu0
        %v3434 = vadd.f32 0.0, %v3433
        %v3435 = vpop.f32.mrf.mxu0
        %v3436 = vadd.f32 0.0, %v3435
        %3437 = vmatmul.bf16.gmra.mxu0 %v3289
        %v3438 = vpop.f32.mrf.mxu0
        %v3439 = vadd.f32 0.0, %v3438
        %v3440 = vpop.f32.mrf.mxu0
        %v3441 = vadd.f32 0.0, %v3440
        %3442 = vdwg.mxu0
        %p3443 = scmp.eq.s32.totalorder %s33, 0
        // Predicated region
        $region77: #{tpu_custom_call.1} parent=55 // pred_check
          %p3444 = pneg %p3443
        $region78: #{tpu_custom_call.1} parent=55 // pred_check_branch
          %3446 = sbr.rel (%p3444) target = $region80
        $region79: #{tpu_custom_call.1} parent=55 // pred_region
          %v3447 = vld [vmem:[#allocation10] sm:$0xf]
          %v3448 = vld [vmem:[#allocation10 + $0x4] sm:$0xf]
          %v3449 = vld [vmem:[#allocation10 + $0x8] sm:$0xf]
          %v3450 = vld [vmem:[#allocation10 + $0xc] sm:$0xf]
          %v3451 = vld [vmem:[#allocation10 + $0x10] sm:$0xf]
          %v3452 = vld [vmem:[#allocation10 + $0x14] sm:$0xf]
          %v3453 = vld [vmem:[#allocation10 + $0x18] sm:$0xf]
          %v3454 = vld [vmem:[#allocation10 + $0x1c] sm:$0xf]
          %v3455 = vld [vmem:[#allocation10 + $0x20] sm:$0xf]
          %v3456 = vld [vmem:[#allocation10 + $0x24] sm:$0xf]
          %v3457 = vld [vmem:[#allocation10 + $0x28] sm:$0xf]
          %v3458 = vld [vmem:[#allocation10 + $0x2c] sm:$0xf]
          %v3459 = vld [vmem:[#allocation10 + $0x30] sm:$0xf]
          %v3460 = vld [vmem:[#allocation10 + $0x34] sm:$0xf]
          %v3461 = vld [vmem:[#allocation10 + $0x38] sm:$0xf]
          %v3462 = vld [vmem:[#allocation10 + $0x3c] sm:$0xf]
          %v3463 = vld [vmem:[%s8] sm:$0x1]
          %v3465 = vperm.slane %v3463, 0
          %v3483 = vunpack.c.l.b16 %v3447
          %v3484 = vunpack.c.l.b16 %v3448
          %v3485 = vunpack.c.l.b16 %v3449
          %v3486 = vunpack.c.l.b16 %v3450
          %v3487 = vunpack.c.l.b16 %v3451
          %v3488 = vunpack.c.l.b16 %v3452
          %v3489 = vunpack.c.l.b16 %v3453
          %v3490 = vunpack.c.l.b16 %v3454
          %v3491 = vunpack.c.l.b16 %v3455
          %v3492 = vunpack.c.l.b16 %v3456
          %v3493 = vunpack.c.l.b16 %v3457
          %v3494 = vunpack.c.l.b16 %v3458
          %v3495 = vunpack.c.l.b16 %v3459
          %v3496 = vunpack.c.l.b16 %v3460
          %v3497 = vunpack.c.l.b16 %v3461
          %v3498 = vunpack.c.l.b16 %v3462
          %v3499 = vpack.c.b16 %v3484, %v3483
          %v3500 = vpack.c.b16 %v3486, %v3485
          %v3501 = vpack.c.b16 %v3488, %v3487
          %v3502 = vpack.c.b16 %v3490, %v3489
          %v3503 = vpack.c.b16 %v3492, %v3491
          %v3504 = vpack.c.b16 %v3494, %v3493
          %v3505 = vpack.c.b16 %v3496, %v3495
          %v3506 = vpack.c.b16 %v3498, %v3497
          %3515 = vmatpush.bf16.msra.mxu0 %v3506
          %3516 = vmatpush.bf16.msra.mxu0 %v3505
          %3517 = vmatpush.bf16.msra.mxu0 %v3504
          %3518 = vmatpush.bf16.msra.mxu0 %v3503
          %3519 = vmatpush.bf16.msra.mxu0 %v3502
          %3520 = vmatpush.bf16.msra.mxu0 %v3501
          %3521 = vmatpush.bf16.msra.mxu0 %v3500
          %3522 = vmatpush.bf16.msra.mxu0 %v3499
          %3523 = vmatmul.bf16.gmra.mxu0 %v598
          %v3524 = vpop.f32.mrf.mxu0
          %v3525 = vadd.f32 %v3465, %v3524
          %v3526 = vpop.f32.mrf.mxu0
          %v3527 = vadd.f32 %v3465, %v3526
          %3528 = vmatmul.bf16.gmra.mxu0 %v599
          %v3529 = vpop.f32.mrf.mxu0
          %v3530 = vadd.f32 %v3465, %v3529
          %v3531 = vpop.f32.mrf.mxu0
          %v3532 = vadd.f32 %v3465, %v3531
          %3533 = vmatmul.bf16.gmra.mxu0 %v600
          %v3534 = vpop.f32.mrf.mxu0
          %v3535 = vadd.f32 %v3465, %v3534
          %v3536 = vpop.f32.mrf.mxu0
          %v3537 = vadd.f32 %v3465, %v3536
          %3538 = vmatmul.bf16.gmra.mxu0 %v601
          %v3539 = vpop.f32.mrf.mxu0
          %v3540 = vadd.f32 %v3465, %v3539
          %v3541 = vpop.f32.mrf.mxu0
          %v3542 = vadd.f32 %v3465, %v3541
          %3543 = vmatmul.bf16.gmra.mxu0 %v602
          %v3544 = vpop.f32.mrf.mxu0
          %v3545 = vadd.f32 %v3465, %v3544
          %v3546 = vpop.f32.mrf.mxu0
          %v3547 = vadd.f32 %v3465, %v3546
          %3548 = vmatmul.bf16.gmra.mxu0 %v603
          %v3549 = vpop.f32.mrf.mxu0
          %v3550 = vadd.f32 %v3465, %v3549
          %v3551 = vpop.f32.mrf.mxu0
          %v3552 = vadd.f32 %v3465, %v3551
          %3553 = vmatmul.bf16.gmra.mxu0 %v604
          %v3554 = vpop.f32.mrf.mxu0
          %v3555 = vadd.f32 %v3465, %v3554
          %v3556 = vpop.f32.mrf.mxu0
          %v3557 = vadd.f32 %v3465, %v3556
          %3558 = vmatmul.bf16.gmra.mxu0 %v605
          %v3559 = vpop.f32.mrf.mxu0
          %v3560 = vadd.f32 %v3465, %v3559
          %v3561 = vpop.f32.mrf.mxu0
          %v3562 = vadd.f32 %v3465, %v3561
          %3563 = vmatmul.bf16.gmra.mxu0 %v606
          %v3564 = vpop.f32.mrf.mxu0
          %v3565 = vadd.f32 %v3465, %v3564
          %v3566 = vpop.f32.mrf.mxu0
          %v3567 = vadd.f32 %v3465, %v3566
          %3568 = vmatmul.bf16.gmra.mxu0 %v607
          %v3569 = vpop.f32.mrf.mxu0
          %v3570 = vadd.f32 %v3465, %v3569
          %v3571 = vpop.f32.mrf.mxu0
          %v3572 = vadd.f32 %v3465, %v3571
          %3573 = vmatmul.bf16.gmra.mxu0 %v608
          %v3574 = vpop.f32.mrf.mxu0
          %v3575 = vadd.f32 %v3465, %v3574
          %v3576 = vpop.f32.mrf.mxu0
          %v3577 = vadd.f32 %v3465, %v3576
          %3578 = vmatmul.bf16.gmra.mxu0 %v609
          %v3579 = vpop.f32.mrf.mxu0
          %v3580 = vadd.f32 %v3465, %v3579
          %v3581 = vpop.f32.mrf.mxu0
          %v3582 = vadd.f32 %v3465, %v3581
          %3583 = vmatmul.bf16.gmra.mxu0 %v610
          %v3584 = vpop.f32.mrf.mxu0
          %v3585 = vadd.f32 %v3465, %v3584
          %v3586 = vpop.f32.mrf.mxu0
          %v3587 = vadd.f32 %v3465, %v3586
          %3588 = vmatmul.bf16.gmra.mxu0 %v611
          %v3589 = vpop.f32.mrf.mxu0
          %v3590 = vadd.f32 %v3465, %v3589
          %v3591 = vpop.f32.mrf.mxu0
          %v3592 = vadd.f32 %v3465, %v3591
          %3593 = vmatmul.bf16.gmra.mxu0 %v612
          %v3594 = vpop.f32.mrf.mxu0
          %v3595 = vadd.f32 %v3465, %v3594
          %v3596 = vpop.f32.mrf.mxu0
          %v3597 = vadd.f32 %v3465, %v3596
          %3598 = vmatmul.bf16.gmra.mxu0 %v613
          %v3599 = vpop.f32.mrf.mxu0
          %v3600 = vadd.f32 %v3465, %v3599
          %v3601 = vpop.f32.mrf.mxu0
          %v3602 = vadd.f32 %v3465, %v3601
          %3603 = vdwg.mxu0
          %v3604 = vld [vmem:[%s6] sm:$0x1]
          %v3606 = vperm.slane %v3604, 0
          %v3608 = vadd.f32 %v3525, %v3606
          %v3609 = vadd.f32 %v3527, %v3606
          %v3610 = vadd.f32 %v3530, %v3606
          %v3611 = vadd.f32 %v3532, %v3606
          %v3612 = vadd.f32 %v3535, %v3606
          %v3613 = vadd.f32 %v3537, %v3606
          %v3614 = vadd.f32 %v3540, %v3606
          %v3615 = vadd.f32 %v3542, %v3606
          %v3616 = vadd.f32 %v3545, %v3606
          %v3617 = vadd.f32 %v3547, %v3606
          %v3618 = vadd.f32 %v3550, %v3606
          %v3619 = vadd.f32 %v3552, %v3606
          %v3620 = vadd.f32 %v3555, %v3606
          %v3621 = vadd.f32 %v3557, %v3606
          %v3622 = vadd.f32 %v3560, %v3606
          %v3623 = vadd.f32 %v3562, %v3606
          %v3624 = vadd.f32 %v3565, %v3606
          %v3625 = vadd.f32 %v3567, %v3606
          %v3626 = vadd.f32 %v3570, %v3606
          %v3627 = vadd.f32 %v3572, %v3606
          %v3628 = vadd.f32 %v3575, %v3606
          %v3629 = vadd.f32 %v3577, %v3606
          %v3630 = vadd.f32 %v3580, %v3606
          %v3631 = vadd.f32 %v3582, %v3606
          %v3632 = vadd.f32 %v3585, %v3606
          %v3633 = vadd.f32 %v3587, %v3606
          %v3634 = vadd.f32 %v3590, %v3606
          %v3635 = vadd.f32 %v3592, %v3606
          %v3636 = vadd.f32 %v3595, %v3606
          %v3637 = vadd.f32 %v3597, %v3606
          %v3638 = vadd.f32 %v3600, %v3606
          %v3639 = vadd.f32 %v3602, %v3606
          %v3640 = vadd.f32 %v3608, %v3364
          %v3641 = vadd.f32 %v3609, %v3366
          %v3642 = vadd.f32 %v3610, %v3369
          %v3643 = vadd.f32 %v3611, %v3371
          %v3644 = vadd.f32 %v3612, %v3374
          %v3645 = vadd.f32 %v3613, %v3376
          %v3646 = vadd.f32 %v3614, %v3379
          %v3647 = vadd.f32 %v3615, %v3381
          %v3648 = vadd.f32 %v3616, %v3384
          %v3649 = vadd.f32 %v3617, %v3386
          %v3650 = vadd.f32 %v3618, %v3389
          %v3651 = vadd.f32 %v3619, %v3391
          %v3652 = vadd.f32 %v3620, %v3394
          %v3653 = vadd.f32 %v3621, %v3396
          %v3654 = vadd.f32 %v3622, %v3399
          %v3655 = vadd.f32 %v3623, %v3401
          %v3656 = vadd.f32 %v3624, %v3404
          %v3657 = vadd.f32 %v3625, %v3406
          %v3658 = vadd.f32 %v3626, %v3409
          %v3659 = vadd.f32 %v3627, %v3411
          %v3660 = vadd.f32 %v3628, %v3414
          %v3661 = vadd.f32 %v3629, %v3416
          %v3662 = vadd.f32 %v3630, %v3419
          %v3663 = vadd.f32 %v3631, %v3421
          %v3664 = vadd.f32 %v3632, %v3424
          %v3665 = vadd.f32 %v3633, %v3426
          %v3666 = vadd.f32 %v3634, %v3429
          %v3667 = vadd.f32 %v3635, %v3431
          %v3668 = vadd.f32 %v3636, %v3434
          %v3669 = vadd.f32 %v3637, %v3436
          %v3670 = vadd.f32 %v3638, %v3439
          %v3671 = vadd.f32 %v3639, %v3441
          %3672 = vst [vmem:[%s474] sm:$0xff] %v3640
          %3673 = vst [vmem:[%s474 + $0x8] sm:$0xff] %v3641
          %3674 = vst [vmem:[%s474 + $0x10] sm:$0xff] %v3642
          %3675 = vst [vmem:[%s474 + $0x18] sm:$0xff] %v3643
          %3676 = vst [vmem:[%s474 + $0x20] sm:$0xff] %v3644
          %3677 = vst [vmem:[%s474 + $0x28] sm:$0xff] %v3645
          %3678 = vst [vmem:[%s474 + $0x30] sm:$0xff] %v3646
          %3679 = vst [vmem:[%s474 + $0x38] sm:$0xff] %v3647
          %3680 = vst [vmem:[%s474 + $0x40] sm:$0xff] %v3648
          %3681 = vst [vmem:[%s474 + $0x48] sm:$0xff] %v3649
          %3682 = vst [vmem:[%s474 + $0x50] sm:$0xff] %v3650
          %3683 = vst [vmem:[%s474 + $0x58] sm:$0xff] %v3651
          %3684 = vst [vmem:[%s474 + $0x60] sm:$0xff] %v3652
          %3685 = vst [vmem:[%s474 + $0x68] sm:$0xff] %v3653
          %3686 = vst [vmem:[%s474 + $0x70] sm:$0xff] %v3654
          %3687 = vst [vmem:[%s474 + $0x78] sm:$0xff] %v3655
          %3688 = vst [vmem:[%s474 + $0x80] sm:$0xff] %v3656
          %3689 = vst [vmem:[%s474 + $0x88] sm:$0xff] %v3657
          %3690 = vst [vmem:[%s474 + $0x90] sm:$0xff] %v3658
          %3691 = vst [vmem:[%s474 + $0x98] sm:$0xff] %v3659
          %3692 = vst [vmem:[%s474 + $0xa0] sm:$0xff] %v3660
          %3693 = vst [vmem:[%s474 + $0xa8] sm:$0xff] %v3661
          %3694 = vst [vmem:[%s474 + $0xb0] sm:$0xff] %v3662
          %3695 = vst [vmem:[%s474 + $0xb8] sm:$0xff] %v3663
          %3696 = vst [vmem:[%s474 + $0xc0] sm:$0xff] %v3664
          %3697 = vst [vmem:[%s474 + $0xc8] sm:$0xff] %v3665
          %3698 = vst [vmem:[%s474 + $0xd0] sm:$0xff] %v3666
          %3699 = vst [vmem:[%s474 + $0xd8] sm:$0xff] %v3667
          %3700 = vst [vmem:[%s474 + $0xe0] sm:$0xff] %v3668
          %3701 = vst [vmem:[%s474 + $0xe8] sm:$0xff] %v3669
          %3702 = vst [vmem:[%s474 + $0xf0] sm:$0xff] %v3670
          %3703 = vst [vmem:[%s474 + $0xf8] sm:$0xff] %v3671
        $region80: #{tpu_custom_call.1} parent=55 // pred_fallthru
          _
        %p3704 = scmp.gt.s32.totalorder %s33, 0
        // Predicated region
        $region81: #{tpu_custom_call.1} parent=55 // pred_check
          %p3705 = pneg %p3704
        $region82: #{tpu_custom_call.1} parent=55 // pred_check_branch
          %3707 = sbr.rel (%p3705) target = $region84
        $region83: #{tpu_custom_call.1} parent=55 // pred_region
          %v3708 = vld [vmem:[%s474] sm:$0xff]
          %v3709 = vld [vmem:[%s474 + $0x8] sm:$0xff]
          %v3710 = vld [vmem:[%s474 + $0x10] sm:$0xff]
          %v3711 = vld [vmem:[%s474 + $0x18] sm:$0xff]
          %v3712 = vld [vmem:[%s474 + $0x20] sm:$0xff]
          %v3713 = vld [vmem:[%s474 + $0x28] sm:$0xff]
          %v3714 = vld [vmem:[%s474 + $0x30] sm:$0xff]
          %v3715 = vld [vmem:[%s474 + $0x38] sm:$0xff]
          %v3716 = vld [vmem:[%s474 + $0x40] sm:$0xff]
          %v3717 = vld [vmem:[%s474 + $0x48] sm:$0xff]
          %v3718 = vld [vmem:[%s474 + $0x50] sm:$0xff]
          %v3719 = vld [vmem:[%s474 + $0x58] sm:$0xff]
          %v3720 = vld [vmem:[%s474 + $0x60] sm:$0xff]
          %v3721 = vld [vmem:[%s474 + $0x68] sm:$0xff]
          %v3722 = vld [vmem:[%s474 + $0x70] sm:$0xff]
          %v3723 = vld [vmem:[%s474 + $0x78] sm:$0xff]
          %v3724 = vld [vmem:[%s474 + $0x80] sm:$0xff]
          %v3725 = vld [vmem:[%s474 + $0x88] sm:$0xff]
          %v3726 = vld [vmem:[%s474 + $0x90] sm:$0xff]
          %v3727 = vld [vmem:[%s474 + $0x98] sm:$0xff]
          %v3728 = vld [vmem:[%s474 + $0xa0] sm:$0xff]
          %v3729 = vld [vmem:[%s474 + $0xa8] sm:$0xff]
          %v3730 = vld [vmem:[%s474 + $0xb0] sm:$0xff]
          %v3731 = vld [vmem:[%s474 + $0xb8] sm:$0xff]
          %v3732 = vld [vmem:[%s474 + $0xc0] sm:$0xff]
          %v3733 = vld [vmem:[%s474 + $0xc8] sm:$0xff]
          %v3734 = vld [vmem:[%s474 + $0xd0] sm:$0xff]
          %v3735 = vld [vmem:[%s474 + $0xd8] sm:$0xff]
          %v3736 = vld [vmem:[%s474 + $0xe0] sm:$0xff]
          %v3737 = vld [vmem:[%s474 + $0xe8] sm:$0xff]
          %v3738 = vld [vmem:[%s474 + $0xf0] sm:$0xff]
          %v3739 = vld [vmem:[%s474 + $0xf8] sm:$0xff]
          %v3740 = vadd.f32 %v3708, %v3364
          %v3741 = vadd.f32 %v3709, %v3366
          %v3742 = vadd.f32 %v3710, %v3369
          %v3743 = vadd.f32 %v3711, %v3371
          %v3744 = vadd.f32 %v3712, %v3374
          %v3745 = vadd.f32 %v3713, %v3376
          %v3746 = vadd.f32 %v3714, %v3379
          %v3747 = vadd.f32 %v3715, %v3381
          %v3748 = vadd.f32 %v3716, %v3384
          %v3749 = vadd.f32 %v3717, %v3386
          %v3750 = vadd.f32 %v3718, %v3389
          %v3751 = vadd.f32 %v3719, %v3391
          %v3752 = vadd.f32 %v3720, %v3394
          %v3753 = vadd.f32 %v3721, %v3396
          %v3754 = vadd.f32 %v3722, %v3399
          %v3755 = vadd.f32 %v3723, %v3401
          %v3756 = vadd.f32 %v3724, %v3404
          %v3757 = vadd.f32 %v3725, %v3406
          %v3758 = vadd.f32 %v3726, %v3409
          %v3759 = vadd.f32 %v3727, %v3411
          %v3760 = vadd.f32 %v3728, %v3414
          %v3761 = vadd.f32 %v3729, %v3416
          %v3762 = vadd.f32 %v3730, %v3419
          %v3763 = vadd.f32 %v3731, %v3421
          %v3764 = vadd.f32 %v3732, %v3424
          %v3765 = vadd.f32 %v3733, %v3426
          %v3766 = vadd.f32 %v3734, %v3429
          %v3767 = vadd.f32 %v3735, %v3431
          %v3768 = vadd.f32 %v3736, %v3434
          %v3769 = vadd.f32 %v3737, %v3436
          %v3770 = vadd.f32 %v3738, %v3439
          %v3771 = vadd.f32 %v3739, %v3441
          %3772 = vst [vmem:[%s474] sm:$0xff] %v3740
          %3773 = vst [vmem:[%s474 + $0x8] sm:$0xff] %v3741
          %3774 = vst [vmem:[%s474 + $0x10] sm:$0xff] %v3742
          %3775 = vst [vmem:[%s474 + $0x18] sm:$0xff] %v3743
          %3776 = vst [vmem:[%s474 + $0x20] sm:$0xff] %v3744
          %3777 = vst [vmem:[%s474 + $0x28] sm:$0xff] %v3745
          %3778 = vst [vmem:[%s474 + $0x30] sm:$0xff] %v3746
          %3779 = vst [vmem:[%s474 + $0x38] sm:$0xff] %v3747
          %3780 = vst [vmem:[%s474 + $0x40] sm:$0xff] %v3748
          %3781 = vst [vmem:[%s474 + $0x48] sm:$0xff] %v3749
          %3782 = vst [vmem:[%s474 + $0x50] sm:$0xff] %v3750
          %3783 = vst [vmem:[%s474 + $0x58] sm:$0xff] %v3751
          %3784 = vst [vmem:[%s474 + $0x60] sm:$0xff] %v3752
          %3785 = vst [vmem:[%s474 + $0x68] sm:$0xff] %v3753
          %3786 = vst [vmem:[%s474 + $0x70] sm:$0xff] %v3754
          %3787 = vst [vmem:[%s474 + $0x78] sm:$0xff] %v3755
          %3788 = vst [vmem:[%s474 + $0x80] sm:$0xff] %v3756
          %3789 = vst [vmem:[%s474 + $0x88] sm:$0xff] %v3757
          %3790 = vst [vmem:[%s474 + $0x90] sm:$0xff] %v3758
          %3791 = vst [vmem:[%s474 + $0x98] sm:$0xff] %v3759
          %3792 = vst [vmem:[%s474 + $0xa0] sm:$0xff] %v3760
          %3793 = vst [vmem:[%s474 + $0xa8] sm:$0xff] %v3761
          %3794 = vst [vmem:[%s474 + $0xb0] sm:$0xff] %v3762
          %3795 = vst [vmem:[%s474 + $0xb8] sm:$0xff] %v3763
          %3796 = vst [vmem:[%s474 + $0xc0] sm:$0xff] %v3764
          %3797 = vst [vmem:[%s474 + $0xc8] sm:$0xff] %v3765
          %3798 = vst [vmem:[%s474 + $0xd0] sm:$0xff] %v3766
          %3799 = vst [vmem:[%s474 + $0xd8] sm:$0xff] %v3767
          %3800 = vst [vmem:[%s474 + $0xe0] sm:$0xff] %v3768
          %3801 = vst [vmem:[%s474 + $0xe8] sm:$0xff] %v3769
          %3802 = vst [vmem:[%s474 + $0xf0] sm:$0xff] %v3770
          %3803 = vst [vmem:[%s474 + $0xf8] sm:$0xff] %v3771
        $region84: #{tpu_custom_call.1} parent=55 // pred_fallthru
          _
        %s3804 = sand.u32 %s267, 1
        %s3805 = scalar_lea.sflag [#allocation4], %s3804
        %s3806 = sand.u32 %s267, 1
        %s3807 = smul.addr %s3806, 256
        %s3808 = scalar_lea.vmem [#allocation11], %s3807
        // Predicated region
        $region85: #{tpu_custom_call.1} parent=55 // pred_check
          %p3809 = pneg %p277
        $region86: #{tpu_custom_call.1} parent=55 // pred_check_branch
          %3811 = sbr.rel (%p3809) target = $region88
        $region87: #{tpu_custom_call.1} parent=55 // pred_region
          %3813 = vsyncadd %s3805, 0
          %s3814 = smul.addr %s32, 32
          %s3815 = smul.addr %s3814, 8
          %s3816 = scalar_lea.hbm %s9, %s3815
          %s3817 = sshll.u32 %s3808, 4
          %s3818 = int_to_ptr.vmem [resolvable:$true] %s3817
          %s3819 = sshll.u32 %s3816, 4
          %s3820 = int_to_ptr.hbm [resolvable:$true] %s3819
          %3825 = dma.vmem_to_hbm [thread:$0]  %s3818, 4096, %s3820, %s3805, 128, 128, 8
        $region88: #{tpu_custom_call.1} parent=55 // pred_fallthru
          _
      $region56: #{tpu_custom_call.1} parent=5 // pred_fallthru
        _
      %p3826 = scmp.le.s32.totalorder 2, %s23
      // Predicated region
      $region89: #{tpu_custom_call.1} parent=5 // pred_check
        %p3827 = pneg %p3826
      $region90: #{tpu_custom_call.1} parent=5 // pred_check_branch
        %3829 = sbr.rel (%p3827) target = $region92
      $region91: #{tpu_custom_call.1} parent=5 // pred_region
        %s3830 = ssub.s32 %s23, 2
        // Predicated region
        $region93: #{tpu_custom_call.1} parent=91 // pred_check
          %p3831 = pneg %p283
        $region94: #{tpu_custom_call.1} parent=91 // pred_check_branch
          %3833 = sbr.rel (%p3831) target = $region96
        $region95: #{tpu_custom_call.1} parent=91 // pred_region
          %s3834 = sand.u32 %s268, 1
          %s3835 = scalar_lea.sflag [#allocation4], %s3834
          %s3836 = sand.u32 %s268, 1
          %s3837 = smul.addr %s3836, 256
          %s3838 = scalar_lea.vmem [#allocation11], %s3837
          %3840 = dma.done %s3835, 4096
        $region96: #{tpu_custom_call.1} parent=91 // pred_fallthru
          _
      $region92: #{tpu_custom_call.1} parent=5 // pred_fallthru
        _
    $region6: #{tpu_custom_call.1} parent=1 // loop_footer
      %s27 = sadd.s32 1, %s23
    $region7: #{tpu_custom_call.1} parent=1 // loop_footer_branch
      %22 = sbr.rel target = $region3
    $region8: #{tpu_custom_call.1} parent=1 // loop_exit
      _
    %3841 = vsyncpa [#allocation3], 1
    %s3842 = scalar_lea.sflag [#allocation3], 1
    %3843 = vsyncpa %s3842, 1
    %3844 = vsyncpa [#allocation6], 1
    %3845 = vsyncpa [#allocation9], 1
    %3846 = vsyncpa [#allocation4], 1
    %s3847 = scalar_lea.sflag [#allocation4], 1
    %3848 = vsyncpa %s3847, 1

</llo_original>
